<compile_context>
chip_gen: v6e
topology: v6e:2x2x1
jax: 0.10.0
libtpu: 0.0.40
codegen_flags: <defaults>
</compile_context>

<pallas_src>
import functools
import math

import jax
import jax.numpy as jnp
from jax.experimental import pallas as pl
from jax.experimental.pallas import tpu as pltpu

# ----------------------------- model config ---------------------------------
VOCAB = 64
HIDDEN = 32          # bert_hid_size
N_LAYERS = 2
N_HEADS = 4
D_HEAD = HIDDEN // N_HEADS
INTERMEDIATE = 64
MAX_POS = 16
LABEL_NUM = 3
LABEL_PAD = 128      # classifier output padded to a full lane tile
LN_EPS = 1e-12
BATCH = 2
SEQ = 8


# --------------------------- in-kernel helpers --------------------------------
def _layernorm(x, g, b):
    mu = jnp.mean(x, axis=-1, keepdims=True)
    var = jnp.mean(jnp.square(x - mu), axis=-1, keepdims=True)
    return (x - mu) * jax.lax.rsqrt(var + LN_EPS) * g + b


# ----------------------------- fused BERT kernel ------------------------------
def _fused_bert_kernel(
    x_ref, mask_ref, vecs_ref,
    qkv_w_ref, o_w_ref, f1_w_ref, f2_w_ref, pool_w_ref, cls_w_ref,
    out_ref,
    ctx_scr,
    *, n_heads):
    m, hid = x_ref.shape                 # M = B*S, H
    b_sz = mask_ref.shape[0]             # batch
    s = m // b_sz                        # seq len
    dh = hid // n_heads
    n_layers = qkv_w_ref.shape[0]
    inter = f1_w_ref.shape[2]
    scale = 1.0 / math.sqrt(dh)

    def vrow(r, w):
        # one packed bias / LN-param row (f32), static sublane index + lane slice
        return vecs_ref[r:r + 1, :w]

    # embedding LayerNorm (f32 statistics)
    x = _layernorm(x_ref[...], vrow(0, hid), vrow(1, hid))           # [M, H] f32

    for li in range(n_layers):
        base = 2 + li * 8

        # ---- fused QKV projection: a single [M,H] x [H,3H] MXU pass ----
        x_bf = x.astype(jnp.bfloat16)                                # 1 cast / layer
        qkv = jnp.dot(x_bf, qkv_w_ref[li],
                      preferred_element_type=jnp.float32) + vrow(base + 0, 3 * hid)
        qkv_bf = qkv.astype(jnp.bfloat16)                            # 1 cast / layer

        # ---- multi-head masked attention on per-(batch, head) [S,S] tiles ----
        for h in range(n_heads):
            q_h = qkv_bf[:, h * dh:(h + 1) * dh]                     # [M, dh] bf16
            k_h = qkv_bf[:, hid + h * dh: hid + (h + 1) * dh]        # [M, dh] bf16
            v_h = qkv_bf[:, 2 * hid + h * dh: 2 * hid + (h + 1) * dh]
            for bb in range(b_sz):
                r0 = bb * s
                q_bh = q_h[r0:r0 + s, :]                             # [S, dh]
                k_bh = k_h[r0:r0 + s, :]
                v_bh = v_h[r0:r0 + s, :]
                # scores contracting D_HEAD (no k.T transpose), f32 accumulate
                sc = jax.lax.dot_general(
                    q_bh, k_bh, (((1,), (1,)), ((), ())),
                    preferred_element_type=jnp.float32)              # [S, S]
                sc = sc * scale + mask_ref[bb:bb + 1, :]             # key mask
                sc = sc - jnp.max(sc, axis=-1, keepdims=True)
                p = jnp.exp(sc)
                p = p * pl.reciprocal(jnp.sum(p, axis=-1, keepdims=True),
                                      approx=True)
                ctx_bh = jnp.dot(p.astype(jnp.bfloat16), v_bh,
                                 preferred_element_type=jnp.float32)  # [S, dh]
                ctx_scr[r0:r0 + s, h * dh:(h + 1) * dh] = ctx_bh

        # one O-projection matmul per layer over the stacked head contexts
        attn = jnp.dot(ctx_scr[...].astype(jnp.bfloat16), o_w_ref[li],
                       preferred_element_type=jnp.float32) + vrow(base + 1, hid)
        x = _layernorm(x + attn, vrow(base + 2, hid), vrow(base + 3, hid))

        # ---- feed-forward ----
        ff = jnp.dot(x.astype(jnp.bfloat16), f1_w_ref[li],
                     preferred_element_type=jnp.float32) + vrow(base + 4, inter)
        # TODO(synk): HF BERT default is exact erf GELU; tanh approximation is
        # used here since erf has no guaranteed Mosaic lowering.
        ff = jax.nn.gelu(ff, approximate=True)
        ff = jnp.dot(ff.astype(jnp.bfloat16), f2_w_ref[li],
                     preferred_element_type=jnp.float32) + vrow(base + 5, hid)
        x = _layernorm(x + ff, vrow(base + 6, hid), vrow(base + 7, hid))

    # ---- [CLS] rows (rows b*S) via static sublane slices, then pooler ----
    pr = 2 + n_layers * 8
    cls_tok = jnp.concatenate([x[bb * s: bb * s + 1, :] for bb in range(b_sz)],
                              axis=0)                                # [B, H] f32
    pooled = jnp.tanh(jnp.dot(cls_tok.astype(jnp.bfloat16), pool_w_ref[...],
                              preferred_element_type=jnp.float32) + vrow(pr, hid))
    # lane-dense (128-wide) store; sliced to LABEL_NUM outside the kernel.
    out_ref[...] = jnp.dot(pooled.astype(jnp.bfloat16), cls_w_ref[...],
                           preferred_element_type=jnp.float32) \
        + vrow(pr + 1, out_ref.shape[1])


# ----------------------------- parameters ------------------------------------
def init_params(key):
    keys = jax.random.split(key, 12)

    def g(k, shape, scale=0.02):
        return scale * jax.random.normal(k, shape, jnp.float32)

    return {
        "word_emb": g(keys[0], (VOCAB, HIDDEN)),
        "pos_emb": g(keys[1], (MAX_POS, HIDDEN)),
        "tok_emb": g(keys[2], (2, HIDDEN)),
        "emb_ln_g": jnp.ones((1, HIDDEN), jnp.float32),
        "emb_ln_b": jnp.zeros((1, HIDDEN), jnp.float32),
        # per-layer params stacked along a leading layer axis; QKV pre-fused.
        "qkv_w": g(keys[3], (N_LAYERS, HIDDEN, 3 * HIDDEN)),
        "qkv_b": g(keys[4], (N_LAYERS, 1, 3 * HIDDEN), 0.01),
        "o_w": g(keys[5], (N_LAYERS, HIDDEN, HIDDEN)),
        "o_b": g(keys[6], (N_LAYERS, 1, HIDDEN), 0.01),
        "ln1_g": jnp.ones((N_LAYERS, 1, HIDDEN), jnp.float32),
        "ln1_b": jnp.zeros((N_LAYERS, 1, HIDDEN), jnp.float32),
        "f1_w": g(keys[7], (N_LAYERS, HIDDEN, INTERMEDIATE)),
        "f1_b": g(keys[8], (N_LAYERS, 1, INTERMEDIATE), 0.01),
        "f2_w": g(keys[9], (N_LAYERS, INTERMEDIATE, HIDDEN)),
        "f2_b": jnp.zeros((N_LAYERS, 1, HIDDEN), jnp.float32),
        "ln2_g": jnp.ones((N_LAYERS, 1, HIDDEN), jnp.float32),
        "ln2_b": jnp.zeros((N_LAYERS, 1, HIDDEN), jnp.float32),
        "pool_w": g(keys[10], (HIDDEN, HIDDEN)),
        "pool_b": jnp.zeros((1, HIDDEN), jnp.float32),
        "cls_w": g(keys[11], (HIDDEN, LABEL_NUM)),
        "cls_b": jnp.zeros((1, LABEL_NUM), jnp.float32),
    }


# ----------------------------- forward ----------------------------------------
def classificate_with_cls(params, bert_inputs):
    """Forward pass equivalent to classificateWithCls.forward(bert_inputs)."""
    B, S = bert_inputs.shape
    if S > MAX_POS:
        raise ValueError(f"sequence length {S} exceeds MAX_POS={MAX_POS}")
    M = B * S

    # ------------- cheap XLA glue: embedding gather + [B,S] key mask ----------
    x_emb = (params["word_emb"][bert_inputs]
             + params["pos_emb"][None, :S, :]
             + params["tok_emb"][0][None, None, :]).reshape(M, HIDDEN)

    # additive key mask (attention_mask = bert_inputs.ne(0)); tiny [B,S] f32,
    # the dense [M,M] mask is never materialized.
    # TODO(synk): an all-padding sequence would softmax over masked keys only;
    # unreachable here ([CLS] token id is never 0) but not guarded.
    add_mask = jnp.where(bert_inputs != 0, 0.0, -1e9).astype(jnp.float32)  # [B,S]

    # pad classifier to 128 output lanes for an unmasked, lane-dense HBM store.
    cls_w_pad = jnp.zeros((HIDDEN, LABEL_PAD), jnp.float32).at[:, :LABEL_NUM].set(params["cls_w"])
    cls_b_pad = jnp.zeros((1, LABEL_PAD), jnp.float32).at[:, :LABEL_NUM].set(params["cls_b"])

    # pack every tiny bias / LN vector into ONE [rows, 128] f32 slab so the
    # kernel has 9 operands instead of 20 (fewer DMA descriptors in the prologue).
    def row(v):
        v = v.reshape(1, -1).astype(jnp.float32)
        return jnp.pad(v, ((0, 0), (0, LABEL_PAD - v.shape[1])))

    rows = [row(params["emb_ln_g"]), row(params["emb_ln_b"])]
    for li in range(N_LAYERS):
        rows += [row(params["qkv_b"][li]), row(params["o_b"][li]),
                 row(params["ln1_g"][li]), row(params["ln1_b"][li]),
                 row(params["f1_b"][li]), row(params["f2_b"][li]),
                 row(params["ln2_g"][li]), row(params["ln2_b"][li])]
    rows += [row(params["pool_b"]), row(cls_b_pad)]
    vecs = jnp.concatenate(rows, axis=0)                   # [2 + 8*L + 2, 128]

    bf16 = lambda w: w.astype(jnp.bfloat16)                # weights shipped as bf16

    kern = functools.partial(_fused_bert_kernel, n_heads=N_HEADS)
    # Single grid step: all weights (~50 KB bf16) and activations ([16,*] tiles)
    # stay VMEM-resident for the whole forward pass.
    # TODO(synk): add a "parallel" row-tile grid axis (dimension_semantics) and a
    # per-layer weight grid axis once B*S / N_LAYERS grow past toy sizes.
    logits_pad = pl.pallas_call(
        kern,
        out_shape=jax.ShapeDtypeStruct((B, LABEL_PAD), jnp.float32),
        scratch_shapes=[pltpu.VMEM((M, HIDDEN), jnp.float32)],   # head-context buffer
    )(x_emb, add_mask, vecs,
      bf16(params["qkv_w"]), bf16(params["o_w"]),
      bf16(params["f1_w"]), bf16(params["f2_w"]),
      bf16(params["pool_w"]), bf16(cls_w_pad))

    return logits_pad[:, :LABEL_NUM]


# ----------------------------- main -------------------------------------------
if __name__ == "__main__":
    key = jax.random.PRNGKey(0)
    pkey, dkey = jax.random.split(key)

    params = init_params(pkey)

    # Token ids in [1, VOCAB); zero out a few trailing positions so the
    # attention mask (bert_inputs != 0) is actually exercised.
    tokens = jax.random.randint(dkey, (BATCH, SEQ), 1, VOCAB, dtype=jnp.int32)
    tokens = tokens.at[1, -2:].set(0)

    logits = jax.jit(classificate_with_cls)(params, tokens)
    jax.block_until_ready(logits)

    assert logits.shape == (BATCH, LABEL_NUM)
    assert logits.dtype == jnp.float32
    assert bool(jnp.all(jnp.isfinite(logits)))
    print("KERNEL_OK")
</pallas_src>

<mosaic_0001>
module attributes {stable_mosaic.version = 11 : i64} {
  func.func @_fused_bert_kernel(%arg0: memref<16x32xf32, #tpu.memory_space<vmem>>, %arg1: memref<2x8xf32, #tpu.memory_space<vmem>>, %arg2: memref<20x128xf32, #tpu.memory_space<vmem>>, %arg3: memref<2x32x96xbf16, #tpu.memory_space<vmem>>, %arg4: memref<2x32x32xbf16, #tpu.memory_space<vmem>>, %arg5: memref<2x32x64xbf16, #tpu.memory_space<vmem>>, %arg6: memref<2x64x32xbf16, #tpu.memory_space<vmem>>, %arg7: memref<32x32xbf16, #tpu.memory_space<vmem>>, %arg8: memref<32x128xbf16, #tpu.memory_space<vmem>>, %arg9: memref<2x128xf32, #tpu.memory_space<vmem>>, %arg10: memref<16x32xf32, #tpu.memory_space<vmem>>) attributes {dimension_semantics = [], scalar_prefetch = 0 : i64, scratch_operands = 1 : i64, tpu.core_type = #tpu.core_type<tc>} {
    %c0 = arith.constant 0 : index
    %c0_0 = arith.constant 0 : index
    %0 = vector.load %arg0[%c0, %c0_0] : memref<16x32xf32, #tpu.memory_space<vmem>>, vector<16x32xf32>
    %c0_1 = arith.constant 0 : index
    %c0_2 = arith.constant 0 : index
    %1 = vector.load %arg2[%c0_1, %c0_2] : memref<20x128xf32, #tpu.memory_space<vmem>>, vector<1x32xf32>
    %c1 = arith.constant 1 : index
    %c0_3 = arith.constant 0 : index
    %2 = vector.load %arg2[%c1, %c0_3] : memref<20x128xf32, #tpu.memory_space<vmem>>, vector<1x32xf32>
    %cst = arith.constant dense<0.000000e+00> : vector<16xf32>
    %3 = vector.multi_reduction <add>, %0, %cst [1] : vector<16x32xf32> to vector<16xf32>
    %4 = vector.shape_cast %3 : vector<16xf32> to vector<16x1xf32>
    %cst_4 = arith.constant 3.200000e+01 : f32
    %5 = vector.broadcast %cst_4 : f32 to vector<16x1xf32>
    %6 = arith.divf %4, %5 : vector<16x1xf32>
    %7 = vector.broadcast %6 : vector<16x1xf32> to vector<16x32xf32>
    %8 = arith.subf %0, %7 : vector<16x32xf32>
    %9 = arith.mulf %8, %8 : vector<16x32xf32>
    %cst_5 = arith.constant dense<0.000000e+00> : vector<16xf32>
    %10 = vector.multi_reduction <add>, %9, %cst_5 [1] : vector<16x32xf32> to vector<16xf32>
    %11 = vector.shape_cast %10 : vector<16xf32> to vector<16x1xf32>
    %cst_6 = arith.constant 3.200000e+01 : f32
    %12 = vector.broadcast %cst_6 : f32 to vector<16x1xf32>
    %13 = arith.divf %11, %12 : vector<16x1xf32>
    %14 = vector.broadcast %6 : vector<16x1xf32> to vector<16x32xf32>
    %15 = arith.subf %0, %14 : vector<16x32xf32>
    %cst_7 = arith.constant 9.99999996E-13 : f32
    %16 = vector.broadcast %cst_7 : f32 to vector<16x1xf32>
    %17 = arith.addf %13, %16 : vector<16x1xf32>
    %18 = math.rsqrt %17 : vector<16x1xf32>
    %19 = vector.broadcast %18 : vector<16x1xf32> to vector<16x32xf32>
    %20 = arith.mulf %15, %19 : vector<16x32xf32>
    %21 = vector.broadcast %1 : vector<1x32xf32> to vector<16x32xf32>
    %22 = arith.mulf %20, %21 : vector<16x32xf32>
    %23 = vector.broadcast %2 : vector<1x32xf32> to vector<16x32xf32>
    %24 = arith.addf %22, %23 : vector<16x32xf32>
    %25 = arith.truncf %24 : vector<16x32xf32> to vector<16x32xbf16>
    %c0_8 = arith.constant 0 : index
    %c0_9 = arith.constant 0 : index
    %c0_10 = arith.constant 0 : index
    %26 = vector.load %arg3[%c0_8, %c0_9, %c0_10] : memref<2x32x96xbf16, #tpu.memory_space<vmem>>, vector<1x32x96xbf16>
    %27 = vector.shape_cast %26 : vector<1x32x96xbf16> to vector<32x96xbf16>
    %cst_11 = arith.constant dense<0.000000e+00> : vector<16x96xf32>
    %28 = tpu.matmul %25, %27, %cst_11 {dimension_numbers = #tpu.dot_dimension_numbers<[1], [0], [0], [1], [0, 0, 1, 1], [], []>} : vector<16x32xbf16>, vector<32x96xbf16>, vector<16x96xf32> -> vector<16x96xf32>
    %c2 = arith.constant 2 : index
    %c0_12 = arith.constant 0 : index
    %29 = vector.load %arg2[%c2, %c0_12] : memref<20x128xf32, #tpu.memory_space<vmem>>, vector<1x96xf32>
    %30 = vector.broadcast %29 : vector<1x96xf32> to vector<16x96xf32>
    %31 = arith.addf %28, %30 : vector<16x96xf32>
    %32 = arith.truncf %31 : vector<16x96xf32> to vector<16x96xbf16>
    %33 = vector.extract_strided_slice %32 {offsets = [0, 0], sizes = [16, 8], strides = [1, 1]} : vector<16x96xbf16> to vector<16x8xbf16>
    %34 = vector.extract_strided_slice %32 {offsets = [0, 32], sizes = [16, 8], strides = [1, 1]} : vector<16x96xbf16> to vector<16x8xbf16>
    %35 = vector.extract_strided_slice %32 {offsets = [0, 64], sizes = [16, 8], strides = [1, 1]} : vector<16x96xbf16> to vector<16x8xbf16>
    %36 = vector.extract_strided_slice %33 {offsets = [0, 0], sizes = [8, 8], strides = [1, 1]} : vector<16x8xbf16> to vector<8x8xbf16>
    %37 = vector.extract_strided_slice %34 {offsets = [0, 0], sizes = [8, 8], strides = [1, 1]} : vector<16x8xbf16> to vector<8x8xbf16>
    %38 = vector.extract_strided_slice %35 {offsets = [0, 0], sizes = [8, 8], strides = [1, 1]} : vector<16x8xbf16> to vector<8x8xbf16>
    %cst_13 = arith.constant dense<0.000000e+00> : vector<8x8xf32>
    %39 = tpu.matmul %36, %37, %cst_13 {dimension_numbers = #tpu.dot_dimension_numbers<[1], [1], [0], [0], [0, 0, 1, 0], [], []>} : vector<8x8xbf16>, vector<8x8xbf16>, vector<8x8xf32> -> vector<8x8xf32>
    %cst_14 = arith.constant 0.353553385 : f32
    %40 = vector.broadcast %cst_14 : f32 to vector<8x8xf32>
    %41 = arith.mulf %39, %40 : vector<8x8xf32>
    %c0_15 = arith.constant 0 : index
    %c0_16 = arith.constant 0 : index
    %42 = vector.load %arg1[%c0_15, %c0_16] : memref<2x8xf32, #tpu.memory_space<vmem>>, vector<1x8xf32>
    %43 = vector.broadcast %42 : vector<1x8xf32> to vector<8x8xf32>
    %44 = arith.addf %41, %43 : vector<8x8xf32>
    %cst_17 = arith.constant dense<0xFF800000> : vector<8xf32>
    %45 = vector.multi_reduction <maximumf>, %44, %cst_17 [1] : vector<8x8xf32> to vector<8xf32>
    %46 = vector.shape_cast %45 : vector<8xf32> to vector<8x1xf32>
    %47 = vector.broadcast %46 : vector<8x1xf32> to vector<8x8xf32>
    %48 = arith.subf %44, %47 : vector<8x8xf32>
    %49 = math.exp %48 : vector<8x8xf32>
    %cst_18 = arith.constant dense<0.000000e+00> : vector<8xf32>
    %50 = vector.multi_reduction <add>, %49, %cst_18 [1] : vector<8x8xf32> to vector<8xf32>
    %51 = vector.shape_cast %50 : vector<8xf32> to vector<8x1xf32>
    %52 = tpu.reciprocal %51 {approx = true} : vector<8x1xf32> -> vector<8x1xf32>
    %53 = vector.broadcast %52 : vector<8x1xf32> to vector<8x8xf32>
    %54 = arith.mulf %49, %53 : vector<8x8xf32>
    %55 = arith.truncf %54 : vector<8x8xf32> to vector<8x8xbf16>
    %cst_19 = arith.constant dense<0.000000e+00> : vector<8x8xf32>
    %56 = tpu.matmul %55, %38, %cst_19 {dimension_numbers = #tpu.dot_dimension_numbers<[1], [0], [0], [1], [0, 0, 1, 1], [], []>} : vector<8x8xbf16>, vector<8x8xbf16>, vector<8x8xf32> -> vector<8x8xf32>
    %c0_20 = arith.constant 0 : index
    %c0_21 = arith.constant 0 : index
    %57 = vector.load %arg10[%c0_20, %c0_21] : memref<16x32xf32, #tpu.memory_space<vmem>>, vector<8x8xf32>
    tpu.vector_store %arg10[%c0_20, %c0_21], %56 {strides = array<i32>} : memref<16x32xf32, #tpu.memory_space<vmem>>, vector<8x8xf32>,
    %58 = vector.extract_strided_slice %33 {offsets = [8, 0], sizes = [8, 8], strides = [1, 1]} : vector<16x8xbf16> to vector<8x8xbf16>
    %59 = vector.extract_strided_slice %34 {offsets = [8, 0], sizes = [8, 8], strides = [1, 1]} : vector<16x8xbf16> to vector<8x8xbf16>
    %60 = vector.extract_strided_slice %35 {offsets = [8, 0], sizes = [8, 8], strides = [1, 1]} : vector<16x8xbf16> to vector<8x8xbf16>
    %cst_22 = arith.constant dense<0.000000e+00> : vector<8x8xf32>
    %61 = tpu.matmul %58, %59, %cst_22 {dimension_numbers = #tpu.dot_dimension_numbers<[1], [1], [0], [0], [0, 0, 1, 0], [], []>} : vector<8x8xbf16>, vector<8x8xbf16>, vector<8x8xf32> -> vector<8x8xf32>
    %cst_23 = arith.constant 0.353553385 : f32
    %62 = vector.broadcast %cst_23 : f32 to vector<8x8xf32>
    %63 = arith.mulf %61, %62 : vector<8x8xf32>
    %c1_24 = arith.constant 1 : index
    %c0_25 = arith.constant 0 : index
    %64 = vector.load %arg1[%c1_24, %c0_25] : memref<2x8xf32, #tpu.memory_space<vmem>>, vector<1x8xf32>
    %65 = vector.broadcast %64 : vector<1x8xf32> to vector<8x8xf32>
    %66 = arith.addf %63, %65 : vector<8x8xf32>
    %cst_26 = arith.constant dense<0xFF800000> : vector<8xf32>
    %67 = vector.multi_reduction <maximumf>, %66, %cst_26 [1] : vector<8x8xf32> to vector<8xf32>
    %68 = vector.shape_cast %67 : vector<8xf32> to vector<8x1xf32>
    %69 = vector.broadcast %68 : vector<8x1xf32> to vector<8x8xf32>
    %70 = arith.subf %66, %69 : vector<8x8xf32>
    %71 = math.exp %70 : vector<8x8xf32>
    %cst_27 = arith.constant dense<0.000000e+00> : vector<8xf32>
    %72 = vector.multi_reduction <add>, %71, %cst_27 [1] : vector<8x8xf32> to vector<8xf32>
    %73 = vector.shape_cast %72 : vector<8xf32> to vector<8x1xf32>
    %74 = tpu.reciprocal %73 {approx = true} : vector<8x1xf32> -> vector<8x1xf32>
    %75 = vector.broadcast %74 : vector<8x1xf32> to vector<8x8xf32>
    %76 = arith.mulf %71, %75 : vector<8x8xf32>
    %77 = arith.truncf %76 : vector<8x8xf32> to vector<8x8xbf16>
    %cst_28 = arith.constant dense<0.000000e+00> : vector<8x8xf32>
    %78 = tpu.matmul %77, %60, %cst_28 {dimension_numbers = #tpu.dot_dimension_numbers<[1], [0], [0], [1], [0, 0, 1, 1], [], []>} : vector<8x8xbf16>, vector<8x8xbf16>, vector<8x8xf32> -> vector<8x8xf32>
    %c8 = arith.constant 8 : index
    %c0_29 = arith.constant 0 : index
    %79 = vector.load %arg10[%c8, %c0_29] : memref<16x32xf32, #tpu.memory_space<vmem>>, vector<8x8xf32>
    tpu.vector_store %arg10[%c8, %c0_29], %78 {strides = array<i32>} : memref<16x32xf32, #tpu.memory_space<vmem>>, vector<8x8xf32>,
    %80 = vector.extract_strided_slice %32 {offsets = [0, 8], sizes = [16, 8], strides = [1, 1]} : vector<16x96xbf16> to vector<16x8xbf16>
    %81 = vector.extract_strided_slice %32 {offsets = [0, 40], sizes = [16, 8], strides = [1, 1]} : vector<16x96xbf16> to vector<16x8xbf16>
    %82 = vector.extract_strided_slice %32 {offsets = [0, 72], sizes = [16, 8], strides = [1, 1]} : vector<16x96xbf16> to vector<16x8xbf16>
    %83 = vector.extract_strided_slice %80 {offsets = [0, 0], sizes = [8, 8], strides = [1, 1]} : vector<16x8xbf16> to vector<8x8xbf16>
    %84 = vector.extract_strided_slice %81 {offsets = [0, 0], sizes = [8, 8], strides = [1, 1]} : vector<16x8xbf16> to vector<8x8xbf16>
    %85 = vector.extract_strided_slice %82 {offsets = [0, 0], sizes = [8, 8], strides = [1, 1]} : vector<16x8xbf16> to vector<8x8xbf16>
    %cst_30 = arith.constant dense<0.000000e+00> : vector<8x8xf32>
    %86 = tpu.matmul %83, %84, %cst_30 {dimension_numbers = #tpu.dot_dimension_numbers<[1], [1], [0], [0], [0, 0, 1, 0], [], []>} : vector<8x8xbf16>, vector<8x8xbf16>, vector<8x8xf32> -> vector<8x8xf32>
    %cst_31 = arith.constant 0.353553385 : f32
    %87 = vector.broadcast %cst_31 : f32 to vector<8x8xf32>
    %88 = arith.mulf %86, %87 : vector<8x8xf32>
    %c0_32 = arith.constant 0 : index
    %c0_33 = arith.constant 0 : index
    %89 = vector.load %arg1[%c0_32, %c0_33] : memref<2x8xf32, #tpu.memory_space<vmem>>, vector<1x8xf32>
    %90 = vector.broadcast %89 : vector<1x8xf32> to vector<8x8xf32>
    %91 = arith.addf %88, %90 : vector<8x8xf32>
    %cst_34 = arith.constant dense<0xFF800000> : vector<8xf32>
    %92 = vector.multi_reduction <maximumf>, %91, %cst_34 [1] : vector<8x8xf32> to vector<8xf32>
    %93 = vector.shape_cast %92 : vector<8xf32> to vector<8x1xf32>
    %94 = vector.broadcast %93 : vector<8x1xf32> to vector<8x8xf32>
    %95 = arith.subf %91, %94 : vector<8x8xf32>
    %96 = math.exp %95 : vector<8x8xf32>
    %cst_35 = arith.constant dense<0.000000e+00> : vector<8xf32>
    %97 = vector.multi_reduction <add>, %96, %cst_35 [1] : vector<8x8xf32> to vector<8xf32>
    %98 = vector.shape_cast %97 : vector<8xf32> to vector<8x1xf32>
    %99 = tpu.reciprocal %98 {approx = true} : vector<8x1xf32> -> vector<8x1xf32>
    %100 = vector.broadcast %99 : vector<8x1xf32> to vector<8x8xf32>
    %101 = arith.mulf %96, %100 : vector<8x8xf32>
    %102 = arith.truncf %101 : vector<8x8xf32> to vector<8x8xbf16>
    %cst_36 = arith.constant dense<0.000000e+00> : vector<8x8xf32>
    %103 = tpu.matmul %102, %85, %cst_36 {dimension_numbers = #tpu.dot_dimension_numbers<[1], [0], [0], [1], [0, 0, 1, 1], [], []>} : vector<8x8xbf16>, vector<8x8xbf16>, vector<8x8xf32> -> vector<8x8xf32>
    %c0_37 = arith.constant 0 : index
    %c8_38 = arith.constant 8 : index
    %104 = vector.load %arg10[%c0_37, %c8_38] : memref<16x32xf32, #tpu.memory_space<vmem>>, vector<8x8xf32>
    tpu.vector_store %arg10[%c0_37, %c8_38], %103 {strides = array<i32>} : memref<16x32xf32, #tpu.memory_space<vmem>>, vector<8x8xf32>,
    %105 = vector.extract_strided_slice %80 {offsets = [8, 0], sizes = [8, 8], strides = [1, 1]} : vector<16x8xbf16> to vector<8x8xbf16>
    %106 = vector.extract_strided_slice %81 {offsets = [8, 0], sizes = [8, 8], strides = [1, 1]} : vector<16x8xbf16> to vector<8x8xbf16>
    %107 = vector.extract_strided_slice %82 {offsets = [8, 0], sizes = [8, 8], strides = [1, 1]} : vector<16x8xbf16> to vector<8x8xbf16>
    %cst_39 = arith.constant dense<0.000000e+00> : vector<8x8xf32>
    %108 = tpu.matmul %105, %106, %cst_39 {dimension_numbers = #tpu.dot_dimension_numbers<[1], [1], [0], [0], [0, 0, 1, 0], [], []>} : vector<8x8xbf16>, vector<8x8xbf16>, vector<8x8xf32> -> vector<8x8xf32>
    %cst_40 = arith.constant 0.353553385 : f32
    %109 = vector.broadcast %cst_40 : f32 to vector<8x8xf32>
    %110 = arith.mulf %108, %109 : vector<8x8xf32>
    %c1_41 = arith.constant 1 : index
    %c0_42 = arith.constant 0 : index
    %111 = vector.load %arg1[%c1_41, %c0_42] : memref<2x8xf32, #tpu.memory_space<vmem>>, vector<1x8xf32>
    %112 = vector.broadcast %111 : vector<1x8xf32> to vector<8x8xf32>
    %113 = arith.addf %110, %112 : vector<8x8xf32>
    %cst_43 = arith.constant dense<0xFF800000> : vector<8xf32>
    %114 = vector.multi_reduction <maximumf>, %113, %cst_43 [1] : vector<8x8xf32> to vector<8xf32>
    %115 = vector.shape_cast %114 : vector<8xf32> to vector<8x1xf32>
    %116 = vector.broadcast %115 : vector<8x1xf32> to vector<8x8xf32>
    %117 = arith.subf %113, %116 : vector<8x8xf32>
    %118 = math.exp %117 : vector<8x8xf32>
    %cst_44 = arith.constant dense<0.000000e+00> : vector<8xf32>
    %119 = vector.multi_reduction <add>, %118, %cst_44 [1] : vector<8x8xf32> to vector<8xf32>
    %120 = vector.shape_cast %119 : vector<8xf32> to vector<8x1xf32>
    %121 = tpu.reciprocal %120 {approx = true} : vector<8x1xf32> -> vector<8x1xf32>
    %122 = vector.broadcast %121 : vector<8x1xf32> to vector<8x8xf32>
    %123 = arith.mulf %118, %122 : vector<8x8xf32>
    %124 = arith.truncf %123 : vector<8x8xf32> to vector<8x8xbf16>
    %cst_45 = arith.constant dense<0.000000e+00> : vector<8x8xf32>
    %125 = tpu.matmul %124, %107, %cst_45 {dimension_numbers = #tpu.dot_dimension_numbers<[1], [0], [0], [1], [0, 0, 1, 1], [], []>} : vector<8x8xbf16>, vector<8x8xbf16>, vector<8x8xf32> -> vector<8x8xf32>
    %c8_46 = arith.constant 8 : index
    %c8_47 = arith.constant 8 : index
    %126 = vector.load %arg10[%c8_46, %c8_47] : memref<16x32xf32, #tpu.memory_space<vmem>>, vector<8x8xf32>
    tpu.vector_store %arg10[%c8_46, %c8_47], %125 {strides = array<i32>} : memref<16x32xf32, #tpu.memory_space<vmem>>, vector<8x8xf32>,
    %127 = vector.extract_strided_slice %32 {offsets = [0, 16], sizes = [16, 8], strides = [1, 1]} : vector<16x96xbf16> to vector<16x8xbf16>
    %128 = vector.extract_strided_slice %32 {offsets = [0, 48], sizes = [16, 8], strides = [1, 1]} : vector<16x96xbf16> to vector<16x8xbf16>
    %129 = vector.extract_strided_slice %32 {offsets = [0, 80], sizes = [16, 8], strides = [1, 1]} : vector<16x96xbf16> to vector<16x8xbf16>
    %130 = vector.extract_strided_slice %127 {offsets = [0, 0], sizes = [8, 8], strides = [1, 1]} : vector<16x8xbf16> to vector<8x8xbf16>
    %131 = vector.extract_strided_slice %128 {offsets = [0, 0], sizes = [8, 8], strides = [1, 1]} : vector<16x8xbf16> to vector<8x8xbf16>
    %132 = vector.extract_strided_slice %129 {offsets = [0, 0], sizes = [8, 8], strides = [1, 1]} : vector<16x8xbf16> to vector<8x8xbf16>
    %cst_48 = arith.constant dense<0.000000e+00> : vector<8x8xf32>
    %133 = tpu.matmul %130, %131, %cst_48 {dimension_numbers = #tpu.dot_dimension_numbers<[1], [1], [0], [0], [0, 0, 1, 0], [], []>} : vector<8x8xbf16>, vector<8x8xbf16>, vector<8x8xf32> -> vector<8x8xf32>
    %cst_49 = arith.constant 0.353553385 : f32
    %134 = vector.broadcast %cst_49 : f32 to vector<8x8xf32>
    %135 = arith.mulf %133, %134 : vector<8x8xf32>
    %c0_50 = arith.constant 0 : index
    %c0_51 = arith.constant 0 : index
    %136 = vector.load %arg1[%c0_50, %c0_51] : memref<2x8xf32, #tpu.memory_space<vmem>>, vector<1x8xf32>
    %137 = vector.broadcast %136 : vector<1x8xf32> to vector<8x8xf32>
    %138 = arith.addf %135, %137 : vector<8x8xf32>
    %cst_52 = arith.constant dense<0xFF800000> : vector<8xf32>
    %139 = vector.multi_reduction <maximumf>, %138, %cst_52 [1] : vector<8x8xf32> to vector<8xf32>
    %140 = vector.shape_cast %139 : vector<8xf32> to vector<8x1xf32>
    %141 = vector.broadcast %140 : vector<8x1xf32> to vector<8x8xf32>
    %142 = arith.subf %138, %141 : vector<8x8xf32>
    %143 = math.exp %142 : vector<8x8xf32>
    %cst_53 = arith.constant dense<0.000000e+00> : vector<8xf32>
    %144 = vector.multi_reduction <add>, %143, %cst_53 [1] : vector<8x8xf32> to vector<8xf32>
    %145 = vector.shape_cast %144 : vector<8xf32> to vector<8x1xf32>
    %146 = tpu.reciprocal %145 {approx = true} : vector<8x1xf32> -> vector<8x1xf32>
    %147 = vector.broadcast %146 : vector<8x1xf32> to vector<8x8xf32>
    %148 = arith.mulf %143, %147 : vector<8x8xf32>
    %149 = arith.truncf %148 : vector<8x8xf32> to vector<8x8xbf16>
    %cst_54 = arith.constant dense<0.000000e+00> : vector<8x8xf32>
    %150 = tpu.matmul %149, %132, %cst_54 {dimension_numbers = #tpu.dot_dimension_numbers<[1], [0], [0], [1], [0, 0, 1, 1], [], []>} : vector<8x8xbf16>, vector<8x8xbf16>, vector<8x8xf32> -> vector<8x8xf32>
    %c0_55 = arith.constant 0 : index
    %c16 = arith.constant 16 : index
    %151 = vector.load %arg10[%c0_55, %c16] : memref<16x32xf32, #tpu.memory_space<vmem>>, vector<8x8xf32>
    tpu.vector_store %arg10[%c0_55, %c16], %150 {strides = array<i32>} : memref<16x32xf32, #tpu.memory_space<vmem>>, vector<8x8xf32>,
    %152 = vector.extract_strided_slice %127 {offsets = [8, 0], sizes = [8, 8], strides = [1, 1]} : vector<16x8xbf16> to vector<8x8xbf16>
    %153 = vector.extract_strided_slice %128 {offsets = [8, 0], sizes = [8, 8], strides = [1, 1]} : vector<16x8xbf16> to vector<8x8xbf16>
    %154 = vector.extract_strided_slice %129 {offsets = [8, 0], sizes = [8, 8], strides = [1, 1]} : vector<16x8xbf16> to vector<8x8xbf16>
    %cst_56 = arith.constant dense<0.000000e+00> : vector<8x8xf32>
    %155 = tpu.matmul %152, %153, %cst_56 {dimension_numbers = #tpu.dot_dimension_numbers<[1], [1], [0], [0], [0, 0, 1, 0], [], []>} : vector<8x8xbf16>, vector<8x8xbf16>, vector<8x8xf32> -> vector<8x8xf32>
    %cst_57 = arith.constant 0.353553385 : f32
    %156 = vector.broadcast %cst_57 : f32 to vector<8x8xf32>
    %157 = arith.mulf %155, %156 : vector<8x8xf32>
    %c1_58 = arith.constant 1 : index
    %c0_59 = arith.constant 0 : index
    %158 = vector.load %arg1[%c1_58, %c0_59] : memref<2x8xf32, #tpu.memory_space<vmem>>, vector<1x8xf32>
    %159 = vector.broadcast %158 : vector<1x8xf32> to vector<8x8xf32>
    %160 = arith.addf %157, %159 : vector<8x8xf32>
    %cst_60 = arith.constant dense<0xFF800000> : vector<8xf32>
    %161 = vector.multi_reduction <maximumf>, %160, %cst_60 [1] : vector<8x8xf32> to vector<8xf32>
    %162 = vector.shape_cast %161 : vector<8xf32> to vector<8x1xf32>
    %163 = vector.broadcast %162 : vector<8x1xf32> to vector<8x8xf32>
    %164 = arith.subf %160, %163 : vector<8x8xf32>
    %165 = math.exp %164 : vector<8x8xf32>
    %cst_61 = arith.constant dense<0.000000e+00> : vector<8xf32>
    %166 = vector.multi_reduction <add>, %165, %cst_61 [1] : vector<8x8xf32> to vector<8xf32>
    %167 = vector.shape_cast %166 : vector<8xf32> to vector<8x1xf32>
    %168 = tpu.reciprocal %167 {approx = true} : vector<8x1xf32> -> vector<8x1xf32>
    %169 = vector.broadcast %168 : vector<8x1xf32> to vector<8x8xf32>
    %170 = arith.mulf %165, %169 : vector<8x8xf32>
    %171 = arith.truncf %170 : vector<8x8xf32> to vector<8x8xbf16>
    %cst_62 = arith.constant dense<0.000000e+00> : vector<8x8xf32>
    %172 = tpu.matmul %171, %154, %cst_62 {dimension_numbers = #tpu.dot_dimension_numbers<[1], [0], [0], [1], [0, 0, 1, 1], [], []>} : vector<8x8xbf16>, vector<8x8xbf16>, vector<8x8xf32> -> vector<8x8xf32>
    %c8_63 = arith.constant 8 : index
    %c16_64 = arith.constant 16 : index
    %173 = vector.load %arg10[%c8_63, %c16_64] : memref<16x32xf32, #tpu.memory_space<vmem>>, vector<8x8xf32>
    tpu.vector_store %arg10[%c8_63, %c16_64], %172 {strides = array<i32>} : memref<16x32xf32, #tpu.memory_space<vmem>>, vector<8x8xf32>,
    %174 = vector.extract_strided_slice %32 {offsets = [0, 24], sizes = [16, 8], strides = [1, 1]} : vector<16x96xbf16> to vector<16x8xbf16>
    %175 = vector.extract_strided_slice %32 {offsets = [0, 56], sizes = [16, 8], strides = [1, 1]} : vector<16x96xbf16> to vector<16x8xbf16>
    %176 = vector.extract_strided_slice %32 {offsets = [0, 88], sizes = [16, 8], strides = [1, 1]} : vector<16x96xbf16> to vector<16x8xbf16>
    %177 = vector.extract_strided_slice %174 {offsets = [0, 0], sizes = [8, 8], strides = [1, 1]} : vector<16x8xbf16> to vector<8x8xbf16>
    %178 = vector.extract_strided_slice %175 {offsets = [0, 0], sizes = [8, 8], strides = [1, 1]} : vector<16x8xbf16> to vector<8x8xbf16>
    %179 = vector.extract_strided_slice %176 {offsets = [0, 0], sizes = [8, 8], strides = [1, 1]} : vector<16x8xbf16> to vector<8x8xbf16>
    %cst_65 = arith.constant dense<0.000000e+00> : vector<8x8xf32>
    %180 = tpu.matmul %177, %178, %cst_65 {dimension_numbers = #tpu.dot_dimension_numbers<[1], [1], [0], [0], [0, 0, 1, 0], [], []>} : vector<8x8xbf16>, vector<8x8xbf16>, vector<8x8xf32> -> vector<8x8xf32>
    %cst_66 = arith.constant 0.353553385 : f32
    %181 = vector.broadcast %cst_66 : f32 to vector<8x8xf32>
    %182 = arith.mulf %180, %181 : vector<8x8xf32>
    %c0_67 = arith.constant 0 : index
    %c0_68 = arith.constant 0 : index
    %183 = vector.load %arg1[%c0_67, %c0_68] : memref<2x8xf32, #tpu.memory_space<vmem>>, vector<1x8xf32>
    %184 = vector.broadcast %183 : vector<1x8xf32> to vector<8x8xf32>
    %185 = arith.addf %182, %184 : vector<8x8xf32>
    %cst_69 = arith.constant dense<0xFF800000> : vector<8xf32>
    %186 = vector.multi_reduction <maximumf>, %185, %cst_69 [1] : vector<8x8xf32> to vector<8xf32>
    %187 = vector.shape_cast %186 : vector<8xf32> to vector<8x1xf32>
    %188 = vector.broadcast %187 : vector<8x1xf32> to vector<8x8xf32>
    %189 = arith.subf %185, %188 : vector<8x8xf32>
    %190 = math.exp %189 : vector<8x8xf32>
    %cst_70 = arith.constant dense<0.000000e+00> : vector<8xf32>
    %191 = vector.multi_reduction <add>, %190, %cst_70 [1] : vector<8x8xf32> to vector<8xf32>
    %192 = vector.shape_cast %191 : vector<8xf32> to vector<8x1xf32>
    %193 = tpu.reciprocal %192 {approx = true} : vector<8x1xf32> -> vector<8x1xf32>
    %194 = vector.broadcast %193 : vector<8x1xf32> to vector<8x8xf32>
    %195 = arith.mulf %190, %194 : vector<8x8xf32>
    %196 = arith.truncf %195 : vector<8x8xf32> to vector<8x8xbf16>
    %cst_71 = arith.constant dense<0.000000e+00> : vector<8x8xf32>
    %197 = tpu.matmul %196, %179, %cst_71 {dimension_numbers = #tpu.dot_dimension_numbers<[1], [0], [0], [1], [0, 0, 1, 1], [], []>} : vector<8x8xbf16>, vector<8x8xbf16>, vector<8x8xf32> -> vector<8x8xf32>
    %c0_72 = arith.constant 0 : index
    %c24 = arith.constant 24 : index
    %198 = vector.load %arg10[%c0_72, %c24] : memref<16x32xf32, #tpu.memory_space<vmem>>, vector<8x8xf32>
    tpu.vector_store %arg10[%c0_72, %c24], %197 {strides = array<i32>} : memref<16x32xf32, #tpu.memory_space<vmem>>, vector<8x8xf32>,
    %199 = vector.extract_strided_slice %174 {offsets = [8, 0], sizes = [8, 8], strides = [1, 1]} : vector<16x8xbf16> to vector<8x8xbf16>
    %200 = vector.extract_strided_slice %175 {offsets = [8, 0], sizes = [8, 8], strides = [1, 1]} : vector<16x8xbf16> to vector<8x8xbf16>
    %201 = vector.extract_strided_slice %176 {offsets = [8, 0], sizes = [8, 8], strides = [1, 1]} : vector<16x8xbf16> to vector<8x8xbf16>
    %cst_73 = arith.constant dense<0.000000e+00> : vector<8x8xf32>
    %202 = tpu.matmul %199, %200, %cst_73 {dimension_numbers = #tpu.dot_dimension_numbers<[1], [1], [0], [0], [0, 0, 1, 0], [], []>} : vector<8x8xbf16>, vector<8x8xbf16>, vector<8x8xf32> -> vector<8x8xf32>
    %cst_74 = arith.constant 0.353553385 : f32
    %203 = vector.broadcast %cst_74 : f32 to vector<8x8xf32>
    %204 = arith.mulf %202, %203 : vector<8x8xf32>
    %c1_75 = arith.constant 1 : index
    %c0_76 = arith.constant 0 : index
    %205 = vector.load %arg1[%c1_75, %c0_76] : memref<2x8xf32, #tpu.memory_space<vmem>>, vector<1x8xf32>
    %206 = vector.broadcast %205 : vector<1x8xf32> to vector<8x8xf32>
    %207 = arith.addf %204, %206 : vector<8x8xf32>
    %cst_77 = arith.constant dense<0xFF800000> : vector<8xf32>
    %208 = vector.multi_reduction <maximumf>, %207, %cst_77 [1] : vector<8x8xf32> to vector<8xf32>
    %209 = vector.shape_cast %208 : vector<8xf32> to vector<8x1xf32>
    %210 = vector.broadcast %209 : vector<8x1xf32> to vector<8x8xf32>
    %211 = arith.subf %207, %210 : vector<8x8xf32>
    %212 = math.exp %211 : vector<8x8xf32>
    %cst_78 = arith.constant dense<0.000000e+00> : vector<8xf32>
    %213 = vector.multi_reduction <add>, %212, %cst_78 [1] : vector<8x8xf32> to vector<8xf32>
    %214 = vector.shape_cast %213 : vector<8xf32> to vector<8x1xf32>
    %215 = tpu.reciprocal %214 {approx = true} : vector<8x1xf32> -> vector<8x1xf32>
    %216 = vector.broadcast %215 : vector<8x1xf32> to vector<8x8xf32>
    %217 = arith.mulf %212, %216 : vector<8x8xf32>
    %218 = arith.truncf %217 : vector<8x8xf32> to vector<8x8xbf16>
    %cst_79 = arith.constant dense<0.000000e+00> : vector<8x8xf32>
    %219 = tpu.matmul %218, %201, %cst_79 {dimension_numbers = #tpu.dot_dimension_numbers<[1], [0], [0], [1], [0, 0, 1, 1], [], []>} : vector<8x8xbf16>, vector<8x8xbf16>, vector<8x8xf32> -> vector<8x8xf32>
    %c8_80 = arith.constant 8 : index
    %c24_81 = arith.constant 24 : index
    %220 = vector.load %arg10[%c8_80, %c24_81] : memref<16x32xf32, #tpu.memory_space<vmem>>, vector<8x8xf32>
    tpu.vector_store %arg10[%c8_80, %c24_81], %219 {strides = array<i32>} : memref<16x32xf32, #tpu.memory_space<vmem>>, vector<8x8xf32>,
    %c0_82 = arith.constant 0 : index
    %c0_83 = arith.constant 0 : index
    %221 = vector.load %arg10[%c0_82, %c0_83] : memref<16x32xf32, #tpu.memory_space<vmem>>, vector<16x32xf32>
    %222 = arith.truncf %221 : vector<16x32xf32> to vector<16x32xbf16>
    %c0_84 = arith.constant 0 : index
    %c0_85 = arith.constant 0 : index
    %c0_86 = arith.constant 0 : index
    %223 = vector.load %arg4[%c0_84, %c0_85, %c0_86] : memref<2x32x32xbf16, #tpu.memory_space<vmem>>, vector<1x32x32xbf16>
    %224 = vector.shape_cast %223 : vector<1x32x32xbf16> to vector<32x32xbf16>
    %cst_87 = arith.constant dense<0.000000e+00> : vector<16x32xf32>
    %225 = tpu.matmul %222, %224, %cst_87 {dimension_numbers = #tpu.dot_dimension_numbers<[1], [0], [0], [1], [0, 0, 1, 1], [], []>} : vector<16x32xbf16>, vector<32x32xbf16>, vector<16x32xf32> -> vector<16x32xf32>
    %c3 = arith.constant 3 : index
    %c0_88 = arith.constant 0 : index
    %226 = vector.load %arg2[%c3, %c0_88] : memref<20x128xf32, #tpu.memory_space<vmem>>, vector<1x32xf32>
    %227 = vector.broadcast %226 : vector<1x32xf32> to vector<16x32xf32>
    %228 = arith.addf %225, %227 : vector<16x32xf32>
    %229 = arith.addf %24, %228 : vector<16x32xf32>
    %c4 = arith.constant 4 : index
    %c0_89 = arith.constant 0 : index
    %230 = vector.load %arg2[%c4, %c0_89] : memref<20x128xf32, #tpu.memory_space<vmem>>, vector<1x32xf32>
    %c5 = arith.constant 5 : index
    %c0_90 = arith.constant 0 : index
    %231 = vector.load %arg2[%c5, %c0_90] : memref<20x128xf32, #tpu.memory_space<vmem>>, vector<1x32xf32>
    %cst_91 = arith.constant dense<0.000000e+00> : vector<16xf32>
    %232 = vector.multi_reduction <add>, %229, %cst_91 [1] : vector<16x32xf32> to vector<16xf32>
    %233 = vector.shape_cast %232 : vector<16xf32> to vector<16x1xf32>
    %cst_92 = arith.constant 3.200000e+01 : f32
    %234 = vector.broadcast %cst_92 : f32 to vector<16x1xf32>
    %235 = arith.divf %233, %234 : vector<16x1xf32>
    %236 = vector.broadcast %235 : vector<16x1xf32> to vector<16x32xf32>
    %237 = arith.subf %229, %236 : vector<16x32xf32>
    %238 = arith.mulf %237, %237 : vector<16x32xf32>
    %cst_93 = arith.constant dense<0.000000e+00> : vector<16xf32>
    %239 = vector.multi_reduction <add>, %238, %cst_93 [1] : vector<16x32xf32> to vector<16xf32>
    %240 = vector.shape_cast %239 : vector<16xf32> to vector<16x1xf32>
    %cst_94 = arith.constant 3.200000e+01 : f32
    %241 = vector.broadcast %cst_94 : f32 to vector<16x1xf32>
    %242 = arith.divf %240, %241 : vector<16x1xf32>
    %243 = vector.broadcast %235 : vector<16x1xf32> to vector<16x32xf32>
    %244 = arith.subf %229, %243 : vector<16x32xf32>
    %cst_95 = arith.constant 9.99999996E-13 : f32
    %245 = vector.broadcast %cst_95 : f32 to vector<16x1xf32>
    %246 = arith.addf %242, %245 : vector<16x1xf32>
    %247 = math.rsqrt %246 : vector<16x1xf32>
    %248 = vector.broadcast %247 : vector<16x1xf32> to vector<16x32xf32>
    %249 = arith.mulf %244, %248 : vector<16x32xf32>
    %250 = vector.broadcast %230 : vector<1x32xf32> to vector<16x32xf32>
    %251 = arith.mulf %249, %250 : vector<16x32xf32>
    %252 = vector.broadcast %231 : vector<1x32xf32> to vector<16x32xf32>
    %253 = arith.addf %251, %252 : vector<16x32xf32>
    %254 = arith.truncf %253 : vector<16x32xf32> to vector<16x32xbf16>
    %c0_96 = arith.constant 0 : index
    %c0_97 = arith.constant 0 : index
    %c0_98 = arith.constant 0 : index
    %255 = vector.load %arg5[%c0_96, %c0_97, %c0_98] : memref<2x32x64xbf16, #tpu.memory_space<vmem>>, vector<1x32x64xbf16>
    %256 = vector.shape_cast %255 : vector<1x32x64xbf16> to vector<32x64xbf16>
    %cst_99 = arith.constant dense<0.000000e+00> : vector<16x64xf32>
    %257 = tpu.matmul %254, %256, %cst_99 {dimension_numbers = #tpu.dot_dimension_numbers<[1], [0], [0], [1], [0, 0, 1, 1], [], []>} : vector<16x32xbf16>, vector<32x64xbf16>, vector<16x64xf32> -> vector<16x64xf32>
    %c6 = arith.constant 6 : index
    %c0_100 = arith.constant 0 : index
    %258 = vector.load %arg2[%c6, %c0_100] : memref<20x128xf32, #tpu.memory_space<vmem>>, vector<1x64xf32>
    %259 = vector.broadcast %258 : vector<1x64xf32> to vector<16x64xf32>
    %260 = arith.addf %257, %259 : vector<16x64xf32>
    %261 = arith.mulf %260, %260 : vector<16x64xf32>
    %262 = arith.mulf %260, %261 : vector<16x64xf32>
    %cst_101 = arith.constant 4.471500e-02 : f32
    %263 = vector.broadcast %cst_101 : f32 to vector<16x64xf32>
    %264 = arith.mulf %263, %262 : vector<16x64xf32>
    %265 = arith.addf %260, %264 : vector<16x64xf32>
    %cst_102 = arith.constant 0.797884583 : f32
    %266 = vector.broadcast %cst_102 : f32 to vector<16x64xf32>
    %267 = arith.mulf %266, %265 : vector<16x64xf32>
    %268 = math.tanh %267 : vector<16x64xf32>
    %cst_103 = arith.constant 1.000000e+00 : f32
    %269 = vector.broadcast %cst_103 : f32 to vector<16x64xf32>
    %270 = arith.addf %269, %268 : vector<16x64xf32>
    %cst_104 = arith.constant 5.000000e-01 : f32
    %271 = vector.broadcast %cst_104 : f32 to vector<16x64xf32>
    %272 = arith.mulf %271, %270 : vector<16x64xf32>
    %273 = arith.mulf %260, %272 : vector<16x64xf32>
    %274 = arith.truncf %273 : vector<16x64xf32> to vector<16x64xbf16>
    %c0_105 = arith.constant 0 : index
    %c0_106 = arith.constant 0 : index
    %c0_107 = arith.constant 0 : index
    %275 = vector.load %arg6[%c0_105, %c0_106, %c0_107] : memref<2x64x32xbf16, #tpu.memory_space<vmem>>, vector<1x64x32xbf16>
    %276 = vector.shape_cast %275 : vector<1x64x32xbf16> to vector<64x32xbf16>
    %cst_108 = arith.constant dense<0.000000e+00> : vector<16x32xf32>
    %277 = tpu.matmul %274, %276, %cst_108 {dimension_numbers = #tpu.dot_dimension_numbers<[1], [0], [0], [1], [0, 0, 1, 1], [], []>} : vector<16x64xbf16>, vector<64x32xbf16>, vector<16x32xf32> -> vector<16x32xf32>
    %c7 = arith.constant 7 : index
    %c0_109 = arith.constant 0 : index
    %278 = vector.load %arg2[%c7, %c0_109] : memref<20x128xf32, #tpu.memory_space<vmem>>, vector<1x32xf32>
    %279 = vector.broadcast %278 : vector<1x32xf32> to vector<16x32xf32>
    %280 = arith.addf %277, %279 : vector<16x32xf32>
    %281 = arith.addf %253, %280 : vector<16x32xf32>
    %c8_110 = arith.constant 8 : index
    %c0_111 = arith.constant 0 : index
    %282 = vector.load %arg2[%c8_110, %c0_111] : memref<20x128xf32, #tpu.memory_space<vmem>>, vector<1x32xf32>
    %c9 = arith.constant 9 : index
    %c0_112 = arith.constant 0 : index
    %283 = vector.load %arg2[%c9, %c0_112] : memref<20x128xf32, #tpu.memory_space<vmem>>, vector<1x32xf32>
    %cst_113 = arith.constant dense<0.000000e+00> : vector<16xf32>
    %284 = vector.multi_reduction <add>, %281, %cst_113 [1] : vector<16x32xf32> to vector<16xf32>
    %285 = vector.shape_cast %284 : vector<16xf32> to vector<16x1xf32>
    %cst_114 = arith.constant 3.200000e+01 : f32
    %286 = vector.broadcast %cst_114 : f32 to vector<16x1xf32>
    %287 = arith.divf %285, %286 : vector<16x1xf32>
    %288 = vector.broadcast %287 : vector<16x1xf32> to vector<16x32xf32>
    %289 = arith.subf %281, %288 : vector<16x32xf32>
    %290 = arith.mulf %289, %289 : vector<16x32xf32>
    %cst_115 = arith.constant dense<0.000000e+00> : vector<16xf32>
    %291 = vector.multi_reduction <add>, %290, %cst_115 [1] : vector<16x32xf32> to vector<16xf32>
    %292 = vector.shape_cast %291 : vector<16xf32> to vector<16x1xf32>
    %cst_116 = arith.constant 3.200000e+01 : f32
    %293 = vector.broadcast %cst_116 : f32 to vector<16x1xf32>
    %294 = arith.divf %292, %293 : vector<16x1xf32>
    %295 = vector.broadcast %287 : vector<16x1xf32> to vector<16x32xf32>
    %296 = arith.subf %281, %295 : vector<16x32xf32>
    %cst_117 = arith.constant 9.99999996E-13 : f32
    %297 = vector.broadcast %cst_117 : f32 to vector<16x1xf32>
    %298 = arith.addf %294, %297 : vector<16x1xf32>
    %299 = math.rsqrt %298 : vector<16x1xf32>
    %300 = vector.broadcast %299 : vector<16x1xf32> to vector<16x32xf32>
    %301 = arith.mulf %296, %300 : vector<16x32xf32>
    %302 = vector.broadcast %282 : vector<1x32xf32> to vector<16x32xf32>
    %303 = arith.mulf %301, %302 : vector<16x32xf32>
    %304 = vector.broadcast %283 : vector<1x32xf32> to vector<16x32xf32>
    %305 = arith.addf %303, %304 : vector<16x32xf32>
    %306 = arith.truncf %305 : vector<16x32xf32> to vector<16x32xbf16>
    %c1_118 = arith.constant 1 : index
    %c0_119 = arith.constant 0 : index
    %c0_120 = arith.constant 0 : index
    %307 = vector.load %arg3[%c1_118, %c0_119, %c0_120] : memref<2x32x96xbf16, #tpu.memory_space<vmem>>, vector<1x32x96xbf16>
    %308 = vector.shape_cast %307 : vector<1x32x96xbf16> to vector<32x96xbf16>
    %cst_121 = arith.constant dense<0.000000e+00> : vector<16x96xf32>
    %309 = tpu.matmul %306, %308, %cst_121 {dimension_numbers = #tpu.dot_dimension_numbers<[1], [0], [0], [1], [0, 0, 1, 1], [], []>} : vector<16x32xbf16>, vector<32x96xbf16>, vector<16x96xf32> -> vector<16x96xf32>
    %c10 = arith.constant 10 : index
    %c0_122 = arith.constant 0 : index
    %310 = vector.load %arg2[%c10, %c0_122] : memref<20x128xf32, #tpu.memory_space<vmem>>, vector<1x96xf32>
    %311 = vector.broadcast %310 : vector<1x96xf32> to vector<16x96xf32>
    %312 = arith.addf %309, %311 : vector<16x96xf32>
    %313 = arith.truncf %312 : vector<16x96xf32> to vector<16x96xbf16>
    %314 = vector.extract_strided_slice %313 {offsets = [0, 0], sizes = [16, 8], strides = [1, 1]} : vector<16x96xbf16> to vector<16x8xbf16>
    %315 = vector.extract_strided_slice %313 {offsets = [0, 32], sizes = [16, 8], strides = [1, 1]} : vector<16x96xbf16> to vector<16x8xbf16>
    %316 = vector.extract_strided_slice %313 {offsets = [0, 64], sizes = [16, 8], strides = [1, 1]} : vector<16x96xbf16> to vector<16x8xbf16>
    %317 = vector.extract_strided_slice %314 {offsets = [0, 0], sizes = [8, 8], strides = [1, 1]} : vector<16x8xbf16> to vector<8x8xbf16>
    %318 = vector.extract_strided_slice %315 {offsets = [0, 0], sizes = [8, 8], strides = [1, 1]} : vector<16x8xbf16> to vector<8x8xbf16>
    %319 = vector.extract_strided_slice %316 {offsets = [0, 0], sizes = [8, 8], strides = [1, 1]} : vector<16x8xbf16> to vector<8x8xbf16>
    %cst_123 = arith.constant dense<0.000000e+00> : vector<8x8xf32>
    %320 = tpu.matmul %317, %318, %cst_123 {dimension_numbers = #tpu.dot_dimension_numbers<[1], [1], [0], [0], [0, 0, 1, 0], [], []>} : vector<8x8xbf16>, vector<8x8xbf16>, vector<8x8xf32> -> vector<8x8xf32>
    %cst_124 = arith.constant 0.353553385 : f32
    %321 = vector.broadcast %cst_124 : f32 to vector<8x8xf32>
    %322 = arith.mulf %320, %321 : vector<8x8xf32>
    %c0_125 = arith.constant 0 : index
    %c0_126 = arith.constant 0 : index
    %323 = vector.load %arg1[%c0_125, %c0_126] : memref<2x8xf32, #tpu.memory_space<vmem>>, vector<1x8xf32>
    %324 = vector.broadcast %323 : vector<1x8xf32> to vector<8x8xf32>
    %325 = arith.addf %322, %324 : vector<8x8xf32>
    %cst_127 = arith.constant dense<0xFF800000> : vector<8xf32>
    %326 = vector.multi_reduction <maximumf>, %325, %cst_127 [1] : vector<8x8xf32> to vector<8xf32>
    %327 = vector.shape_cast %326 : vector<8xf32> to vector<8x1xf32>
    %328 = vector.broadcast %327 : vector<8x1xf32> to vector<8x8xf32>
    %329 = arith.subf %325, %328 : vector<8x8xf32>
    %330 = math.exp %329 : vector<8x8xf32>
    %cst_128 = arith.constant dense<0.000000e+00> : vector<8xf32>
    %331 = vector.multi_reduction <add>, %330, %cst_128 [1] : vector<8x8xf32> to vector<8xf32>
    %332 = vector.shape_cast %331 : vector<8xf32> to vector<8x1xf32>
    %333 = tpu.reciprocal %332 {approx = true} : vector<8x1xf32> -> vector<8x1xf32>
    %334 = vector.broadcast %333 : vector<8x1xf32> to vector<8x8xf32>
    %335 = arith.mulf %330, %334 : vector<8x8xf32>
    %336 = arith.truncf %335 : vector<8x8xf32> to vector<8x8xbf16>
    %cst_129 = arith.constant dense<0.000000e+00> : vector<8x8xf32>
    %337 = tpu.matmul %336, %319, %cst_129 {dimension_numbers = #tpu.dot_dimension_numbers<[1], [0], [0], [1], [0, 0, 1, 1], [], []>} : vector<8x8xbf16>, vector<8x8xbf16>, vector<8x8xf32> -> vector<8x8xf32>
    %c0_130 = arith.constant 0 : index
    %c0_131 = arith.constant 0 : index
    %338 = vector.load %arg10[%c0_130, %c0_131] : memref<16x32xf32, #tpu.memory_space<vmem>>, vector<8x8xf32>
    tpu.vector_store %arg10[%c0_130, %c0_131], %337 {strides = array<i32>} : memref<16x32xf32, #tpu.memory_space<vmem>>, vector<8x8xf32>,
    %339 = vector.extract_strided_slice %314 {offsets = [8, 0], sizes = [8, 8], strides = [1, 1]} : vector<16x8xbf16> to vector<8x8xbf16>
    %340 = vector.extract_strided_slice %315 {offsets = [8, 0], sizes = [8, 8], strides = [1, 1]} : vector<16x8xbf16> to vector<8x8xbf16>
    %341 = vector.extract_strided_slice %316 {offsets = [8, 0], sizes = [8, 8], strides = [1, 1]} : vector<16x8xbf16> to vector<8x8xbf16>
    %cst_132 = arith.constant dense<0.000000e+00> : vector<8x8xf32>
    %342 = tpu.matmul %339, %340, %cst_132 {dimension_numbers = #tpu.dot_dimension_numbers<[1], [1], [0], [0], [0, 0, 1, 0], [], []>} : vector<8x8xbf16>, vector<8x8xbf16>, vector<8x8xf32> -> vector<8x8xf32>
    %cst_133 = arith.constant 0.353553385 : f32
    %343 = vector.broadcast %cst_133 : f32 to vector<8x8xf32>
    %344 = arith.mulf %342, %343 : vector<8x8xf32>
    %c1_134 = arith.constant 1 : index
    %c0_135 = arith.constant 0 : index
    %345 = vector.load %arg1[%c1_134, %c0_135] : memref<2x8xf32, #tpu.memory_space<vmem>>, vector<1x8xf32>
    %346 = vector.broadcast %345 : vector<1x8xf32> to vector<8x8xf32>
    %347 = arith.addf %344, %346 : vector<8x8xf32>
    %cst_136 = arith.constant dense<0xFF800000> : vector<8xf32>
    %348 = vector.multi_reduction <maximumf>, %347, %cst_136 [1] : vector<8x8xf32> to vector<8xf32>
    %349 = vector.shape_cast %348 : vector<8xf32> to vector<8x1xf32>
    %350 = vector.broadcast %349 : vector<8x1xf32> to vector<8x8xf32>
    %351 = arith.subf %347, %350 : vector<8x8xf32>
    %352 = math.exp %351 : vector<8x8xf32>
    %cst_137 = arith.constant dense<0.000000e+00> : vector<8xf32>
    %353 = vector.multi_reduction <add>, %352, %cst_137 [1] : vector<8x8xf32> to vector<8xf32>
    %354 = vector.shape_cast %353 : vector<8xf32> to vector<8x1xf32>
    %355 = tpu.reciprocal %354 {approx = true} : vector<8x1xf32> -> vector<8x1xf32>
    %356 = vector.broadcast %355 : vector<8x1xf32> to vector<8x8xf32>
    %357 = arith.mulf %352, %356 : vector<8x8xf32>
    %358 = arith.truncf %357 : vector<8x8xf32> to vector<8x8xbf16>
    %cst_138 = arith.constant dense<0.000000e+00> : vector<8x8xf32>
    %359 = tpu.matmul %358, %341, %cst_138 {dimension_numbers = #tpu.dot_dimension_numbers<[1], [0], [0], [1], [0, 0, 1, 1], [], []>} : vector<8x8xbf16>, vector<8x8xbf16>, vector<8x8xf32> -> vector<8x8xf32>
    %c8_139 = arith.constant 8 : index
    %c0_140 = arith.constant 0 : index
    %360 = vector.load %arg10[%c8_139, %c0_140] : memref<16x32xf32, #tpu.memory_space<vmem>>, vector<8x8xf32>
    tpu.vector_store %arg10[%c8_139, %c0_140], %359 {strides = array<i32>} : memref<16x32xf32, #tpu.memory_space<vmem>>, vector<8x8xf32>,
    %361 = vector.extract_strided_slice %313 {offsets = [0, 8], sizes = [16, 8], strides = [1, 1]} : vector<16x96xbf16> to vector<16x8xbf16>
    %362 = vector.extract_strided_slice %313 {offsets = [0, 40], sizes = [16, 8], strides = [1, 1]} : vector<16x96xbf16> to vector<16x8xbf16>
    %363 = vector.extract_strided_slice %313 {offsets = [0, 72], sizes = [16, 8], strides = [1, 1]} : vector<16x96xbf16> to vector<16x8xbf16>
    %364 = vector.extract_strided_slice %361 {offsets = [0, 0], sizes = [8, 8], strides = [1, 1]} : vector<16x8xbf16> to vector<8x8xbf16>
    %365 = vector.extract_strided_slice %362 {offsets = [0, 0], sizes = [8, 8], strides = [1, 1]} : vector<16x8xbf16> to vector<8x8xbf16>
    %366 = vector.extract_strided_slice %363 {offsets = [0, 0], sizes = [8, 8], strides = [1, 1]} : vector<16x8xbf16> to vector<8x8xbf16>
    %cst_141 = arith.constant dense<0.000000e+00> : vector<8x8xf32>
    %367 = tpu.matmul %364, %365, %cst_141 {dimension_numbers = #tpu.dot_dimension_numbers<[1], [1], [0], [0], [0, 0, 1, 0], [], []>} : vector<8x8xbf16>, vector<8x8xbf16>, vector<8x8xf32> -> vector<8x8xf32>
    %cst_142 = arith.constant 0.353553385 : f32
    %368 = vector.broadcast %cst_142 : f32 to vector<8x8xf32>
    %369 = arith.mulf %367, %368 : vector<8x8xf32>
    %c0_143 = arith.constant 0 : index
    %c0_144 = arith.constant 0 : index
    %370 = vector.load %arg1[%c0_143, %c0_144] : memref<2x8xf32, #tpu.memory_space<vmem>>, vector<1x8xf32>
    %371 = vector.broadcast %370 : vector<1x8xf32> to vector<8x8xf32>
    %372 = arith.addf %369, %371 : vector<8x8xf32>
    %cst_145 = arith.constant dense<0xFF800000> : vector<8xf32>
    %373 = vector.multi_reduction <maximumf>, %372, %cst_145 [1] : vector<8x8xf32> to vector<8xf32>
    %374 = vector.shape_cast %373 : vector<8xf32> to vector<8x1xf32>
    %375 = vector.broadcast %374 : vector<8x1xf32> to vector<8x8xf32>
    %376 = arith.subf %372, %375 : vector<8x8xf32>
    %377 = math.exp %376 : vector<8x8xf32>
    %cst_146 = arith.constant dense<0.000000e+00> : vector<8xf32>
    %378 = vector.multi_reduction <add>, %377, %cst_146 [1] : vector<8x8xf32> to vector<8xf32>
    %379 = vector.shape_cast %378 : vector<8xf32> to vector<8x1xf32>
    %380 = tpu.reciprocal %379 {approx = true} : vector<8x1xf32> -> vector<8x1xf32>
    %381 = vector.broadcast %380 : vector<8x1xf32> to vector<8x8xf32>
    %382 = arith.mulf %377, %381 : vector<8x8xf32>
    %383 = arith.truncf %382 : vector<8x8xf32> to vector<8x8xbf16>
    %cst_147 = arith.constant dense<0.000000e+00> : vector<8x8xf32>
    %384 = tpu.matmul %383, %366, %cst_147 {dimension_numbers = #tpu.dot_dimension_numbers<[1], [0], [0], [1], [0, 0, 1, 1], [], []>} : vector<8x8xbf16>, vector<8x8xbf16>, vector<8x8xf32> -> vector<8x8xf32>
    %c0_148 = arith.constant 0 : index
    %c8_149 = arith.constant 8 : index
    %385 = vector.load %arg10[%c0_148, %c8_149] : memref<16x32xf32, #tpu.memory_space<vmem>>, vector<8x8xf32>
    tpu.vector_store %arg10[%c0_148, %c8_149], %384 {strides = array<i32>} : memref<16x32xf32, #tpu.memory_space<vmem>>, vector<8x8xf32>,
    %386 = vector.extract_strided_slice %361 {offsets = [8, 0], sizes = [8, 8], strides = [1, 1]} : vector<16x8xbf16> to vector<8x8xbf16>
    %387 = vector.extract_strided_slice %362 {offsets = [8, 0], sizes = [8, 8], strides = [1, 1]} : vector<16x8xbf16> to vector<8x8xbf16>
    %388 = vector.extract_strided_slice %363 {offsets = [8, 0], sizes = [8, 8], strides = [1, 1]} : vector<16x8xbf16> to vector<8x8xbf16>
    %cst_150 = arith.constant dense<0.000000e+00> : vector<8x8xf32>
    %389 = tpu.matmul %386, %387, %cst_150 {dimension_numbers = #tpu.dot_dimension_numbers<[1], [1], [0], [0], [0, 0, 1, 0], [], []>} : vector<8x8xbf16>, vector<8x8xbf16>, vector<8x8xf32> -> vector<8x8xf32>
    %cst_151 = arith.constant 0.353553385 : f32
    %390 = vector.broadcast %cst_151 : f32 to vector<8x8xf32>
    %391 = arith.mulf %389, %390 : vector<8x8xf32>
    %c1_152 = arith.constant 1 : index
    %c0_153 = arith.constant 0 : index
    %392 = vector.load %arg1[%c1_152, %c0_153] : memref<2x8xf32, #tpu.memory_space<vmem>>, vector<1x8xf32>
    %393 = vector.broadcast %392 : vector<1x8xf32> to vector<8x8xf32>
    %394 = arith.addf %391, %393 : vector<8x8xf32>
    %cst_154 = arith.constant dense<0xFF800000> : vector<8xf32>
    %395 = vector.multi_reduction <maximumf>, %394, %cst_154 [1] : vector<8x8xf32> to vector<8xf32>
    %396 = vector.shape_cast %395 : vector<8xf32> to vector<8x1xf32>
    %397 = vector.broadcast %396 : vector<8x1xf32> to vector<8x8xf32>
    %398 = arith.subf %394, %397 : vector<8x8xf32>
    %399 = math.exp %398 : vector<8x8xf32>
    %cst_155 = arith.constant dense<0.000000e+00> : vector<8xf32>
    %400 = vector.multi_reduction <add>, %399, %cst_155 [1] : vector<8x8xf32> to vector<8xf32>
    %401 = vector.shape_cast %400 : vector<8xf32> to vector<8x1xf32>
    %402 = tpu.reciprocal %401 {approx = true} : vector<8x1xf32> -> vector<8x1xf32>
    %403 = vector.broadcast %402 : vector<8x1xf32> to vector<8x8xf32>
    %404 = arith.mulf %399, %403 : vector<8x8xf32>
    %405 = arith.truncf %404 : vector<8x8xf32> to vector<8x8xbf16>
    %cst_156 = arith.constant dense<0.000000e+00> : vector<8x8xf32>
    %406 = tpu.matmul %405, %388, %cst_156 {dimension_numbers = #tpu.dot_dimension_numbers<[1], [0], [0], [1], [0, 0, 1, 1], [], []>} : vector<8x8xbf16>, vector<8x8xbf16>, vector<8x8xf32> -> vector<8x8xf32>
    %c8_157 = arith.constant 8 : index
    %c8_158 = arith.constant 8 : index
    %407 = vector.load %arg10[%c8_157, %c8_158] : memref<16x32xf32, #tpu.memory_space<vmem>>, vector<8x8xf32>
    tpu.vector_store %arg10[%c8_157, %c8_158], %406 {strides = array<i32>} : memref<16x32xf32, #tpu.memory_space<vmem>>, vector<8x8xf32>,
    %408 = vector.extract_strided_slice %313 {offsets = [0, 16], sizes = [16, 8], strides = [1, 1]} : vector<16x96xbf16> to vector<16x8xbf16>
    %409 = vector.extract_strided_slice %313 {offsets = [0, 48], sizes = [16, 8], strides = [1, 1]} : vector<16x96xbf16> to vector<16x8xbf16>
    %410 = vector.extract_strided_slice %313 {offsets = [0, 80], sizes = [16, 8], strides = [1, 1]} : vector<16x96xbf16> to vector<16x8xbf16>
    %411 = vector.extract_strided_slice %408 {offsets = [0, 0], sizes = [8, 8], strides = [1, 1]} : vector<16x8xbf16> to vector<8x8xbf16>
    %412 = vector.extract_strided_slice %409 {offsets = [0, 0], sizes = [8, 8], strides = [1, 1]} : vector<16x8xbf16> to vector<8x8xbf16>
    %413 = vector.extract_strided_slice %410 {offsets = [0, 0], sizes = [8, 8], strides = [1, 1]} : vector<16x8xbf16> to vector<8x8xbf16>
    %cst_159 = arith.constant dense<0.000000e+00> : vector<8x8xf32>
    %414 = tpu.matmul %411, %412, %cst_159 {dimension_numbers = #tpu.dot_dimension_numbers<[1], [1], [0], [0], [0, 0, 1, 0], [], []>} : vector<8x8xbf16>, vector<8x8xbf16>, vector<8x8xf32> -> vector<8x8xf32>
    %cst_160 = arith.constant 0.353553385 : f32
    %415 = vector.broadcast %cst_160 : f32 to vector<8x8xf32>
    %416 = arith.mulf %414, %415 : vector<8x8xf32>
    %c0_161 = arith.constant 0 : index
    %c0_162 = arith.constant 0 : index
    %417 = vector.load %arg1[%c0_161, %c0_162] : memref<2x8xf32, #tpu.memory_space<vmem>>, vector<1x8xf32>
    %418 = vector.broadcast %417 : vector<1x8xf32> to vector<8x8xf32>
    %419 = arith.addf %416, %418 : vector<8x8xf32>
    %cst_163 = arith.constant dense<0xFF800000> : vector<8xf32>
    %420 = vector.multi_reduction <maximumf>, %419, %cst_163 [1] : vector<8x8xf32> to vector<8xf32>
    %421 = vector.shape_cast %420 : vector<8xf32> to vector<8x1xf32>
    %422 = vector.broadcast %421 : vector<8x1xf32> to vector<8x8xf32>
    %423 = arith.subf %419, %422 : vector<8x8xf32>
    %424 = math.exp %423 : vector<8x8xf32>
    %cst_164 = arith.constant dense<0.000000e+00> : vector<8xf32>
    %425 = vector.multi_reduction <add>, %424, %cst_164 [1] : vector<8x8xf32> to vector<8xf32>
    %426 = vector.shape_cast %425 : vector<8xf32> to vector<8x1xf32>
    %427 = tpu.reciprocal %426 {approx = true} : vector<8x1xf32> -> vector<8x1xf32>
    %428 = vector.broadcast %427 : vector<8x1xf32> to vector<8x8xf32>
    %429 = arith.mulf %424, %428 : vector<8x8xf32>
    %430 = arith.truncf %429 : vector<8x8xf32> to vector<8x8xbf16>
    %cst_165 = arith.constant dense<0.000000e+00> : vector<8x8xf32>
    %431 = tpu.matmul %430, %413, %cst_165 {dimension_numbers = #tpu.dot_dimension_numbers<[1], [0], [0], [1], [0, 0, 1, 1], [], []>} : vector<8x8xbf16>, vector<8x8xbf16>, vector<8x8xf32> -> vector<8x8xf32>
    %c0_166 = arith.constant 0 : index
    %c16_167 = arith.constant 16 : index
    %432 = vector.load %arg10[%c0_166, %c16_167] : memref<16x32xf32, #tpu.memory_space<vmem>>, vector<8x8xf32>
    tpu.vector_store %arg10[%c0_166, %c16_167], %431 {strides = array<i32>} : memref<16x32xf32, #tpu.memory_space<vmem>>, vector<8x8xf32>,
    %433 = vector.extract_strided_slice %408 {offsets = [8, 0], sizes = [8, 8], strides = [1, 1]} : vector<16x8xbf16> to vector<8x8xbf16>
    %434 = vector.extract_strided_slice %409 {offsets = [8, 0], sizes = [8, 8], strides = [1, 1]} : vector<16x8xbf16> to vector<8x8xbf16>
    %435 = vector.extract_strided_slice %410 {offsets = [8, 0], sizes = [8, 8], strides = [1, 1]} : vector<16x8xbf16> to vector<8x8xbf16>
    %cst_168 = arith.constant dense<0.000000e+00> : vector<8x8xf32>
    %436 = tpu.matmul %433, %434, %cst_168 {dimension_numbers = #tpu.dot_dimension_numbers<[1], [1], [0], [0], [0, 0, 1, 0], [], []>} : vector<8x8xbf16>, vector<8x8xbf16>, vector<8x8xf32> -> vector<8x8xf32>
    %cst_169 = arith.constant 0.353553385 : f32
    %437 = vector.broadcast %cst_169 : f32 to vector<8x8xf32>
    %438 = arith.mulf %436, %437 : vector<8x8xf32>
    %c1_170 = arith.constant 1 : index
    %c0_171 = arith.constant 0 : index
    %439 = vector.load %arg1[%c1_170, %c0_171] : memref<2x8xf32, #tpu.memory_space<vmem>>, vector<1x8xf32>
    %440 = vector.broadcast %439 : vector<1x8xf32> to vector<8x8xf32>
    %441 = arith.addf %438, %440 : vector<8x8xf32>
    %cst_172 = arith.constant dense<0xFF800000> : vector<8xf32>
    %442 = vector.multi_reduction <maximumf>, %441, %cst_172 [1] : vector<8x8xf32> to vector<8xf32>
    %443 = vector.shape_cast %442 : vector<8xf32> to vector<8x1xf32>
    %444 = vector.broadcast %443 : vector<8x1xf32> to vector<8x8xf32>
    %445 = arith.subf %441, %444 : vector<8x8xf32>
    %446 = math.exp %445 : vector<8x8xf32>
    %cst_173 = arith.constant dense<0.000000e+00> : vector<8xf32>
    %447 = vector.multi_reduction <add>, %446, %cst_173 [1] : vector<8x8xf32> to vector<8xf32>
    %448 = vector.shape_cast %447 : vector<8xf32> to vector<8x1xf32>
    %449 = tpu.reciprocal %448 {approx = true} : vector<8x1xf32> -> vector<8x1xf32>
    %450 = vector.broadcast %449 : vector<8x1xf32> to vector<8x8xf32>
    %451 = arith.mulf %446, %450 : vector<8x8xf32>
    %452 = arith.truncf %451 : vector<8x8xf32> to vector<8x8xbf16>
    %cst_174 = arith.constant dense<0.000000e+00> : vector<8x8xf32>
    %453 = tpu.matmul %452, %435, %cst_174 {dimension_numbers = #tpu.dot_dimension_numbers<[1], [0], [0], [1], [0, 0, 1, 1], [], []>} : vector<8x8xbf16>, vector<8x8xbf16>, vector<8x8xf32> -> vector<8x8xf32>
    %c8_175 = arith.constant 8 : index
    %c16_176 = arith.constant 16 : index
    %454 = vector.load %arg10[%c8_175, %c16_176] : memref<16x32xf32, #tpu.memory_space<vmem>>, vector<8x8xf32>
    tpu.vector_store %arg10[%c8_175, %c16_176], %453 {strides = array<i32>} : memref<16x32xf32, #tpu.memory_space<vmem>>, vector<8x8xf32>,
    %455 = vector.extract_strided_slice %313 {offsets = [0, 24], sizes = [16, 8], strides = [1, 1]} : vector<16x96xbf16> to vector<16x8xbf16>
    %456 = vector.extract_strided_slice %313 {offsets = [0, 56], sizes = [16, 8], strides = [1, 1]} : vector<16x96xbf16> to vector<16x8xbf16>
    %457 = vector.extract_strided_slice %313 {offsets = [0, 88], sizes = [16, 8], strides = [1, 1]} : vector<16x96xbf16> to vector<16x8xbf16>
    %458 = vector.extract_strided_slice %455 {offsets = [0, 0], sizes = [8, 8], strides = [1, 1]} : vector<16x8xbf16> to vector<8x8xbf16>
    %459 = vector.extract_strided_slice %456 {offsets = [0, 0], sizes = [8, 8], strides = [1, 1]} : vector<16x8xbf16> to vector<8x8xbf16>
    %460 = vector.extract_strided_slice %457 {offsets = [0, 0], sizes = [8, 8], strides = [1, 1]} : vector<16x8xbf16> to vector<8x8xbf16>
    %cst_177 = arith.constant dense<0.000000e+00> : vector<8x8xf32>
    %461 = tpu.matmul %458, %459, %cst_177 {dimension_numbers = #tpu.dot_dimension_numbers<[1], [1], [0], [0], [0, 0, 1, 0], [], []>} : vector<8x8xbf16>, vector<8x8xbf16>, vector<8x8xf32> -> vector<8x8xf32>
    %cst_178 = arith.constant 0.353553385 : f32
    %462 = vector.broadcast %cst_178 : f32 to vector<8x8xf32>
    %463 = arith.mulf %461, %462 : vector<8x8xf32>
    %c0_179 = arith.constant 0 : index
    %c0_180 = arith.constant 0 : index
    %464 = vector.load %arg1[%c0_179, %c0_180] : memref<2x8xf32, #tpu.memory_space<vmem>>, vector<1x8xf32>
    %465 = vector.broadcast %464 : vector<1x8xf32> to vector<8x8xf32>
    %466 = arith.addf %463, %465 : vector<8x8xf32>
    %cst_181 = arith.constant dense<0xFF800000> : vector<8xf32>
    %467 = vector.multi_reduction <maximumf>, %466, %cst_181 [1] : vector<8x8xf32> to vector<8xf32>
    %468 = vector.shape_cast %467 : vector<8xf32> to vector<8x1xf32>
    %469 = vector.broadcast %468 : vector<8x1xf32> to vector<8x8xf32>
    %470 = arith.subf %466, %469 : vector<8x8xf32>
    %471 = math.exp %470 : vector<8x8xf32>
    %cst_182 = arith.constant dense<0.000000e+00> : vector<8xf32>
    %472 = vector.multi_reduction <add>, %471, %cst_182 [1] : vector<8x8xf32> to vector<8xf32>
    %473 = vector.shape_cast %472 : vector<8xf32> to vector<8x1xf32>
    %474 = tpu.reciprocal %473 {approx = true} : vector<8x1xf32> -> vector<8x1xf32>
    %475 = vector.broadcast %474 : vector<8x1xf32> to vector<8x8xf32>
    %476 = arith.mulf %471, %475 : vector<8x8xf32>
    %477 = arith.truncf %476 : vector<8x8xf32> to vector<8x8xbf16>
    %cst_183 = arith.constant dense<0.000000e+00> : vector<8x8xf32>
    %478 = tpu.matmul %477, %460, %cst_183 {dimension_numbers = #tpu.dot_dimension_numbers<[1], [0], [0], [1], [0, 0, 1, 1], [], []>} : vector<8x8xbf16>, vector<8x8xbf16>, vector<8x8xf32> -> vector<8x8xf32>
    %c0_184 = arith.constant 0 : index
    %c24_185 = arith.constant 24 : index
    %479 = vector.load %arg10[%c0_184, %c24_185] : memref<16x32xf32, #tpu.memory_space<vmem>>, vector<8x8xf32>
    tpu.vector_store %arg10[%c0_184, %c24_185], %478 {strides = array<i32>} : memref<16x32xf32, #tpu.memory_space<vmem>>, vector<8x8xf32>,
    %480 = vector.extract_strided_slice %455 {offsets = [8, 0], sizes = [8, 8], strides = [1, 1]} : vector<16x8xbf16> to vector<8x8xbf16>
    %481 = vector.extract_strided_slice %456 {offsets = [8, 0], sizes = [8, 8], strides = [1, 1]} : vector<16x8xbf16> to vector<8x8xbf16>
    %482 = vector.extract_strided_slice %457 {offsets = [8, 0], sizes = [8, 8], strides = [1, 1]} : vector<16x8xbf16> to vector<8x8xbf16>
    %cst_186 = arith.constant dense<0.000000e+00> : vector<8x8xf32>
    %483 = tpu.matmul %480, %481, %cst_186 {dimension_numbers = #tpu.dot_dimension_numbers<[1], [1], [0], [0], [0, 0, 1, 0], [], []>} : vector<8x8xbf16>, vector<8x8xbf16>, vector<8x8xf32> -> vector<8x8xf32>
    %cst_187 = arith.constant 0.353553385 : f32
    %484 = vector.broadcast %cst_187 : f32 to vector<8x8xf32>
    %485 = arith.mulf %483, %484 : vector<8x8xf32>
    %c1_188 = arith.constant 1 : index
    %c0_189 = arith.constant 0 : index
    %486 = vector.load %arg1[%c1_188, %c0_189] : memref<2x8xf32, #tpu.memory_space<vmem>>, vector<1x8xf32>
    %487 = vector.broadcast %486 : vector<1x8xf32> to vector<8x8xf32>
    %488 = arith.addf %485, %487 : vector<8x8xf32>
    %cst_190 = arith.constant dense<0xFF800000> : vector<8xf32>
    %489 = vector.multi_reduction <maximumf>, %488, %cst_190 [1] : vector<8x8xf32> to vector<8xf32>
    %490 = vector.shape_cast %489 : vector<8xf32> to vector<8x1xf32>
    %491 = vector.broadcast %490 : vector<8x1xf32> to vector<8x8xf32>
    %492 = arith.subf %488, %491 : vector<8x8xf32>
    %493 = math.exp %492 : vector<8x8xf32>
    %cst_191 = arith.constant dense<0.000000e+00> : vector<8xf32>
    %494 = vector.multi_reduction <add>, %493, %cst_191 [1] : vector<8x8xf32> to vector<8xf32>
    %495 = vector.shape_cast %494 : vector<8xf32> to vector<8x1xf32>
    %496 = tpu.reciprocal %495 {approx = true} : vector<8x1xf32> -> vector<8x1xf32>
    %497 = vector.broadcast %496 : vector<8x1xf32> to vector<8x8xf32>
    %498 = arith.mulf %493, %497 : vector<8x8xf32>
    %499 = arith.truncf %498 : vector<8x8xf32> to vector<8x8xbf16>
    %cst_192 = arith.constant dense<0.000000e+00> : vector<8x8xf32>
    %500 = tpu.matmul %499, %482, %cst_192 {dimension_numbers = #tpu.dot_dimension_numbers<[1], [0], [0], [1], [0, 0, 1, 1], [], []>} : vector<8x8xbf16>, vector<8x8xbf16>, vector<8x8xf32> -> vector<8x8xf32>
    %c8_193 = arith.constant 8 : index
    %c24_194 = arith.constant 24 : index
    %501 = vector.load %arg10[%c8_193, %c24_194] : memref<16x32xf32, #tpu.memory_space<vmem>>, vector<8x8xf32>
    tpu.vector_store %arg10[%c8_193, %c24_194], %500 {strides = array<i32>} : memref<16x32xf32, #tpu.memory_space<vmem>>, vector<8x8xf32>,
    %c0_195 = arith.constant 0 : index
    %c0_196 = arith.constant 0 : index
    %502 = vector.load %arg10[%c0_195, %c0_196] : memref<16x32xf32, #tpu.memory_space<vmem>>, vector<16x32xf32>
    %503 = arith.truncf %502 : vector<16x32xf32> to vector<16x32xbf16>
    %c1_197 = arith.constant 1 : index
    %c0_198 = arith.constant 0 : index
    %c0_199 = arith.constant 0 : index
    %504 = vector.load %arg4[%c1_197, %c0_198, %c0_199] : memref<2x32x32xbf16, #tpu.memory_space<vmem>>, vector<1x32x32xbf16>
    %505 = vector.shape_cast %504 : vector<1x32x32xbf16> to vector<32x32xbf16>
    %cst_200 = arith.constant dense<0.000000e+00> : vector<16x32xf32>
    %506 = tpu.matmul %503, %505, %cst_200 {dimension_numbers = #tpu.dot_dimension_numbers<[1], [0], [0], [1], [0, 0, 1, 1], [], []>} : vector<16x32xbf16>, vector<32x32xbf16>, vector<16x32xf32> -> vector<16x32xf32>
    %c11 = arith.constant 11 : index
    %c0_201 = arith.constant 0 : index
    %507 = vector.load %arg2[%c11, %c0_201] : memref<20x128xf32, #tpu.memory_space<vmem>>, vector<1x32xf32>
    %508 = vector.broadcast %507 : vector<1x32xf32> to vector<16x32xf32>
    %509 = arith.addf %506, %508 : vector<16x32xf32>
    %510 = arith.addf %305, %509 : vector<16x32xf32>
    %c12 = arith.constant 12 : index
    %c0_202 = arith.constant 0 : index
    %511 = vector.load %arg2[%c12, %c0_202] : memref<20x128xf32, #tpu.memory_space<vmem>>, vector<1x32xf32>
    %c13 = arith.constant 13 : index
    %c0_203 = arith.constant 0 : index
    %512 = vector.load %arg2[%c13, %c0_203] : memref<20x128xf32, #tpu.memory_space<vmem>>, vector<1x32xf32>
    %cst_204 = arith.constant dense<0.000000e+00> : vector<16xf32>
    %513 = vector.multi_reduction <add>, %510, %cst_204 [1] : vector<16x32xf32> to vector<16xf32>
    %514 = vector.shape_cast %513 : vector<16xf32> to vector<16x1xf32>
    %cst_205 = arith.constant 3.200000e+01 : f32
    %515 = vector.broadcast %cst_205 : f32 to vector<16x1xf32>
    %516 = arith.divf %514, %515 : vector<16x1xf32>
    %517 = vector.broadcast %516 : vector<16x1xf32> to vector<16x32xf32>
    %518 = arith.subf %510, %517 : vector<16x32xf32>
    %519 = arith.mulf %518, %518 : vector<16x32xf32>
    %cst_206 = arith.constant dense<0.000000e+00> : vector<16xf32>
    %520 = vector.multi_reduction <add>, %519, %cst_206 [1] : vector<16x32xf32> to vector<16xf32>
    %521 = vector.shape_cast %520 : vector<16xf32> to vector<16x1xf32>
    %cst_207 = arith.constant 3.200000e+01 : f32
    %522 = vector.broadcast %cst_207 : f32 to vector<16x1xf32>
    %523 = arith.divf %521, %522 : vector<16x1xf32>
    %524 = vector.broadcast %516 : vector<16x1xf32> to vector<16x32xf32>
    %525 = arith.subf %510, %524 : vector<16x32xf32>
    %cst_208 = arith.constant 9.99999996E-13 : f32
    %526 = vector.broadcast %cst_208 : f32 to vector<16x1xf32>
    %527 = arith.addf %523, %526 : vector<16x1xf32>
    %528 = math.rsqrt %527 : vector<16x1xf32>
    %529 = vector.broadcast %528 : vector<16x1xf32> to vector<16x32xf32>
    %530 = arith.mulf %525, %529 : vector<16x32xf32>
    %531 = vector.broadcast %511 : vector<1x32xf32> to vector<16x32xf32>
    %532 = arith.mulf %530, %531 : vector<16x32xf32>
    %533 = vector.broadcast %512 : vector<1x32xf32> to vector<16x32xf32>
    %534 = arith.addf %532, %533 : vector<16x32xf32>
    %535 = arith.truncf %534 : vector<16x32xf32> to vector<16x32xbf16>
    %c1_209 = arith.constant 1 : index
    %c0_210 = arith.constant 0 : index
    %c0_211 = arith.constant 0 : index
    %536 = vector.load %arg5[%c1_209, %c0_210, %c0_211] : memref<2x32x64xbf16, #tpu.memory_space<vmem>>, vector<1x32x64xbf16>
    %537 = vector.shape_cast %536 : vector<1x32x64xbf16> to vector<32x64xbf16>
    %cst_212 = arith.constant dense<0.000000e+00> : vector<16x64xf32>
    %538 = tpu.matmul %535, %537, %cst_212 {dimension_numbers = #tpu.dot_dimension_numbers<[1], [0], [0], [1], [0, 0, 1, 1], [], []>} : vector<16x32xbf16>, vector<32x64xbf16>, vector<16x64xf32> -> vector<16x64xf32>
    %c14 = arith.constant 14 : index
    %c0_213 = arith.constant 0 : index
    %539 = vector.load %arg2[%c14, %c0_213] : memref<20x128xf32, #tpu.memory_space<vmem>>, vector<1x64xf32>
    %540 = vector.broadcast %539 : vector<1x64xf32> to vector<16x64xf32>
    %541 = arith.addf %538, %540 : vector<16x64xf32>
    %542 = arith.mulf %541, %541 : vector<16x64xf32>
    %543 = arith.mulf %541, %542 : vector<16x64xf32>
    %cst_214 = arith.constant 4.471500e-02 : f32
    %544 = vector.broadcast %cst_214 : f32 to vector<16x64xf32>
    %545 = arith.mulf %544, %543 : vector<16x64xf32>
    %546 = arith.addf %541, %545 : vector<16x64xf32>
    %cst_215 = arith.constant 0.797884583 : f32
    %547 = vector.broadcast %cst_215 : f32 to vector<16x64xf32>
    %548 = arith.mulf %547, %546 : vector<16x64xf32>
    %549 = math.tanh %548 : vector<16x64xf32>
    %cst_216 = arith.constant 1.000000e+00 : f32
    %550 = vector.broadcast %cst_216 : f32 to vector<16x64xf32>
    %551 = arith.addf %550, %549 : vector<16x64xf32>
    %cst_217 = arith.constant 5.000000e-01 : f32
    %552 = vector.broadcast %cst_217 : f32 to vector<16x64xf32>
    %553 = arith.mulf %552, %551 : vector<16x64xf32>
    %554 = arith.mulf %541, %553 : vector<16x64xf32>
    %555 = arith.truncf %554 : vector<16x64xf32> to vector<16x64xbf16>
    %c1_218 = arith.constant 1 : index
    %c0_219 = arith.constant 0 : index
    %c0_220 = arith.constant 0 : index
    %556 = vector.load %arg6[%c1_218, %c0_219, %c0_220] : memref<2x64x32xbf16, #tpu.memory_space<vmem>>, vector<1x64x32xbf16>
    %557 = vector.shape_cast %556 : vector<1x64x32xbf16> to vector<64x32xbf16>
    %cst_221 = arith.constant dense<0.000000e+00> : vector<16x32xf32>
    %558 = tpu.matmul %555, %557, %cst_221 {dimension_numbers = #tpu.dot_dimension_numbers<[1], [0], [0], [1], [0, 0, 1, 1], [], []>} : vector<16x64xbf16>, vector<64x32xbf16>, vector<16x32xf32> -> vector<16x32xf32>
    %c15 = arith.constant 15 : index
    %c0_222 = arith.constant 0 : index
    %559 = vector.load %arg2[%c15, %c0_222] : memref<20x128xf32, #tpu.memory_space<vmem>>, vector<1x32xf32>
    %560 = vector.broadcast %559 : vector<1x32xf32> to vector<16x32xf32>
    %561 = arith.addf %558, %560 : vector<16x32xf32>
    %562 = arith.addf %534, %561 : vector<16x32xf32>
    %c16_223 = arith.constant 16 : index
    %c0_224 = arith.constant 0 : index
    %563 = vector.load %arg2[%c16_223, %c0_224] : memref<20x128xf32, #tpu.memory_space<vmem>>, vector<1x32xf32>
    %c17 = arith.constant 17 : index
    %c0_225 = arith.constant 0 : index
    %564 = vector.load %arg2[%c17, %c0_225] : memref<20x128xf32, #tpu.memory_space<vmem>>, vector<1x32xf32>
    %cst_226 = arith.constant dense<0.000000e+00> : vector<16xf32>
    %565 = vector.multi_reduction <add>, %562, %cst_226 [1] : vector<16x32xf32> to vector<16xf32>
    %566 = vector.shape_cast %565 : vector<16xf32> to vector<16x1xf32>
    %cst_227 = arith.constant 3.200000e+01 : f32
    %567 = vector.broadcast %cst_227 : f32 to vector<16x1xf32>
    %568 = arith.divf %566, %567 : vector<16x1xf32>
    %569 = vector.broadcast %568 : vector<16x1xf32> to vector<16x32xf32>
    %570 = arith.subf %562, %569 : vector<16x32xf32>
    %571 = arith.mulf %570, %570 : vector<16x32xf32>
    %cst_228 = arith.constant dense<0.000000e+00> : vector<16xf32>
    %572 = vector.multi_reduction <add>, %571, %cst_228 [1] : vector<16x32xf32> to vector<16xf32>
    %573 = vector.shape_cast %572 : vector<16xf32> to vector<16x1xf32>
    %cst_229 = arith.constant 3.200000e+01 : f32
    %574 = vector.broadcast %cst_229 : f32 to vector<16x1xf32>
    %575 = arith.divf %573, %574 : vector<16x1xf32>
    %576 = vector.broadcast %568 : vector<16x1xf32> to vector<16x32xf32>
    %577 = arith.subf %562, %576 : vector<16x32xf32>
    %cst_230 = arith.constant 9.99999996E-13 : f32
    %578 = vector.broadcast %cst_230 : f32 to vector<16x1xf32>
    %579 = arith.addf %575, %578 : vector<16x1xf32>
    %580 = math.rsqrt %579 : vector<16x1xf32>
    %581 = vector.broadcast %580 : vector<16x1xf32> to vector<16x32xf32>
    %582 = arith.mulf %577, %581 : vector<16x32xf32>
    %583 = vector.broadcast %563 : vector<1x32xf32> to vector<16x32xf32>
    %584 = arith.mulf %582, %583 : vector<16x32xf32>
    %585 = vector.broadcast %564 : vector<1x32xf32> to vector<16x32xf32>
    %586 = arith.addf %584, %585 : vector<16x32xf32>
    %587 = vector.extract_strided_slice %586 {offsets = [0, 0], sizes = [1, 32], strides = [1, 1]} : vector<16x32xf32> to vector<1x32xf32>
    %588 = vector.extract_strided_slice %586 {offsets = [8, 0], sizes = [1, 32], strides = [1, 1]} : vector<16x32xf32> to vector<1x32xf32>
    %589 = tpu.concatenate %587, %588 in 0 : vector<1x32xf32>, vector<1x32xf32> -> vector<2x32xf32>
    %590 = arith.truncf %589 : vector<2x32xf32> to vector<2x32xbf16>
    %c0_231 = arith.constant 0 : index
    %c0_232 = arith.constant 0 : index
    %591 = vector.load %arg7[%c0_231, %c0_232] : memref<32x32xbf16, #tpu.memory_space<vmem>>, vector<32x32xbf16>
    %cst_233 = arith.constant dense<0.000000e+00> : vector<2x32xf32>
    %592 = tpu.matmul %590, %591, %cst_233 {dimension_numbers = #tpu.dot_dimension_numbers<[1], [0], [0], [1], [0, 0, 1, 1], [], []>} : vector<2x32xbf16>, vector<32x32xbf16>, vector<2x32xf32> -> vector<2x32xf32>
    %c18 = arith.constant 18 : index
    %c0_234 = arith.constant 0 : index
    %593 = vector.load %arg2[%c18, %c0_234] : memref<20x128xf32, #tpu.memory_space<vmem>>, vector<1x32xf32>
    %594 = vector.broadcast %593 : vector<1x32xf32> to vector<2x32xf32>
    %595 = arith.addf %592, %594 : vector<2x32xf32>
    %596 = math.tanh %595 : vector<2x32xf32>
    %597 = arith.truncf %596 : vector<2x32xf32> to vector<2x32xbf16>
    %c0_235 = arith.constant 0 : index
    %c0_236 = arith.constant 0 : index
    %598 = vector.load %arg8[%c0_235, %c0_236] : memref<32x128xbf16, #tpu.memory_space<vmem>>, vector<32x128xbf16>
    %cst_237 = arith.constant dense<0.000000e+00> : vector<2x128xf32>
    %599 = tpu.matmul %597, %598, %cst_237 {dimension_numbers = #tpu.dot_dimension_numbers<[1], [0], [0], [1], [0, 0, 1, 1], [], []>} : vector<2x32xbf16>, vector<32x128xbf16>, vector<2x128xf32> -> vector<2x128xf32>
    %c19 = arith.constant 19 : index
    %c0_238 = arith.constant 0 : index
    %600 = vector.load %arg2[%c19, %c0_238] : memref<20x128xf32, #tpu.memory_space<vmem>>, vector<1x128xf32>
    %601 = vector.broadcast %600 : vector<1x128xf32> to vector<2x128xf32>
    %602 = arith.addf %599, %601 : vector<2x128xf32>
    %c0_239 = arith.constant 0 : index
    %c0_240 = arith.constant 0 : index
    %603 = vector.load %arg9[%c0_239, %c0_240] : memref<2x128xf32, #tpu.memory_space<vmem>>, vector<2x128xf32>
    tpu.vector_store %arg9[%c0_239, %c0_240], %602 {strides = array<i32>} : memref<2x128xf32, #tpu.memory_space<vmem>>, vector<2x128xf32>,
    return
  }
}

</mosaic_0001>

<llo_original>
// kernel: classificate_with_cls.1
$region0: #{classificate_with_cls.1}
  #allocation0 [shape = 'u32[]', space=smem, size = 0x4, offset = 0x4, fixed_abs, tag = 'smem constant byte address 0x4 - core index']
  #allocation1 [shape = 'u32[144,128]{1,0:T(1,128)}', space=vmem, size = 0x12000, scoped, tag = 'internal scratch']
  #allocation2 [shape = 'f32[16,32]{1,0:T(8,128)}', space=vmem, size = 0x2000, scoped, tag = 'scratch operand']
  %s0 = inlined_call_operand.vmem [shape: f32[16,32], index: 0, kind: input, shape index: {}]
  %s1 = inlined_call_operand.vmem [shape: f32[2,8], index: 1, kind: input, shape index: {}]
  %s2 = inlined_call_operand.vmem [shape: f32[20,128], index: 2, kind: input, shape index: {}]
  %s3 = inlined_call_operand.vmem [shape: bf16[2,32,96], index: 3, kind: input, shape index: {}]
  %s4 = inlined_call_operand.vmem [shape: bf16[2,32,32], index: 4, kind: input, shape index: {}]
  %s5 = inlined_call_operand.vmem [shape: bf16[2,32,64], index: 5, kind: input, shape index: {}]
  %s6 = inlined_call_operand.vmem [shape: bf16[2,64,32], index: 6, kind: input, shape index: {}]
  %s7 = inlined_call_operand.vmem [shape: bf16[32,32], index: 7, kind: input, shape index: {}]
  %s8 = inlined_call_operand.vmem [shape: bf16[32,128], index: 8, kind: input, shape index: {}]
  %s9 = inlined_call_operand.hbm [shape: f32[2,128], index: 9, kind: output, shape index: {}]
  %s10 = sld [smem:[#allocation0]]
  $region46: #{classificate_with_cls.1} parent=0
    _
  %s12 = ssub.s32 1, %s10
  %s13 = scalar_select 0, %s12, %s10
  $region1: #{classificate_with_cls.1} parent=0
    #allocation3 [shape = 'u8[1024]{0}', space=vmem, size = 0x400, scoped, tag = 'output window, operand 0, single buffered']
    #allocation4 [shape = 's32[1]{0}', space=sflag, size = 0x4, scoped, tag = 'scoped memory for classificate_with_cls.1']
    %14 = vsyncpa [#allocation4], 0
    // Predicated region
    $region2: #{classificate_with_cls.1} parent=1 // pred_check
      _
    $region3: #{classificate_with_cls.1} parent=1 // pred_check_branch
      %16 = sbr.rel (0) target = $region5
    $region4: #{classificate_with_cls.1} parent=1 // pred_region
      _
    $region5: #{classificate_with_cls.1} parent=1 // pred_fallthru
      _
    // Predicated region
    $region6: #{classificate_with_cls.1} parent=1 // pred_check
      _
    $region7: #{classificate_with_cls.1} parent=1 // pred_check_branch
      %18 = sbr.rel (0) target = $region9
    $region8: #{classificate_with_cls.1} parent=1 // pred_region
      _
    $region9: #{classificate_with_cls.1} parent=1 // pred_fallthru
      _
    // Predicated region
    $region10: #{classificate_with_cls.1} parent=1 // pred_check
      _
    $region11: #{classificate_with_cls.1} parent=1 // pred_check_branch
      %20 = sbr.rel (0) target = $region13
    $region12: #{classificate_with_cls.1} parent=1 // pred_region
      _
    $region13: #{classificate_with_cls.1} parent=1 // pred_fallthru
      _
    // Predicated region
    $region14: #{classificate_with_cls.1} parent=1 // pred_check
      _
    $region15: #{classificate_with_cls.1} parent=1 // pred_check_branch
      %22 = sbr.rel (0) target = $region17
    $region16: #{classificate_with_cls.1} parent=1 // pred_region
      _
    $region17: #{classificate_with_cls.1} parent=1 // pred_fallthru
      _
    // Predicated region
    $region18: #{classificate_with_cls.1} parent=1 // pred_check
      _
    $region19: #{classificate_with_cls.1} parent=1 // pred_check_branch
      %24 = sbr.rel (0) target = $region21
    $region20: #{classificate_with_cls.1} parent=1 // pred_region
      _
    $region21: #{classificate_with_cls.1} parent=1 // pred_fallthru
      _
    // Predicated region
    $region22: #{classificate_with_cls.1} parent=1 // pred_check
      _
    $region23: #{classificate_with_cls.1} parent=1 // pred_check_branch
      %26 = sbr.rel (0) target = $region25
    $region24: #{classificate_with_cls.1} parent=1 // pred_region
      _
    $region25: #{classificate_with_cls.1} parent=1 // pred_fallthru
      _
    // Predicated region
    $region26: #{classificate_with_cls.1} parent=1 // pred_check
      _
    $region27: #{classificate_with_cls.1} parent=1 // pred_check_branch
      %28 = sbr.rel (0) target = $region29
    $region28: #{classificate_with_cls.1} parent=1 // pred_region
      _
    $region29: #{classificate_with_cls.1} parent=1 // pred_fallthru
      _
    // Predicated region
    $region30: #{classificate_with_cls.1} parent=1 // pred_check
      _
    $region31: #{classificate_with_cls.1} parent=1 // pred_check_branch
      %30 = sbr.rel (0) target = $region33
    $region32: #{classificate_with_cls.1} parent=1 // pred_region
      _
    $region33: #{classificate_with_cls.1} parent=1 // pred_fallthru
      _
    // Predicated region
    $region34: #{classificate_with_cls.1} parent=1 // pred_check
      _
    $region35: #{classificate_with_cls.1} parent=1 // pred_check_branch
      %32 = sbr.rel (0) target = $region37
    $region36: #{classificate_with_cls.1} parent=1 // pred_region
      _
    $region37: #{classificate_with_cls.1} parent=1 // pred_fallthru
      _
    %v34 = vld [vmem:[%s0] sm:$0xff]
    %v35 = vld [vmem:[%s0 + $0x8] sm:$0xff]
    %v36 = vld [vmem:[%s2] sm:$0x1]
    %v37 = vld [vmem:[%s2 + $0x1] sm:$0x1]
    %vm38 = vcmask 261120
    %v39 = vsel %vm38, %v34, 0.0
    %40 = vadd.xlane.f32.xlu0 %v39
    %v41 = vpop.xlane.xlu0 %40
    %v42 = vsel %vm38, %v35, 0.0
    %43 = vadd.xlane.f32.xlu0 %v42
    %v44 = vpop.xlane.xlu0 %43
    %v45 = vrcp.pop 32.0
    %v46 = vmul.f32 %v41, %v45
    %v47 = vmul.f32 %v44, %v45
    %v48 = vsub.f32 %v34, %v46
    %v49 = vsub.f32 %v35, %v47
    %v50 = vmul.f32 %v48, %v48
    %v51 = vmul.f32 %v49, %v49
    %v52 = vsel %vm38, %v50, 0.0
    %53 = vadd.xlane.f32.xlu0 %v52
    %v54 = vpop.xlane.xlu0 %53
    %v55 = vsel %vm38, %v51, 0.0
    %56 = vadd.xlane.f32.xlu0 %v55
    %v57 = vpop.xlane.xlu0 %56
    %v58 = vmul.f32 %v54, %v45
    %v59 = vmul.f32 %v57, %v45
    %v60 = vadd.f32 %v58, 1e-12
    %v61 = vadd.f32 %v59, 1e-12
    %v62 = vrsqrt.pop %v60
    %v63 = vrsqrt.pop %v61
    %v64 = vmul.f32 %v48, %v62
    %v65 = vmul.f32 %v49, %v63
    %v66 = vlaneseq
    %v67 = vshrl.u32 %v66, 7
    %v68 = vsub.s32 0, %v67
    %v69 = vrot.slane %v36, %v68
    %v70 = vmul.f32 %v64, %v69
    %v71 = vmul.f32 %v65, %v69
    %v72 = vlaneseq
    %v73 = vshrl.u32 %v72, 7
    %v74 = vsub.s32 0, %v73
    %v75 = vrot.slane %v37, %v74
    %v76 = vadd.f32 %v70, %v75
    %v77 = vadd.f32 %v71, %v75
    %v78 = vpack.c.bf16 %v77, %v76
    %v79 = vld [vmem:[%s3] sm:$0xf]
    %v80 = vld [vmem:[%s3 + $0x4] sm:$0xf]
    %v81 = vld [vmem:[%s3 + $0x8] sm:$0xf]
    %v82 = vld [vmem:[%s3 + $0xc] sm:$0xf]
    %v83 = vld [vmem:[%s2 + $0x2] sm:$0x1]
    %v84 = vlaneseq
    %v85 = vshrl.u32 %v84, 7
    %v86 = vsub.s32 0, %v85
    %v87 = vrot.slane %v83, %v86
    %v92 = vunpack.c.l.b16 %v79
    %v93 = vunpack.c.l.b16 %v80
    %v94 = vunpack.c.l.b16 %v81
    %v95 = vunpack.c.l.b16 %v82
    %v96 = vpack.c.b16 %v93, %v92
    %v97 = vpack.c.b16 %v95, %v94
    %v101 = vsel %vm38, %v78, 0
    %103 = vmatprep.subr.bf16.mxu0 0
    %104 = vmatpush1.bf16.msra.mxu0 0
    %105 = vmatprep.subr.bf16.mxu0 0
    %106 = vmatpush1.bf16.msra.mxu0 0
    %107 = vmatprep.subr.bf16.mxu0 0
    %108 = vmatpush1.bf16.msra.mxu0 0
    %109 = vmatprep.subr.bf16.mxu0 0
    %110 = vmatpush1.bf16.msra.mxu0 0
    %111 = vmatprep.subr.bf16.mxu0 0
    %112 = vmatpush1.bf16.msra.mxu0 0
    %113 = vmatprep.subr.bf16.mxu0 0
    %114 = vmatpush1.bf16.msra.mxu0 0
    %115 = vmatprep.subr.bf16.mxu0 0
    %116 = vmatpush1.bf16.msra.mxu0 %v97
    %117 = vmatprep.subr.bf16.mxu0 0
    %118 = vmatpush1.bf16.msra.mxu0 %v96
    %119 = vmatprep.subr.bf16.mxu0 0
    %120 = vmatpush2.bf16.msra.mxu0 0
    %121 = vmatprep.subr.bf16.mxu0 0
    %122 = vmatpush2.bf16.msra.mxu0 0
    %123 = vmatprep.subr.bf16.mxu0 0
    %124 = vmatpush2.bf16.msra.mxu0 0
    %125 = vmatprep.subr.bf16.mxu0 0
    %126 = vmatpush2.bf16.msra.mxu0 0
    %127 = vmatprep.subr.bf16.mxu0 0
    %128 = vmatpush2.bf16.msra.mxu0 0
    %129 = vmatprep.subr.bf16.mxu0 0
    %130 = vmatpush2.bf16.msra.mxu0 0
    %131 = vmatprep.subr.bf16.mxu0 0
    %132 = vmatpush2.bf16.msra.mxu0 0
    %133 = vmatprep.subr.bf16.mxu0 0
    %134 = vmatpush2.bf16.msra.mxu0 0
    %135 = vmatprep.mubr.bf16.mxu0 0
    %136 = vmatmul.mubr.bf16.gmra.mxu0 %v101
    %v137 = vpop.f32.mrf.mxu0
    %v138 = vadd.f32 %v87, %v137
    %v139 = vpop.f32.mrf.mxu0
    %v140 = vpop.f32.mrf.mxu0
    %v141 = vadd.f32 %v87, %v140
    %v142 = vpop.f32.mrf.mxu0
    %143 = vdwg.mxu0
    %v144 = vpack.c.bf16 %v141, %v138
    %146 = vrot.lane.b32.xlu0 %v144, 96
    %v147 = vpop.permute.xlu0 %146
    %vm148 = vcmask 64512
    %v150 = vsel %vm148, %v144, 0
    %v153 = vsel %vm148, %v147, 0
    %155 = vmatprep.subr.bf16.mxu0 0
    %156 = vmatpush1.bf16.xpose.msra.mxu0 0
    %157 = vmatprep.subr.bf16.mxu0 0
    %158 = vmatpush1.bf16.xpose.msra.mxu0 0
    %159 = vmatprep.subr.bf16.mxu0 0
    %160 = vmatpush1.bf16.xpose.msra.mxu0 0
    %161 = vmatprep.subr.bf16.mxu0 0
    %162 = vmatpush1.bf16.xpose.msra.mxu0 0
    %163 = vmatprep.subr.bf16.mxu0 0
    %164 = vmatpush1.bf16.xpose.msra.mxu0 0
    %165 = vmatprep.subr.bf16.mxu0 0
    %166 = vmatpush1.bf16.xpose.msra.mxu0 0
    %167 = vmatprep.subr.bf16.mxu0 0
    %168 = vmatpush1.bf16.xpose.msra.mxu0 0
    %169 = vmatprep.subr.bf16.mxu0 0
    %170 = vmatpush1.bf16.xpose.msra.mxu0 %v153
    %171 = vmatprep.subr.bf16.mxu0 0
    %172 = vmatpush2.bf16.xpose.msra.mxu0 0
    %173 = vmatprep.subr.bf16.mxu0 0
    %174 = vmatpush2.bf16.xpose.msra.mxu0 0
    %175 = vmatprep.subr.bf16.mxu0 0
    %176 = vmatpush2.bf16.xpose.msra.mxu0 0
    %177 = vmatprep.subr.bf16.mxu0 0
    %178 = vmatpush2.bf16.xpose.msra.mxu0 0
    %179 = vmatprep.subr.bf16.mxu0 0
    %180 = vmatpush2.bf16.xpose.msra.mxu0 0
    %181 = vmatprep.subr.bf16.mxu0 0
    %182 = vmatpush2.bf16.xpose.msra.mxu0 0
    %183 = vmatprep.subr.bf16.mxu0 0
    %184 = vmatpush2.bf16.xpose.msra.mxu0 0
    %185 = vmatprep.subr.bf16.mxu0 0
    %186 = vmatpush2.bf16.xpose.msra.mxu0 0
    %187 = vmatprep.mubr.bf16.mxu0 0
    %188 = vmatmul.mubr.bf16.gmra.mxu0 %v150
    %v189 = vpop.f32.mrf.mxu0
    %v190 = vadd.f32 0.0, %v189
    %v191 = vpop.f32.mrf.mxu0
    %v192 = vpop.f32.mrf.mxu0
    %v193 = vpop.f32.mrf.mxu0
    %194 = vdwg.mxu0
    %v195 = vmul.f32 %v190, 0.35355338
    %v196 = vld [vmem:[%s1] sm:$0x1]
    %v197 = vlaneseq
    %v198 = vshrl.u32 %v197, 7
    %v199 = vsub.s32 0, %v198
    %v200 = vrot.slane %v196, %v199
    %v201 = vadd.f32 %v195, %v200
    %v202 = vsel %vm148, %v201, -inf
    %203 = vmax.xlane.f32.xlu0 %v202
    %v204 = vpop.xlane.xlu0 %203
    %v205 = vsub.f32 %v201, %v204
    %v206 = vmul.f32 %v205, 1.442695
    %v207 = vpow.pop %v206
    %v208 = vsel %vm148, %v207, 0.0
    %209 = vadd.xlane.f32.xlu0 %v208
    %v210 = vpop.xlane.xlu0 %209
    %v211 = vrcp.pop %v210
    %v212 = vmul.f32 %v207, %v211
    %v213 = vpack.c.bf16 %v212, %v212
    %214 = vrot.lane.b32.xlu0 %v144, 64
    %v215 = vpop.permute.xlu0 %214
    %v217 = vsel %vm148, %v213, 0
    %vm219 = vcmask 1043456
    %v221 = vsel %vm219, %v215, 0
    %223 = vmatprep.subr.bf16.mxu0 0
    %224 = vmatpush1.bf16.msra.mxu0 0
    %225 = vmatprep.subr.bf16.mxu0 0
    %226 = vmatpush1.bf16.msra.mxu0 0
    %227 = vmatprep.subr.bf16.mxu0 0
    %228 = vmatpush1.bf16.msra.mxu0 0
    %229 = vmatprep.subr.bf16.mxu0 0
    %230 = vmatpush1.bf16.msra.mxu0 0
    %231 = vmatprep.subr.bf16.mxu0 0
    %232 = vmatpush1.bf16.msra.mxu0 0
    %233 = vmatprep.subr.bf16.mxu0 0
    %234 = vmatpush1.bf16.msra.mxu0 0
    %235 = vmatprep.subr.bf16.mxu0 0
    %236 = vmatpush1.bf16.msra.mxu0 0
    %237 = vmatprep.subr.bf16.mxu0 0
    %238 = vmatpush1.bf16.msra.mxu0 %v221
    %239 = vmatprep.subr.bf16.mxu0 0
    %240 = vmatpush2.bf16.msra.mxu0 0
    %241 = vmatprep.subr.bf16.mxu0 0
    %242 = vmatpush2.bf16.msra.mxu0 0
    %243 = vmatprep.subr.bf16.mxu0 0
    %244 = vmatpush2.bf16.msra.mxu0 0
    %245 = vmatprep.subr.bf16.mxu0 0
    %246 = vmatpush2.bf16.msra.mxu0 0
    %247 = vmatprep.subr.bf16.mxu0 0
    %248 = vmatpush2.bf16.msra.mxu0 0
    %249 = vmatprep.subr.bf16.mxu0 0
    %250 = vmatpush2.bf16.msra.mxu0 0
    %251 = vmatprep.subr.bf16.mxu0 0
    %252 = vmatpush2.bf16.msra.mxu0 0
    %253 = vmatprep.subr.bf16.mxu0 0
    %254 = vmatpush2.bf16.msra.mxu0 0
    %255 = vmatprep.mubr.bf16.mxu0 0
    %256 = vmatmul.mubr.bf16.gmra.mxu0 %v217
    %v257 = vpop.f32.mrf.mxu0
    %v258 = vadd.f32 0.0, %v257
    %v259 = vpop.f32.mrf.mxu0
    %v260 = vpop.f32.mrf.mxu0
    %v261 = vpop.f32.mrf.mxu0
    %262 = vdwg.mxu0
    %263 = vst.msk [vmem:[#allocation2] sm:$0xff] %vm148, %v258
    %v264 = vrot.slane %v144, 4
    %265 = vrot.lane.b32.xlu0 %v264, 96
    %v266 = vpop.permute.xlu0 %265
    %v268 = vsel %vm148, %v264, 0
    %v271 = vsel %vm148, %v266, 0
    %273 = vmatprep.subr.bf16.mxu0 0
    %274 = vmatpush1.bf16.xpose.msra.mxu0 0
    %275 = vmatprep.subr.bf16.mxu0 0
    %276 = vmatpush1.bf16.xpose.msra.mxu0 0
    %277 = vmatprep.subr.bf16.mxu0 0
    %278 = vmatpush1.bf16.xpose.msra.mxu0 0
    %279 = vmatprep.subr.bf16.mxu0 0
    %280 = vmatpush1.bf16.xpose.msra.mxu0 0
    %281 = vmatprep.subr.bf16.mxu0 0
    %282 = vmatpush1.bf16.xpose.msra.mxu0 0
    %283 = vmatprep.subr.bf16.mxu0 0
    %284 = vmatpush1.bf16.xpose.msra.mxu0 0
    %285 = vmatprep.subr.bf16.mxu0 0
    %286 = vmatpush1.bf16.xpose.msra.mxu0 0
    %287 = vmatprep.subr.bf16.mxu0 0
    %288 = vmatpush1.bf16.xpose.msra.mxu0 %v271
    %289 = vmatprep.subr.bf16.mxu0 0
    %290 = vmatpush2.bf16.xpose.msra.mxu0 0
    %291 = vmatprep.subr.bf16.mxu0 0
    %292 = vmatpush2.bf16.xpose.msra.mxu0 0
    %293 = vmatprep.subr.bf16.mxu0 0
    %294 = vmatpush2.bf16.xpose.msra.mxu0 0
    %295 = vmatprep.subr.bf16.mxu0 0
    %296 = vmatpush2.bf16.xpose.msra.mxu0 0
    %297 = vmatprep.subr.bf16.mxu0 0
    %298 = vmatpush2.bf16.xpose.msra.mxu0 0
    %299 = vmatprep.subr.bf16.mxu0 0
    %300 = vmatpush2.bf16.xpose.msra.mxu0 0
    %301 = vmatprep.subr.bf16.mxu0 0
    %302 = vmatpush2.bf16.xpose.msra.mxu0 0
    %303 = vmatprep.subr.bf16.mxu0 0
    %304 = vmatpush2.bf16.xpose.msra.mxu0 0
    %305 = vmatprep.mubr.bf16.mxu0 0
    %306 = vmatmul.mubr.bf16.gmra.mxu0 %v268
    %v307 = vpop.f32.mrf.mxu0
    %v308 = vadd.f32 0.0, %v307
    %v309 = vpop.f32.mrf.mxu0
    %v310 = vpop.f32.mrf.mxu0
    %v311 = vpop.f32.mrf.mxu0
    %312 = vdwg.mxu0
    %v313 = vmul.f32 %v308, 0.35355338
    %v314 = vld [vmem:[%s1 + $0x1] sm:$0x1]
    %v315 = vlaneseq
    %v316 = vshrl.u32 %v315, 7
    %v317 = vsub.s32 0, %v316
    %v318 = vrot.slane %v314, %v317
    %v319 = vadd.f32 %v313, %v318
    %v320 = vsel %vm148, %v319, -inf
    %321 = vmax.xlane.f32.xlu0 %v320
    %v322 = vpop.xlane.xlu0 %321
    %v323 = vsub.f32 %v319, %v322
    %v324 = vmul.f32 %v323, 1.442695
    %v325 = vpow.pop %v324
    %v326 = vsel %vm148, %v325, 0.0
    %327 = vadd.xlane.f32.xlu0 %v326
    %v328 = vpop.xlane.xlu0 %327
    %v329 = vrcp.pop %v328
    %v330 = vmul.f32 %v325, %v329
    %v331 = vpack.c.bf16 %v330, %v330
    %332 = vrot.lane.b32.xlu0 %v264, 64
    %v333 = vpop.permute.xlu0 %332
    %v335 = vsel %vm148, %v331, 0
    %v338 = vsel %vm219, %v333, 0
    %340 = vmatprep.subr.bf16.mxu0 0
    %341 = vmatpush1.bf16.msra.mxu0 0
    %342 = vmatprep.subr.bf16.mxu0 0
    %343 = vmatpush1.bf16.msra.mxu0 0
    %344 = vmatprep.subr.bf16.mxu0 0
    %345 = vmatpush1.bf16.msra.mxu0 0
    %346 = vmatprep.subr.bf16.mxu0 0
    %347 = vmatpush1.bf16.msra.mxu0 0
    %348 = vmatprep.subr.bf16.mxu0 0
    %349 = vmatpush1.bf16.msra.mxu0 0
    %350 = vmatprep.subr.bf16.mxu0 0
    %351 = vmatpush1.bf16.msra.mxu0 0
    %352 = vmatprep.subr.bf16.mxu0 0
    %353 = vmatpush1.bf16.msra.mxu0 0
    %354 = vmatprep.subr.bf16.mxu0 0
    %355 = vmatpush1.bf16.msra.mxu0 %v338
    %356 = vmatprep.subr.bf16.mxu0 0
    %357 = vmatpush2.bf16.msra.mxu0 0
    %358 = vmatprep.subr.bf16.mxu0 0
    %359 = vmatpush2.bf16.msra.mxu0 0
    %360 = vmatprep.subr.bf16.mxu0 0
    %361 = vmatpush2.bf16.msra.mxu0 0
    %362 = vmatprep.subr.bf16.mxu0 0
    %363 = vmatpush2.bf16.msra.mxu0 0
    %364 = vmatprep.subr.bf16.mxu0 0
    %365 = vmatpush2.bf16.msra.mxu0 0
    %366 = vmatprep.subr.bf16.mxu0 0
    %367 = vmatpush2.bf16.msra.mxu0 0
    %368 = vmatprep.subr.bf16.mxu0 0
    %369 = vmatpush2.bf16.msra.mxu0 0
    %370 = vmatprep.subr.bf16.mxu0 0
    %371 = vmatpush2.bf16.msra.mxu0 0
    %372 = vmatprep.mubr.bf16.mxu0 0
    %373 = vmatmul.mubr.bf16.gmra.mxu0 %v335
    %v374 = vpop.f32.mrf.mxu0
    %v375 = vadd.f32 0.0, %v374
    %v376 = vpop.f32.mrf.mxu0
    %v377 = vpop.f32.mrf.mxu0
    %v378 = vpop.f32.mrf.mxu0
    %379 = vdwg.mxu0
    %380 = vst.msk [vmem:[#allocation2 + $0x8] sm:$0xff] %vm148, %v375
    %381 = vrot.lane.b32.xlu0 %v144, 120
    %v382 = vpop.permute.xlu0 %381
    %383 = vrot.lane.b32.xlu0 %v144, 88
    %v384 = vpop.permute.xlu0 %383
    %v386 = vsel %vm148, %v382, 0
    %v389 = vsel %vm148, %v384, 0
    %391 = vmatprep.subr.bf16.mxu0 0
    %392 = vmatpush1.bf16.xpose.msra.mxu0 0
    %393 = vmatprep.subr.bf16.mxu0 0
    %394 = vmatpush1.bf16.xpose.msra.mxu0 0
    %395 = vmatprep.subr.bf16.mxu0 0
    %396 = vmatpush1.bf16.xpose.msra.mxu0 0
    %397 = vmatprep.subr.bf16.mxu0 0
    %398 = vmatpush1.bf16.xpose.msra.mxu0 0
    %399 = vmatprep.subr.bf16.mxu0 0
    %400 = vmatpush1.bf16.xpose.msra.mxu0 0
    %401 = vmatprep.subr.bf16.mxu0 0
    %402 = vmatpush1.bf16.xpose.msra.mxu0 0
    %403 = vmatprep.subr.bf16.mxu0 0
    %404 = vmatpush1.bf16.xpose.msra.mxu0 0
    %405 = vmatprep.subr.bf16.mxu0 0
    %406 = vmatpush1.bf16.xpose.msra.mxu0 %v389
    %407 = vmatprep.subr.bf16.mxu0 0
    %408 = vmatpush2.bf16.xpose.msra.mxu0 0
    %409 = vmatprep.subr.bf16.mxu0 0
    %410 = vmatpush2.bf16.xpose.msra.mxu0 0
    %411 = vmatprep.subr.bf16.mxu0 0
    %412 = vmatpush2.bf16.xpose.msra.mxu0 0
    %413 = vmatprep.subr.bf16.mxu0 0
    %414 = vmatpush2.bf16.xpose.msra.mxu0 0
    %415 = vmatprep.subr.bf16.mxu0 0
    %416 = vmatpush2.bf16.xpose.msra.mxu0 0
    %417 = vmatprep.subr.bf16.mxu0 0
    %418 = vmatpush2.bf16.xpose.msra.mxu0 0
    %419 = vmatprep.subr.bf16.mxu0 0
    %420 = vmatpush2.bf16.xpose.msra.mxu0 0
    %421 = vmatprep.subr.bf16.mxu0 0
    %422 = vmatpush2.bf16.xpose.msra.mxu0 0
    %423 = vmatprep.mubr.bf16.mxu0 0
    %424 = vmatmul.mubr.bf16.gmra.mxu0 %v386
    %v425 = vpop.f32.mrf.mxu0
    %v426 = vadd.f32 0.0, %v425
    %v427 = vpop.f32.mrf.mxu0
    %v428 = vpop.f32.mrf.mxu0
    %v429 = vpop.f32.mrf.mxu0
    %430 = vdwg.mxu0
    %v431 = vmul.f32 %v426, 0.35355338
    %v432 = vld [vmem:[%s1] sm:$0x1]
    %v433 = vlaneseq
    %v434 = vshrl.u32 %v433, 7
    %v435 = vsub.s32 0, %v434
    %v436 = vrot.slane %v432, %v435
    %v437 = vadd.f32 %v431, %v436
    %v438 = vsel %vm148, %v437, -inf
    %439 = vmax.xlane.f32.xlu0 %v438
    %v440 = vpop.xlane.xlu0 %439
    %v441 = vsub.f32 %v437, %v440
    %v442 = vmul.f32 %v441, 1.442695
    %v443 = vpow.pop %v442
    %v444 = vsel %vm148, %v443, 0.0
    %445 = vadd.xlane.f32.xlu0 %v444
    %v446 = vpop.xlane.xlu0 %445
    %v447 = vrcp.pop %v446
    %v448 = vmul.f32 %v443, %v447
    %v449 = vpack.c.bf16 %v448, %v448
    %450 = vrot.lane.b32.xlu0 %v144, 56
    %v451 = vpop.permute.xlu0 %450
    %v453 = vsel %vm148, %v449, 0
    %v456 = vsel %vm219, %v451, 0
    %458 = vmatprep.subr.bf16.mxu0 0
    %459 = vmatpush1.bf16.msra.mxu0 0
    %460 = vmatprep.subr.bf16.mxu0 0
    %461 = vmatpush1.bf16.msra.mxu0 0
    %462 = vmatprep.subr.bf16.mxu0 0
    %463 = vmatpush1.bf16.msra.mxu0 0
    %464 = vmatprep.subr.bf16.mxu0 0
    %465 = vmatpush1.bf16.msra.mxu0 0
    %466 = vmatprep.subr.bf16.mxu0 0
    %467 = vmatpush1.bf16.msra.mxu0 0
    %468 = vmatprep.subr.bf16.mxu0 0
    %469 = vmatpush1.bf16.msra.mxu0 0
    %470 = vmatprep.subr.bf16.mxu0 0
    %471 = vmatpush1.bf16.msra.mxu0 0
    %472 = vmatprep.subr.bf16.mxu0 0
    %473 = vmatpush1.bf16.msra.mxu0 %v456
    %474 = vmatprep.subr.bf16.mxu0 0
    %475 = vmatpush2.bf16.msra.mxu0 0
    %476 = vmatprep.subr.bf16.mxu0 0
    %477 = vmatpush2.bf16.msra.mxu0 0
    %478 = vmatprep.subr.bf16.mxu0 0
    %479 = vmatpush2.bf16.msra.mxu0 0
    %480 = vmatprep.subr.bf16.mxu0 0
    %481 = vmatpush2.bf16.msra.mxu0 0
    %482 = vmatprep.subr.bf16.mxu0 0
    %483 = vmatpush2.bf16.msra.mxu0 0
    %484 = vmatprep.subr.bf16.mxu0 0
    %485 = vmatpush2.bf16.msra.mxu0 0
    %486 = vmatprep.subr.bf16.mxu0 0
    %487 = vmatpush2.bf16.msra.mxu0 0
    %488 = vmatprep.subr.bf16.mxu0 0
    %489 = vmatpush2.bf16.msra.mxu0 0
    %490 = vmatprep.mubr.bf16.mxu0 0
    %491 = vmatmul.mubr.bf16.gmra.mxu0 %v453
    %v492 = vpop.f32.mrf.mxu0
    %v493 = vadd.f32 0.0, %v492
    %v494 = vpop.f32.mrf.mxu0
    %v495 = vpop.f32.mrf.mxu0
    %v496 = vpop.f32.mrf.mxu0
    %497 = vdwg.mxu0
    %499 = vrot.lane.b32.xlu0 %v493, 8
    %v500 = vpop.permute.xlu0 %499
    %vm502 = vcmask 130112
    %503 = vst.msk [vmem:[#allocation2] sm:$0xff] %vm502, %v500
    %504 = vrot.lane.b32.xlu0 %v264, 120
    %v505 = vpop.permute.xlu0 %504
    %506 = vrot.lane.b32.xlu0 %v264, 88
    %v507 = vpop.permute.xlu0 %506
    %v509 = vsel %vm148, %v505, 0
    %v512 = vsel %vm148, %v507, 0
    %514 = vmatprep.subr.bf16.mxu0 0
    %515 = vmatpush1.bf16.xpose.msra.mxu0 0
    %516 = vmatprep.subr.bf16.mxu0 0
    %517 = vmatpush1.bf16.xpose.msra.mxu0 0
    %518 = vmatprep.subr.bf16.mxu0 0
    %519 = vmatpush1.bf16.xpose.msra.mxu0 0
    %520 = vmatprep.subr.bf16.mxu0 0
    %521 = vmatpush1.bf16.xpose.msra.mxu0 0
    %522 = vmatprep.subr.bf16.mxu0 0
    %523 = vmatpush1.bf16.xpose.msra.mxu0 0
    %524 = vmatprep.subr.bf16.mxu0 0
    %525 = vmatpush1.bf16.xpose.msra.mxu0 0
    %526 = vmatprep.subr.bf16.mxu0 0
    %527 = vmatpush1.bf16.xpose.msra.mxu0 0
    %528 = vmatprep.subr.bf16.mxu0 0
    %529 = vmatpush1.bf16.xpose.msra.mxu0 %v512
    %530 = vmatprep.subr.bf16.mxu0 0
    %531 = vmatpush2.bf16.xpose.msra.mxu0 0
    %532 = vmatprep.subr.bf16.mxu0 0
    %533 = vmatpush2.bf16.xpose.msra.mxu0 0
    %534 = vmatprep.subr.bf16.mxu0 0
    %535 = vmatpush2.bf16.xpose.msra.mxu0 0
    %536 = vmatprep.subr.bf16.mxu0 0
    %537 = vmatpush2.bf16.xpose.msra.mxu0 0
    %538 = vmatprep.subr.bf16.mxu0 0
    %539 = vmatpush2.bf16.xpose.msra.mxu0 0
    %540 = vmatprep.subr.bf16.mxu0 0
    %541 = vmatpush2.bf16.xpose.msra.mxu0 0
    %542 = vmatprep.subr.bf16.mxu0 0
    %543 = vmatpush2.bf16.xpose.msra.mxu0 0
    %544 = vmatprep.subr.bf16.mxu0 0
    %545 = vmatpush2.bf16.xpose.msra.mxu0 0
    %546 = vmatprep.mubr.bf16.mxu0 0
    %547 = vmatmul.mubr.bf16.gmra.mxu0 %v509
    %v548 = vpop.f32.mrf.mxu0
    %v549 = vadd.f32 0.0, %v548
    %v550 = vpop.f32.mrf.mxu0
    %v551 = vpop.f32.mrf.mxu0
    %v552 = vpop.f32.mrf.mxu0
    %553 = vdwg.mxu0
    %v554 = vmul.f32 %v549, 0.35355338
    %v555 = vld [vmem:[%s1 + $0x1] sm:$0x1]
    %v556 = vlaneseq
    %v557 = vshrl.u32 %v556, 7
    %v558 = vsub.s32 0, %v557
    %v559 = vrot.slane %v555, %v558
    %v560 = vadd.f32 %v554, %v559
    %v561 = vsel %vm148, %v560, -inf
    %562 = vmax.xlane.f32.xlu0 %v561
    %v563 = vpop.xlane.xlu0 %562
    %v564 = vsub.f32 %v560, %v563
    %v565 = vmul.f32 %v564, 1.442695
    %v566 = vpow.pop %v565
    %v567 = vsel %vm148, %v566, 0.0
    %568 = vadd.xlane.f32.xlu0 %v567
    %v569 = vpop.xlane.xlu0 %568
    %v570 = vrcp.pop %v569
    %v571 = vmul.f32 %v566, %v570
    %v572 = vpack.c.bf16 %v571, %v571
    %573 = vrot.lane.b32.xlu0 %v264, 56
    %v574 = vpop.permute.xlu0 %573
    %v576 = vsel %vm148, %v572, 0
    %v579 = vsel %vm219, %v574, 0
    %581 = vmatprep.subr.bf16.mxu0 0
    %582 = vmatpush1.bf16.msra.mxu0 0
    %583 = vmatprep.subr.bf16.mxu0 0
    %584 = vmatpush1.bf16.msra.mxu0 0
    %585 = vmatprep.subr.bf16.mxu0 0
    %586 = vmatpush1.bf16.msra.mxu0 0
    %587 = vmatprep.subr.bf16.mxu0 0
    %588 = vmatpush1.bf16.msra.mxu0 0
    %589 = vmatprep.subr.bf16.mxu0 0
    %590 = vmatpush1.bf16.msra.mxu0 0
    %591 = vmatprep.subr.bf16.mxu0 0
    %592 = vmatpush1.bf16.msra.mxu0 0
    %593 = vmatprep.subr.bf16.mxu0 0
    %594 = vmatpush1.bf16.msra.mxu0 0
    %595 = vmatprep.subr.bf16.mxu0 0
    %596 = vmatpush1.bf16.msra.mxu0 %v579
    %597 = vmatprep.subr.bf16.mxu0 0
    %598 = vmatpush2.bf16.msra.mxu0 0
    %599 = vmatprep.subr.bf16.mxu0 0
    %600 = vmatpush2.bf16.msra.mxu0 0
    %601 = vmatprep.subr.bf16.mxu0 0
    %602 = vmatpush2.bf16.msra.mxu0 0
    %603 = vmatprep.subr.bf16.mxu0 0
    %604 = vmatpush2.bf16.msra.mxu0 0
    %605 = vmatprep.subr.bf16.mxu0 0
    %606 = vmatpush2.bf16.msra.mxu0 0
    %607 = vmatprep.subr.bf16.mxu0 0
    %608 = vmatpush2.bf16.msra.mxu0 0
    %609 = vmatprep.subr.bf16.mxu0 0
    %610 = vmatpush2.bf16.msra.mxu0 0
    %611 = vmatprep.subr.bf16.mxu0 0
    %612 = vmatpush2.bf16.msra.mxu0 0
    %613 = vmatprep.mubr.bf16.mxu0 0
    %614 = vmatmul.mubr.bf16.gmra.mxu0 %v576
    %v615 = vpop.f32.mrf.mxu0
    %v616 = vadd.f32 0.0, %v615
    %v617 = vpop.f32.mrf.mxu0
    %v618 = vpop.f32.mrf.mxu0
    %v619 = vpop.f32.mrf.mxu0
    %620 = vdwg.mxu0
    %622 = vrot.lane.b32.xlu0 %v616, 8
    %v623 = vpop.permute.xlu0 %622
    %625 = vst.msk [vmem:[#allocation2 + $0x8] sm:$0xff] %vm502, %v623
    %626 = vrot.lane.b32.xlu0 %v144, 112
    %v627 = vpop.permute.xlu0 %626
    %628 = vrot.lane.b32.xlu0 %v144, 80
    %v629 = vpop.permute.xlu0 %628
    %v631 = vsel %vm148, %v627, 0
    %v634 = vsel %vm148, %v629, 0
    %636 = vmatprep.subr.bf16.mxu0 0
    %637 = vmatpush1.bf16.xpose.msra.mxu0 0
    %638 = vmatprep.subr.bf16.mxu0 0
    %639 = vmatpush1.bf16.xpose.msra.mxu0 0
    %640 = vmatprep.subr.bf16.mxu0 0
    %641 = vmatpush1.bf16.xpose.msra.mxu0 0
    %642 = vmatprep.subr.bf16.mxu0 0
    %643 = vmatpush1.bf16.xpose.msra.mxu0 0
    %644 = vmatprep.subr.bf16.mxu0 0
    %645 = vmatpush1.bf16.xpose.msra.mxu0 0
    %646 = vmatprep.subr.bf16.mxu0 0
    %647 = vmatpush1.bf16.xpose.msra.mxu0 0
    %648 = vmatprep.subr.bf16.mxu0 0
    %649 = vmatpush1.bf16.xpose.msra.mxu0 0
    %650 = vmatprep.subr.bf16.mxu0 0
    %651 = vmatpush1.bf16.xpose.msra.mxu0 %v634
    %652 = vmatprep.subr.bf16.mxu0 0
    %653 = vmatpush2.bf16.xpose.msra.mxu0 0
    %654 = vmatprep.subr.bf16.mxu0 0
    %655 = vmatpush2.bf16.xpose.msra.mxu0 0
    %656 = vmatprep.subr.bf16.mxu0 0
    %657 = vmatpush2.bf16.xpose.msra.mxu0 0
    %658 = vmatprep.subr.bf16.mxu0 0
    %659 = vmatpush2.bf16.xpose.msra.mxu0 0
    %660 = vmatprep.subr.bf16.mxu0 0
    %661 = vmatpush2.bf16.xpose.msra.mxu0 0
    %662 = vmatprep.subr.bf16.mxu0 0
    %663 = vmatpush2.bf16.xpose.msra.mxu0 0
    %664 = vmatprep.subr.bf16.mxu0 0
    %665 = vmatpush2.bf16.xpose.msra.mxu0 0
    %666 = vmatprep.subr.bf16.mxu0 0
    %667 = vmatpush2.bf16.xpose.msra.mxu0 0
    %668 = vmatprep.mubr.bf16.mxu0 0
    %669 = vmatmul.mubr.bf16.gmra.mxu0 %v631
    %v670 = vpop.f32.mrf.mxu0
    %v671 = vadd.f32 0.0, %v670
    %v672 = vpop.f32.mrf.mxu0
    %v673 = vpop.f32.mrf.mxu0
    %v674 = vpop.f32.mrf.mxu0
    %675 = vdwg.mxu0
    %v676 = vmul.f32 %v671, 0.35355338
    %v677 = vld [vmem:[%s1] sm:$0x1]
    %v678 = vlaneseq
    %v679 = vshrl.u32 %v678, 7
    %v680 = vsub.s32 0, %v679
    %v681 = vrot.slane %v677, %v680
    %v682 = vadd.f32 %v676, %v681
    %v683 = vsel %vm148, %v682, -inf
    %684 = vmax.xlane.f32.xlu0 %v683
    %v685 = vpop.xlane.xlu0 %684
    %v686 = vsub.f32 %v682, %v685
    %v687 = vmul.f32 %v686, 1.442695
    %v688 = vpow.pop %v687
    %v689 = vsel %vm148, %v688, 0.0
    %690 = vadd.xlane.f32.xlu0 %v689
    %v691 = vpop.xlane.xlu0 %690
    %v692 = vrcp.pop %v691
    %v693 = vmul.f32 %v688, %v692
    %v694 = vpack.c.bf16 %v693, %v693
    %695 = vrot.lane.b32.xlu0 %v144, 48
    %v696 = vpop.permute.xlu0 %695
    %v698 = vsel %vm148, %v694, 0
    %v701 = vsel %vm219, %v696, 0
    %703 = vmatprep.subr.bf16.mxu0 0
    %704 = vmatpush1.bf16.msra.mxu0 0
    %705 = vmatprep.subr.bf16.mxu0 0
    %706 = vmatpush1.bf16.msra.mxu0 0
    %707 = vmatprep.subr.bf16.mxu0 0
    %708 = vmatpush1.bf16.msra.mxu0 0
    %709 = vmatprep.subr.bf16.mxu0 0
    %710 = vmatpush1.bf16.msra.mxu0 0
    %711 = vmatprep.subr.bf16.mxu0 0
    %712 = vmatpush1.bf16.msra.mxu0 0
    %713 = vmatprep.subr.bf16.mxu0 0
    %714 = vmatpush1.bf16.msra.mxu0 0
    %715 = vmatprep.subr.bf16.mxu0 0
    %716 = vmatpush1.bf16.msra.mxu0 0
    %717 = vmatprep.subr.bf16.mxu0 0
    %718 = vmatpush1.bf16.msra.mxu0 %v701
    %719 = vmatprep.subr.bf16.mxu0 0
    %720 = vmatpush2.bf16.msra.mxu0 0
    %721 = vmatprep.subr.bf16.mxu0 0
    %722 = vmatpush2.bf16.msra.mxu0 0
    %723 = vmatprep.subr.bf16.mxu0 0
    %724 = vmatpush2.bf16.msra.mxu0 0
    %725 = vmatprep.subr.bf16.mxu0 0
    %726 = vmatpush2.bf16.msra.mxu0 0
    %727 = vmatprep.subr.bf16.mxu0 0
    %728 = vmatpush2.bf16.msra.mxu0 0
    %729 = vmatprep.subr.bf16.mxu0 0
    %730 = vmatpush2.bf16.msra.mxu0 0
    %731 = vmatprep.subr.bf16.mxu0 0
    %732 = vmatpush2.bf16.msra.mxu0 0
    %733 = vmatprep.subr.bf16.mxu0 0
    %734 = vmatpush2.bf16.msra.mxu0 0
    %735 = vmatprep.mubr.bf16.mxu0 0
    %736 = vmatmul.mubr.bf16.gmra.mxu0 %v698
    %v737 = vpop.f32.mrf.mxu0
    %v738 = vadd.f32 0.0, %v737
    %v739 = vpop.f32.mrf.mxu0
    %v740 = vpop.f32.mrf.mxu0
    %v741 = vpop.f32.mrf.mxu0
    %742 = vdwg.mxu0
    %744 = vrot.lane.b32.xlu0 %v738, 16
    %v745 = vpop.permute.xlu0 %744
    %vm747 = vcmask 195712
    %748 = vst.msk [vmem:[#allocation2] sm:$0xff] %vm747, %v745
    %749 = vrot.lane.b32.xlu0 %v264, 112
    %v750 = vpop.permute.xlu0 %749
    %751 = vrot.lane.b32.xlu0 %v264, 80
    %v752 = vpop.permute.xlu0 %751
    %v754 = vsel %vm148, %v750, 0
    %v757 = vsel %vm148, %v752, 0
    %759 = vmatprep.subr.bf16.mxu0 0
    %760 = vmatpush1.bf16.xpose.msra.mxu0 0
    %761 = vmatprep.subr.bf16.mxu0 0
    %762 = vmatpush1.bf16.xpose.msra.mxu0 0
    %763 = vmatprep.subr.bf16.mxu0 0
    %764 = vmatpush1.bf16.xpose.msra.mxu0 0
    %765 = vmatprep.subr.bf16.mxu0 0
    %766 = vmatpush1.bf16.xpose.msra.mxu0 0
    %767 = vmatprep.subr.bf16.mxu0 0
    %768 = vmatpush1.bf16.xpose.msra.mxu0 0
    %769 = vmatprep.subr.bf16.mxu0 0
    %770 = vmatpush1.bf16.xpose.msra.mxu0 0
    %771 = vmatprep.subr.bf16.mxu0 0
    %772 = vmatpush1.bf16.xpose.msra.mxu0 0
    %773 = vmatprep.subr.bf16.mxu0 0
    %774 = vmatpush1.bf16.xpose.msra.mxu0 %v757
    %775 = vmatprep.subr.bf16.mxu0 0
    %776 = vmatpush2.bf16.xpose.msra.mxu0 0
    %777 = vmatprep.subr.bf16.mxu0 0
    %778 = vmatpush2.bf16.xpose.msra.mxu0 0
    %779 = vmatprep.subr.bf16.mxu0 0
    %780 = vmatpush2.bf16.xpose.msra.mxu0 0
    %781 = vmatprep.subr.bf16.mxu0 0
    %782 = vmatpush2.bf16.xpose.msra.mxu0 0
    %783 = vmatprep.subr.bf16.mxu0 0
    %784 = vmatpush2.bf16.xpose.msra.mxu0 0
    %785 = vmatprep.subr.bf16.mxu0 0
    %786 = vmatpush2.bf16.xpose.msra.mxu0 0
    %787 = vmatprep.subr.bf16.mxu0 0
    %788 = vmatpush2.bf16.xpose.msra.mxu0 0
    %789 = vmatprep.subr.bf16.mxu0 0
    %790 = vmatpush2.bf16.xpose.msra.mxu0 0
    %791 = vmatprep.mubr.bf16.mxu0 0
    %792 = vmatmul.mubr.bf16.gmra.mxu0 %v754
    %v793 = vpop.f32.mrf.mxu0
    %v794 = vadd.f32 0.0, %v793
    %v795 = vpop.f32.mrf.mxu0
    %v796 = vpop.f32.mrf.mxu0
    %v797 = vpop.f32.mrf.mxu0
    %798 = vdwg.mxu0
    %v799 = vmul.f32 %v794, 0.35355338
    %v800 = vld [vmem:[%s1 + $0x1] sm:$0x1]
    %v801 = vlaneseq
    %v802 = vshrl.u32 %v801, 7
    %v803 = vsub.s32 0, %v802
    %v804 = vrot.slane %v800, %v803
    %v805 = vadd.f32 %v799, %v804
    %v806 = vsel %vm148, %v805, -inf
    %807 = vmax.xlane.f32.xlu0 %v806
    %v808 = vpop.xlane.xlu0 %807
    %v809 = vsub.f32 %v805, %v808
    %v810 = vmul.f32 %v809, 1.442695
    %v811 = vpow.pop %v810
    %v812 = vsel %vm148, %v811, 0.0
    %813 = vadd.xlane.f32.xlu0 %v812
    %v814 = vpop.xlane.xlu0 %813
    %v815 = vrcp.pop %v814
    %v816 = vmul.f32 %v811, %v815
    %v817 = vpack.c.bf16 %v816, %v816
    %818 = vrot.lane.b32.xlu0 %v264, 48
    %v819 = vpop.permute.xlu0 %818
    %v821 = vsel %vm148, %v817, 0
    %v824 = vsel %vm219, %v819, 0
    %826 = vmatprep.subr.bf16.mxu0 0
    %827 = vmatpush1.bf16.msra.mxu0 0
    %828 = vmatprep.subr.bf16.mxu0 0
    %829 = vmatpush1.bf16.msra.mxu0 0
    %830 = vmatprep.subr.bf16.mxu0 0
    %831 = vmatpush1.bf16.msra.mxu0 0
    %832 = vmatprep.subr.bf16.mxu0 0
    %833 = vmatpush1.bf16.msra.mxu0 0
    %834 = vmatprep.subr.bf16.mxu0 0
    %835 = vmatpush1.bf16.msra.mxu0 0
    %836 = vmatprep.subr.bf16.mxu0 0
    %837 = vmatpush1.bf16.msra.mxu0 0
    %838 = vmatprep.subr.bf16.mxu0 0
    %839 = vmatpush1.bf16.msra.mxu0 0
    %840 = vmatprep.subr.bf16.mxu0 0
    %841 = vmatpush1.bf16.msra.mxu0 %v824
    %842 = vmatprep.subr.bf16.mxu0 0
    %843 = vmatpush2.bf16.msra.mxu0 0
    %844 = vmatprep.subr.bf16.mxu0 0
    %845 = vmatpush2.bf16.msra.mxu0 0
    %846 = vmatprep.subr.bf16.mxu0 0
    %847 = vmatpush2.bf16.msra.mxu0 0
    %848 = vmatprep.subr.bf16.mxu0 0
    %849 = vmatpush2.bf16.msra.mxu0 0
    %850 = vmatprep.subr.bf16.mxu0 0
    %851 = vmatpush2.bf16.msra.mxu0 0
    %852 = vmatprep.subr.bf16.mxu0 0
    %853 = vmatpush2.bf16.msra.mxu0 0
    %854 = vmatprep.subr.bf16.mxu0 0
    %855 = vmatpush2.bf16.msra.mxu0 0
    %856 = vmatprep.subr.bf16.mxu0 0
    %857 = vmatpush2.bf16.msra.mxu0 0
    %858 = vmatprep.mubr.bf16.mxu0 0
    %859 = vmatmul.mubr.bf16.gmra.mxu0 %v821
    %v860 = vpop.f32.mrf.mxu0
    %v861 = vadd.f32 0.0, %v860
    %v862 = vpop.f32.mrf.mxu0
    %v863 = vpop.f32.mrf.mxu0
    %v864 = vpop.f32.mrf.mxu0
    %865 = vdwg.mxu0
    %867 = vrot.lane.b32.xlu0 %v861, 16
    %v868 = vpop.permute.xlu0 %867
    %870 = vst.msk [vmem:[#allocation2 + $0x8] sm:$0xff] %vm747, %v868
    %871 = vrot.lane.b32.xlu0 %v144, 104
    %v872 = vpop.permute.xlu0 %871
    %873 = vrot.lane.b32.xlu0 %v144, 72
    %v874 = vpop.permute.xlu0 %873
    %v876 = vsel %vm148, %v872, 0
    %v879 = vsel %vm148, %v874, 0
    %881 = vmatprep.subr.bf16.mxu0 0
    %882 = vmatpush1.bf16.xpose.msra.mxu0 0
    %883 = vmatprep.subr.bf16.mxu0 0
    %884 = vmatpush1.bf16.xpose.msra.mxu0 0
    %885 = vmatprep.subr.bf16.mxu0 0
    %886 = vmatpush1.bf16.xpose.msra.mxu0 0
    %887 = vmatprep.subr.bf16.mxu0 0
    %888 = vmatpush1.bf16.xpose.msra.mxu0 0
    %889 = vmatprep.subr.bf16.mxu0 0
    %890 = vmatpush1.bf16.xpose.msra.mxu0 0
    %891 = vmatprep.subr.bf16.mxu0 0
    %892 = vmatpush1.bf16.xpose.msra.mxu0 0
    %893 = vmatprep.subr.bf16.mxu0 0
    %894 = vmatpush1.bf16.xpose.msra.mxu0 0
    %895 = vmatprep.subr.bf16.mxu0 0
    %896 = vmatpush1.bf16.xpose.msra.mxu0 %v879
    %897 = vmatprep.subr.bf16.mxu0 0
    %898 = vmatpush2.bf16.xpose.msra.mxu0 0
    %899 = vmatprep.subr.bf16.mxu0 0
    %900 = vmatpush2.bf16.xpose.msra.mxu0 0
    %901 = vmatprep.subr.bf16.mxu0 0
    %902 = vmatpush2.bf16.xpose.msra.mxu0 0
    %903 = vmatprep.subr.bf16.mxu0 0
    %904 = vmatpush2.bf16.xpose.msra.mxu0 0
    %905 = vmatprep.subr.bf16.mxu0 0
    %906 = vmatpush2.bf16.xpose.msra.mxu0 0
    %907 = vmatprep.subr.bf16.mxu0 0
    %908 = vmatpush2.bf16.xpose.msra.mxu0 0
    %909 = vmatprep.subr.bf16.mxu0 0
    %910 = vmatpush2.bf16.xpose.msra.mxu0 0
    %911 = vmatprep.subr.bf16.mxu0 0
    %912 = vmatpush2.bf16.xpose.msra.mxu0 0
    %913 = vmatprep.mubr.bf16.mxu0 0
    %914 = vmatmul.mubr.bf16.gmra.mxu0 %v876
    %v915 = vpop.f32.mrf.mxu0
    %v916 = vadd.f32 0.0, %v915
    %v917 = vpop.f32.mrf.mxu0
    %v918 = vpop.f32.mrf.mxu0
    %v919 = vpop.f32.mrf.mxu0
    %920 = vdwg.mxu0
    %v921 = vmul.f32 %v916, 0.35355338
    %v922 = vld [vmem:[%s1] sm:$0x1]
    %v923 = vlaneseq
    %v924 = vshrl.u32 %v923, 7
    %v925 = vsub.s32 0, %v924
    %v926 = vrot.slane %v922, %v925
    %v927 = vadd.f32 %v921, %v926
    %v928 = vsel %vm148, %v927, -inf
    %929 = vmax.xlane.f32.xlu0 %v928
    %v930 = vpop.xlane.xlu0 %929
    %v931 = vsub.f32 %v927, %v930
    %v932 = vmul.f32 %v931, 1.442695
    %v933 = vpow.pop %v932
    %v934 = vsel %vm148, %v933, 0.0
    %935 = vadd.xlane.f32.xlu0 %v934
    %v936 = vpop.xlane.xlu0 %935
    %v937 = vrcp.pop %v936
    %v938 = vmul.f32 %v933, %v937
    %v939 = vpack.c.bf16 %v938, %v938
    %940 = vrot.lane.b32.xlu0 %v144, 40
    %v941 = vpop.permute.xlu0 %940
    %v943 = vsel %vm148, %v939, 0
    %v946 = vsel %vm219, %v941, 0
    %948 = vmatprep.subr.bf16.mxu0 0
    %949 = vmatpush1.bf16.msra.mxu0 0
    %950 = vmatprep.subr.bf16.mxu0 0
    %951 = vmatpush1.bf16.msra.mxu0 0
    %952 = vmatprep.subr.bf16.mxu0 0
    %953 = vmatpush1.bf16.msra.mxu0 0
    %954 = vmatprep.subr.bf16.mxu0 0
    %955 = vmatpush1.bf16.msra.mxu0 0
    %956 = vmatprep.subr.bf16.mxu0 0
    %957 = vmatpush1.bf16.msra.mxu0 0
    %958 = vmatprep.subr.bf16.mxu0 0
    %959 = vmatpush1.bf16.msra.mxu0 0
    %960 = vmatprep.subr.bf16.mxu0 0
    %961 = vmatpush1.bf16.msra.mxu0 0
    %962 = vmatprep.subr.bf16.mxu0 0
    %963 = vmatpush1.bf16.msra.mxu0 %v946
    %964 = vmatprep.subr.bf16.mxu0 0
    %965 = vmatpush2.bf16.msra.mxu0 0
    %966 = vmatprep.subr.bf16.mxu0 0
    %967 = vmatpush2.bf16.msra.mxu0 0
    %968 = vmatprep.subr.bf16.mxu0 0
    %969 = vmatpush2.bf16.msra.mxu0 0
    %970 = vmatprep.subr.bf16.mxu0 0
    %971 = vmatpush2.bf16.msra.mxu0 0
    %972 = vmatprep.subr.bf16.mxu0 0
    %973 = vmatpush2.bf16.msra.mxu0 0
    %974 = vmatprep.subr.bf16.mxu0 0
    %975 = vmatpush2.bf16.msra.mxu0 0
    %976 = vmatprep.subr.bf16.mxu0 0
    %977 = vmatpush2.bf16.msra.mxu0 0
    %978 = vmatprep.subr.bf16.mxu0 0
    %979 = vmatpush2.bf16.msra.mxu0 0
    %980 = vmatprep.mubr.bf16.mxu0 0
    %981 = vmatmul.mubr.bf16.gmra.mxu0 %v943
    %v982 = vpop.f32.mrf.mxu0
    %v983 = vadd.f32 0.0, %v982
    %v984 = vpop.f32.mrf.mxu0
    %v985 = vpop.f32.mrf.mxu0
    %v986 = vpop.f32.mrf.mxu0
    %987 = vdwg.mxu0
    %989 = vrot.lane.b32.xlu0 %v983, 24
    %v990 = vpop.permute.xlu0 %989
    %vm992 = vcmask 261312
    %993 = vst.msk [vmem:[#allocation2] sm:$0xff] %vm992, %v990
    %994 = vrot.lane.b32.xlu0 %v264, 104
    %v995 = vpop.permute.xlu0 %994
    %996 = vrot.lane.b32.xlu0 %v264, 72
    %v997 = vpop.permute.xlu0 %996
    %v999 = vsel %vm148, %v995, 0
    %v1002 = vsel %vm148, %v997, 0
    %1004 = vmatprep.subr.bf16.mxu0 0
    %1005 = vmatpush1.bf16.xpose.msra.mxu0 0
    %1006 = vmatprep.subr.bf16.mxu0 0
    %1007 = vmatpush1.bf16.xpose.msra.mxu0 0
    %1008 = vmatprep.subr.bf16.mxu0 0
    %1009 = vmatpush1.bf16.xpose.msra.mxu0 0
    %1010 = vmatprep.subr.bf16.mxu0 0
    %1011 = vmatpush1.bf16.xpose.msra.mxu0 0
    %1012 = vmatprep.subr.bf16.mxu0 0
    %1013 = vmatpush1.bf16.xpose.msra.mxu0 0
    %1014 = vmatprep.subr.bf16.mxu0 0
    %1015 = vmatpush1.bf16.xpose.msra.mxu0 0
    %1016 = vmatprep.subr.bf16.mxu0 0
    %1017 = vmatpush1.bf16.xpose.msra.mxu0 0
    %1018 = vmatprep.subr.bf16.mxu0 0
    %1019 = vmatpush1.bf16.xpose.msra.mxu0 %v1002
    %1020 = vmatprep.subr.bf16.mxu0 0
    %1021 = vmatpush2.bf16.xpose.msra.mxu0 0
    %1022 = vmatprep.subr.bf16.mxu0 0
    %1023 = vmatpush2.bf16.xpose.msra.mxu0 0
    %1024 = vmatprep.subr.bf16.mxu0 0
    %1025 = vmatpush2.bf16.xpose.msra.mxu0 0
    %1026 = vmatprep.subr.bf16.mxu0 0
    %1027 = vmatpush2.bf16.xpose.msra.mxu0 0
    %1028 = vmatprep.subr.bf16.mxu0 0
    %1029 = vmatpush2.bf16.xpose.msra.mxu0 0
    %1030 = vmatprep.subr.bf16.mxu0 0
    %1031 = vmatpush2.bf16.xpose.msra.mxu0 0
    %1032 = vmatprep.subr.bf16.mxu0 0
    %1033 = vmatpush2.bf16.xpose.msra.mxu0 0
    %1034 = vmatprep.subr.bf16.mxu0 0
    %1035 = vmatpush2.bf16.xpose.msra.mxu0 0
    %1036 = vmatprep.mubr.bf16.mxu0 0
    %1037 = vmatmul.mubr.bf16.gmra.mxu0 %v999
    %v1038 = vpop.f32.mrf.mxu0
    %v1039 = vadd.f32 0.0, %v1038
    %v1040 = vpop.f32.mrf.mxu0
    %v1041 = vpop.f32.mrf.mxu0
    %v1042 = vpop.f32.mrf.mxu0
    %1043 = vdwg.mxu0
    %v1044 = vmul.f32 %v1039, 0.35355338
    %v1045 = vld [vmem:[%s1 + $0x1] sm:$0x1]
    %v1046 = vlaneseq
    %v1047 = vshrl.u32 %v1046, 7
    %v1048 = vsub.s32 0, %v1047
    %v1049 = vrot.slane %v1045, %v1048
    %v1050 = vadd.f32 %v1044, %v1049
    %v1051 = vsel %vm148, %v1050, -inf
    %1052 = vmax.xlane.f32.xlu0 %v1051
    %v1053 = vpop.xlane.xlu0 %1052
    %v1054 = vsub.f32 %v1050, %v1053
    %v1055 = vmul.f32 %v1054, 1.442695
    %v1056 = vpow.pop %v1055
    %v1057 = vsel %vm148, %v1056, 0.0
    %1058 = vadd.xlane.f32.xlu0 %v1057
    %v1059 = vpop.xlane.xlu0 %1058
    %v1060 = vrcp.pop %v1059
    %v1061 = vmul.f32 %v1056, %v1060
    %v1062 = vpack.c.bf16 %v1061, %v1061
    %1063 = vrot.lane.b32.xlu0 %v264, 40
    %v1064 = vpop.permute.xlu0 %1063
    %v1066 = vsel %vm148, %v1062, 0
    %v1069 = vsel %vm219, %v1064, 0
    %1071 = vmatprep.subr.bf16.mxu0 0
    %1072 = vmatpush1.bf16.msra.mxu0 0
    %1073 = vmatprep.subr.bf16.mxu0 0
    %1074 = vmatpush1.bf16.msra.mxu0 0
    %1075 = vmatprep.subr.bf16.mxu0 0
    %1076 = vmatpush1.bf16.msra.mxu0 0
    %1077 = vmatprep.subr.bf16.mxu0 0
    %1078 = vmatpush1.bf16.msra.mxu0 0
    %1079 = vmatprep.subr.bf16.mxu0 0
    %1080 = vmatpush1.bf16.msra.mxu0 0
    %1081 = vmatprep.subr.bf16.mxu0 0
    %1082 = vmatpush1.bf16.msra.mxu0 0
    %1083 = vmatprep.subr.bf16.mxu0 0
    %1084 = vmatpush1.bf16.msra.mxu0 0
    %1085 = vmatprep.subr.bf16.mxu0 0
    %1086 = vmatpush1.bf16.msra.mxu0 %v1069
    %1087 = vmatprep.subr.bf16.mxu0 0
    %1088 = vmatpush2.bf16.msra.mxu0 0
    %1089 = vmatprep.subr.bf16.mxu0 0
    %1090 = vmatpush2.bf16.msra.mxu0 0
    %1091 = vmatprep.subr.bf16.mxu0 0
    %1092 = vmatpush2.bf16.msra.mxu0 0
    %1093 = vmatprep.subr.bf16.mxu0 0
    %1094 = vmatpush2.bf16.msra.mxu0 0
    %1095 = vmatprep.subr.bf16.mxu0 0
    %1096 = vmatpush2.bf16.msra.mxu0 0
    %1097 = vmatprep.subr.bf16.mxu0 0
    %1098 = vmatpush2.bf16.msra.mxu0 0
    %1099 = vmatprep.subr.bf16.mxu0 0
    %1100 = vmatpush2.bf16.msra.mxu0 0
    %1101 = vmatprep.subr.bf16.mxu0 0
    %1102 = vmatpush2.bf16.msra.mxu0 0
    %1103 = vmatprep.mubr.bf16.mxu0 0
    %1104 = vmatmul.mubr.bf16.gmra.mxu0 %v1066
    %v1105 = vpop.f32.mrf.mxu0
    %v1106 = vadd.f32 0.0, %v1105
    %v1107 = vpop.f32.mrf.mxu0
    %v1108 = vpop.f32.mrf.mxu0
    %v1109 = vpop.f32.mrf.mxu0
    %1110 = vdwg.mxu0
    %1112 = vrot.lane.b32.xlu0 %v1106, 24
    %v1113 = vpop.permute.xlu0 %1112
    %1115 = vst.msk [vmem:[#allocation2 + $0x8] sm:$0xff] %vm992, %v1113
    %v1116 = vld [vmem:[#allocation2] sm:$0xff]
    %v1117 = vld [vmem:[#allocation2 + $0x8] sm:$0xff]
    %v1118 = vpack.c.bf16 %v1117, %v1116
    %v1119 = vld [vmem:[%s4] sm:$0xf]
    %v1120 = vld [vmem:[%s4 + $0x4] sm:$0xf]
    %v1121 = vld [vmem:[%s4 + $0x8] sm:$0xf]
    %v1122 = vld [vmem:[%s4 + $0xc] sm:$0xf]
    %v1123 = vld [vmem:[%s2 + $0x3] sm:$0x1]
    %v1124 = vlaneseq
    %v1125 = vshrl.u32 %v1124, 7
    %v1126 = vsub.s32 0, %v1125
    %v1127 = vrot.slane %v1123, %v1126
    %v1132 = vunpack.c.l.b16 %v1119
    %v1133 = vunpack.c.l.b16 %v1120
    %v1134 = vunpack.c.l.b16 %v1121
    %v1135 = vunpack.c.l.b16 %v1122
    %v1136 = vpack.c.b16 %v1133, %v1132
    %v1137 = vpack.c.b16 %v1135, %v1134
    %v1141 = vsel %vm38, %v1118, 0
    %1143 = vmatprep.subr.bf16.mxu0 0
    %1144 = vmatpush1.bf16.msra.mxu0 0
    %1145 = vmatprep.subr.bf16.mxu0 0
    %1146 = vmatpush1.bf16.msra.mxu0 0
    %1147 = vmatprep.subr.bf16.mxu0 0
    %1148 = vmatpush1.bf16.msra.mxu0 0
    %1149 = vmatprep.subr.bf16.mxu0 0
    %1150 = vmatpush1.bf16.msra.mxu0 0
    %1151 = vmatprep.subr.bf16.mxu0 0
    %1152 = vmatpush1.bf16.msra.mxu0 0
    %1153 = vmatprep.subr.bf16.mxu0 0
    %1154 = vmatpush1.bf16.msra.mxu0 0
    %1155 = vmatprep.subr.bf16.mxu0 0
    %1156 = vmatpush1.bf16.msra.mxu0 %v1137
    %1157 = vmatprep.subr.bf16.mxu0 0
    %1158 = vmatpush1.bf16.msra.mxu0 %v1136
    %1159 = vmatprep.subr.bf16.mxu0 0
    %1160 = vmatpush2.bf16.msra.mxu0 0
    %1161 = vmatprep.subr.bf16.mxu0 0
    %1162 = vmatpush2.bf16.msra.mxu0 0
    %1163 = vmatprep.subr.bf16.mxu0 0
    %1164 = vmatpush2.bf16.msra.mxu0 0
    %1165 = vmatprep.subr.bf16.mxu0 0
    %1166 = vmatpush2.bf16.msra.mxu0 0
    %1167 = vmatprep.subr.bf16.mxu0 0
    %1168 = vmatpush2.bf16.msra.mxu0 0
    %1169 = vmatprep.subr.bf16.mxu0 0
    %1170 = vmatpush2.bf16.msra.mxu0 0
    %1171 = vmatprep.subr.bf16.mxu0 0
    %1172 = vmatpush2.bf16.msra.mxu0 0
    %1173 = vmatprep.subr.bf16.mxu0 0
    %1174 = vmatpush2.bf16.msra.mxu0 0
    %1175 = vmatprep.mubr.bf16.mxu0 0
    %1176 = vmatmul.mubr.bf16.gmra.mxu0 %v1141
    %v1177 = vpop.f32.mrf.mxu0
    %v1178 = vadd.f32 %v1127, %v1177
    %v1179 = vpop.f32.mrf.mxu0
    %v1180 = vpop.f32.mrf.mxu0
    %v1181 = vadd.f32 %v1127, %v1180
    %v1182 = vpop.f32.mrf.mxu0
    %1183 = vdwg.mxu0
    %v1184 = vadd.f32 %v76, %v1178
    %v1185 = vadd.f32 %v77, %v1181
    %v1186 = vld [vmem:[%s2 + $0x4] sm:$0x1]
    %v1187 = vld [vmem:[%s2 + $0x5] sm:$0x1]
    %v1188 = vsel %vm38, %v1184, 0.0
    %1189 = vadd.xlane.f32.xlu0 %v1188
    %v1190 = vpop.xlane.xlu0 %1189
    %v1191 = vsel %vm38, %v1185, 0.0
    %1192 = vadd.xlane.f32.xlu0 %v1191
    %v1193 = vpop.xlane.xlu0 %1192
    %v1194 = vmul.f32 %v1190, %v45
    %v1195 = vmul.f32 %v1193, %v45
    %v1196 = vsub.f32 %v1184, %v1194
    %v1197 = vsub.f32 %v1185, %v1195
    %v1198 = vmul.f32 %v1196, %v1196
    %v1199 = vmul.f32 %v1197, %v1197
    %v1200 = vsel %vm38, %v1198, 0.0
    %1201 = vadd.xlane.f32.xlu0 %v1200
    %v1202 = vpop.xlane.xlu0 %1201
    %v1203 = vsel %vm38, %v1199, 0.0
    %1204 = vadd.xlane.f32.xlu0 %v1203
    %v1205 = vpop.xlane.xlu0 %1204
    %v1206 = vmul.f32 %v1202, %v45
    %v1207 = vmul.f32 %v1205, %v45
    %v1208 = vadd.f32 %v1206, 1e-12
    %v1209 = vadd.f32 %v1207, 1e-12
    %v1210 = vrsqrt.pop %v1208
    %v1211 = vrsqrt.pop %v1209
    %v1212 = vmul.f32 %v1196, %v1210
    %v1213 = vmul.f32 %v1197, %v1211
    %v1214 = vlaneseq
    %v1215 = vshrl.u32 %v1214, 7
    %v1216 = vsub.s32 0, %v1215
    %v1217 = vrot.slane %v1186, %v1216
    %v1218 = vmul.f32 %v1212, %v1217
    %v1219 = vmul.f32 %v1213, %v1217
    %v1220 = vlaneseq
    %v1221 = vshrl.u32 %v1220, 7
    %v1222 = vsub.s32 0, %v1221
    %v1223 = vrot.slane %v1187, %v1222
    %v1224 = vadd.f32 %v1218, %v1223
    %v1225 = vadd.f32 %v1219, %v1223
    %v1226 = vpack.c.bf16 %v1225, %v1224
    %v1227 = vld [vmem:[%s5] sm:$0xf]
    %v1228 = vld [vmem:[%s5 + $0x4] sm:$0xf]
    %v1229 = vld [vmem:[%s5 + $0x8] sm:$0xf]
    %v1230 = vld [vmem:[%s5 + $0xc] sm:$0xf]
    %v1231 = vld [vmem:[%s2 + $0x6] sm:$0x1]
    %v1232 = vlaneseq
    %v1233 = vshrl.u32 %v1232, 7
    %v1234 = vsub.s32 0, %v1233
    %v1235 = vrot.slane %v1231, %v1234
    %v1240 = vunpack.c.l.b16 %v1227
    %v1241 = vunpack.c.l.b16 %v1228
    %v1242 = vunpack.c.l.b16 %v1229
    %v1243 = vunpack.c.l.b16 %v1230
    %v1244 = vpack.c.b16 %v1241, %v1240
    %v1245 = vpack.c.b16 %v1243, %v1242
    %v1249 = vsel %vm38, %v1226, 0
    %1251 = vmatprep.subr.bf16.mxu0 0
    %1252 = vmatpush1.bf16.msra.mxu0 0
    %1253 = vmatprep.subr.bf16.mxu0 0
    %1254 = vmatpush1.bf16.msra.mxu0 0
    %1255 = vmatprep.subr.bf16.mxu0 0
    %1256 = vmatpush1.bf16.msra.mxu0 0
    %1257 = vmatprep.subr.bf16.mxu0 0
    %1258 = vmatpush1.bf16.msra.mxu0 0
    %1259 = vmatprep.subr.bf16.mxu0 0
    %1260 = vmatpush1.bf16.msra.mxu0 0
    %1261 = vmatprep.subr.bf16.mxu0 0
    %1262 = vmatpush1.bf16.msra.mxu0 0
    %1263 = vmatprep.subr.bf16.mxu0 0
    %1264 = vmatpush1.bf16.msra.mxu0 %v1245
    %1265 = vmatprep.subr.bf16.mxu0 0
    %1266 = vmatpush1.bf16.msra.mxu0 %v1244
    %1267 = vmatprep.subr.bf16.mxu0 0
    %1268 = vmatpush2.bf16.msra.mxu0 0
    %1269 = vmatprep.subr.bf16.mxu0 0
    %1270 = vmatpush2.bf16.msra.mxu0 0
    %1271 = vmatprep.subr.bf16.mxu0 0
    %1272 = vmatpush2.bf16.msra.mxu0 0
    %1273 = vmatprep.subr.bf16.mxu0 0
    %1274 = vmatpush2.bf16.msra.mxu0 0
    %1275 = vmatprep.subr.bf16.mxu0 0
    %1276 = vmatpush2.bf16.msra.mxu0 0
    %1277 = vmatprep.subr.bf16.mxu0 0
    %1278 = vmatpush2.bf16.msra.mxu0 0
    %1279 = vmatprep.subr.bf16.mxu0 0
    %1280 = vmatpush2.bf16.msra.mxu0 0
    %1281 = vmatprep.subr.bf16.mxu0 0
    %1282 = vmatpush2.bf16.msra.mxu0 0
    %1283 = vmatprep.mubr.bf16.mxu0 0
    %1284 = vmatmul.mubr.bf16.gmra.mxu0 %v1249
    %v1285 = vpop.f32.mrf.mxu0
    %v1286 = vadd.f32 %v1235, %v1285
    %v1287 = vpop.f32.mrf.mxu0
    %v1288 = vpop.f32.mrf.mxu0
    %v1289 = vadd.f32 %v1235, %v1288
    %v1290 = vpop.f32.mrf.mxu0
    %1291 = vdwg.mxu0
    %v1292 = vmul.f32 %v1286, %v1286
    %v1293 = vmul.f32 %v1289, %v1289
    %v1294 = vmul.f32 %v1286, %v1292
    %v1295 = vmul.f32 %v1289, %v1293
    %v1296 = vmul.f32 %v1294, 0.044715
    %v1297 = vmul.f32 %v1295, 0.044715
    %v1298 = vadd.f32 %v1286, %v1296
    %v1299 = vadd.f32 %v1289, %v1297
    %v1300 = vmul.f32 %v1298, 0.7978846
    %v1301 = vmul.f32 %v1299, 0.7978846
    %v1302 = vtanh.pop %v1300
    %v1303 = vtanh.pop %v1301
    %v1304 = vadd.f32 %v1302, 1.0
    %v1305 = vadd.f32 %v1303, 1.0
    %v1306 = vmul.f32 %v1304, 0.5
    %v1307 = vmul.f32 %v1305, 0.5
    %v1308 = vmul.f32 %v1286, %v1306
    %v1309 = vmul.f32 %v1289, %v1307
    %v1310 = vpack.c.bf16 %v1309, %v1308
    %v1311 = vld [vmem:[%s6] sm:$0xf]
    %v1312 = vld [vmem:[%s6 + $0x4] sm:$0xf]
    %v1313 = vld [vmem:[%s6 + $0x8] sm:$0xf]
    %v1314 = vld [vmem:[%s6 + $0xc] sm:$0xf]
    %v1315 = vld [vmem:[%s6 + $0x10] sm:$0xf]
    %v1316 = vld [vmem:[%s6 + $0x14] sm:$0xf]
    %v1317 = vld [vmem:[%s6 + $0x18] sm:$0xf]
    %v1318 = vld [vmem:[%s6 + $0x1c] sm:$0xf]
    %v1319 = vld [vmem:[%s2 + $0x7] sm:$0x1]
    %v1320 = vlaneseq
    %v1321 = vshrl.u32 %v1320, 7
    %v1322 = vsub.s32 0, %v1321
    %v1323 = vrot.slane %v1319, %v1322
    %v1332 = vunpack.c.l.b16 %v1311
    %v1333 = vunpack.c.l.b16 %v1312
    %v1334 = vunpack.c.l.b16 %v1313
    %v1335 = vunpack.c.l.b16 %v1314
    %v1336 = vunpack.c.l.b16 %v1315
    %v1337 = vunpack.c.l.b16 %v1316
    %v1338 = vunpack.c.l.b16 %v1317
    %v1339 = vunpack.c.l.b16 %v1318
    %v1340 = vpack.c.b16 %v1333, %v1332
    %v1341 = vpack.c.b16 %v1335, %v1334
    %v1342 = vpack.c.b16 %v1337, %v1336
    %v1343 = vpack.c.b16 %v1339, %v1338
    %vm1348 = vcmask 523264
    %v1350 = vsel %vm1348, %v1310, 0
    %1352 = vmatprep.subr.bf16.mxu0 0
    %1353 = vmatpush1.bf16.msra.mxu0 0
    %1354 = vmatprep.subr.bf16.mxu0 0
    %1355 = vmatpush1.bf16.msra.mxu0 0
    %1356 = vmatprep.subr.bf16.mxu0 0
    %1357 = vmatpush1.bf16.msra.mxu0 0
    %1358 = vmatprep.subr.bf16.mxu0 0
    %1359 = vmatpush1.bf16.msra.mxu0 0
    %1360 = vmatprep.subr.bf16.mxu0 0
    %1361 = vmatpush1.bf16.msra.mxu0 %v1343
    %1362 = vmatprep.subr.bf16.mxu0 0
    %1363 = vmatpush1.bf16.msra.mxu0 %v1342
    %1364 = vmatprep.subr.bf16.mxu0 0
    %1365 = vmatpush1.bf16.msra.mxu0 %v1341
    %1366 = vmatprep.subr.bf16.mxu0 0
    %1367 = vmatpush1.bf16.msra.mxu0 %v1340
    %1368 = vmatprep.subr.bf16.mxu0 0
    %1369 = vmatpush2.bf16.msra.mxu0 0
    %1370 = vmatprep.subr.bf16.mxu0 0
    %1371 = vmatpush2.bf16.msra.mxu0 0
    %1372 = vmatprep.subr.bf16.mxu0 0
    %1373 = vmatpush2.bf16.msra.mxu0 0
    %1374 = vmatprep.subr.bf16.mxu0 0
    %1375 = vmatpush2.bf16.msra.mxu0 0
    %1376 = vmatprep.subr.bf16.mxu0 0
    %1377 = vmatpush2.bf16.msra.mxu0 0
    %1378 = vmatprep.subr.bf16.mxu0 0
    %1379 = vmatpush2.bf16.msra.mxu0 0
    %1380 = vmatprep.subr.bf16.mxu0 0
    %1381 = vmatpush2.bf16.msra.mxu0 0
    %1382 = vmatprep.subr.bf16.mxu0 0
    %1383 = vmatpush2.bf16.msra.mxu0 0
    %1384 = vmatprep.mubr.bf16.mxu0 0
    %1385 = vmatmul.mubr.bf16.gmra.mxu0 %v1350
    %v1386 = vpop.f32.mrf.mxu0
    %v1387 = vadd.f32 %v1323, %v1386
    %v1388 = vpop.f32.mrf.mxu0
    %v1389 = vpop.f32.mrf.mxu0
    %v1390 = vadd.f32 %v1323, %v1389
    %v1391 = vpop.f32.mrf.mxu0
    %1392 = vdwg.mxu0
    %v1393 = vadd.f32 %v1224, %v1387
    %v1394 = vadd.f32 %v1225, %v1390
    %v1395 = vld [vmem:[%s2 + $0x8] sm:$0x1]
    %v1396 = vld [vmem:[%s2 + $0x9] sm:$0x1]
    %v1397 = vsel %vm38, %v1393, 0.0
    %1398 = vadd.xlane.f32.xlu0 %v1397
    %v1399 = vpop.xlane.xlu0 %1398
    %v1400 = vsel %vm38, %v1394, 0.0
    %1401 = vadd.xlane.f32.xlu0 %v1400
    %v1402 = vpop.xlane.xlu0 %1401
    %v1403 = vmul.f32 %v1399, %v45
    %v1404 = vmul.f32 %v1402, %v45
    %v1405 = vsub.f32 %v1393, %v1403
    %v1406 = vsub.f32 %v1394, %v1404
    %v1407 = vmul.f32 %v1405, %v1405
    %v1408 = vmul.f32 %v1406, %v1406
    %v1409 = vsel %vm38, %v1407, 0.0
    %1410 = vadd.xlane.f32.xlu0 %v1409
    %v1411 = vpop.xlane.xlu0 %1410
    %v1412 = vsel %vm38, %v1408, 0.0
    %1413 = vadd.xlane.f32.xlu0 %v1412
    %v1414 = vpop.xlane.xlu0 %1413
    %v1415 = vmul.f32 %v1411, %v45
    %v1416 = vmul.f32 %v1414, %v45
    %v1417 = vadd.f32 %v1415, 1e-12
    %v1418 = vadd.f32 %v1416, 1e-12
    %v1419 = vrsqrt.pop %v1417
    %v1420 = vrsqrt.pop %v1418
    %v1421 = vmul.f32 %v1405, %v1419
    %v1422 = vmul.f32 %v1406, %v1420
    %v1423 = vlaneseq
    %v1424 = vshrl.u32 %v1423, 7
    %v1425 = vsub.s32 0, %v1424
    %v1426 = vrot.slane %v1395, %v1425
    %v1427 = vmul.f32 %v1421, %v1426
    %v1428 = vmul.f32 %v1422, %v1426
    %v1429 = vlaneseq
    %v1430 = vshrl.u32 %v1429, 7
    %v1431 = vsub.s32 0, %v1430
    %v1432 = vrot.slane %v1396, %v1431
    %v1433 = vadd.f32 %v1427, %v1432
    %v1434 = vadd.f32 %v1428, %v1432
    %v1435 = vpack.c.bf16 %v1434, %v1433
    %s1436 = scalar_lea.vmem %s3, 16
    %v1437 = vld [vmem:[%s1436] sm:$0xf]
    %v1438 = vld [vmem:[%s1436 + $0x4] sm:$0xf]
    %v1439 = vld [vmem:[%s1436 + $0x8] sm:$0xf]
    %v1440 = vld [vmem:[%s1436 + $0xc] sm:$0xf]
    %v1441 = vld [vmem:[%s2 + $0xa] sm:$0x1]
    %v1442 = vlaneseq
    %v1443 = vshrl.u32 %v1442, 7
    %v1444 = vsub.s32 0, %v1443
    %v1445 = vrot.slane %v1441, %v1444
    %v1450 = vunpack.c.l.b16 %v1437
    %v1451 = vunpack.c.l.b16 %v1438
    %v1452 = vunpack.c.l.b16 %v1439
    %v1453 = vunpack.c.l.b16 %v1440
    %v1454 = vpack.c.b16 %v1451, %v1450
    %v1455 = vpack.c.b16 %v1453, %v1452
    %v1459 = vsel %vm38, %v1435, 0
    %1461 = vmatprep.subr.bf16.mxu0 0
    %1462 = vmatpush1.bf16.msra.mxu0 0
    %1463 = vmatprep.subr.bf16.mxu0 0
    %1464 = vmatpush1.bf16.msra.mxu0 0
    %1465 = vmatprep.subr.bf16.mxu0 0
    %1466 = vmatpush1.bf16.msra.mxu0 0
    %1467 = vmatprep.subr.bf16.mxu0 0
    %1468 = vmatpush1.bf16.msra.mxu0 0
    %1469 = vmatprep.subr.bf16.mxu0 0
    %1470 = vmatpush1.bf16.msra.mxu0 0
    %1471 = vmatprep.subr.bf16.mxu0 0
    %1472 = vmatpush1.bf16.msra.mxu0 0
    %1473 = vmatprep.subr.bf16.mxu0 0
    %1474 = vmatpush1.bf16.msra.mxu0 %v1455
    %1475 = vmatprep.subr.bf16.mxu0 0
    %1476 = vmatpush1.bf16.msra.mxu0 %v1454
    %1477 = vmatprep.subr.bf16.mxu0 0
    %1478 = vmatpush2.bf16.msra.mxu0 0
    %1479 = vmatprep.subr.bf16.mxu0 0
    %1480 = vmatpush2.bf16.msra.mxu0 0
    %1481 = vmatprep.subr.bf16.mxu0 0
    %1482 = vmatpush2.bf16.msra.mxu0 0
    %1483 = vmatprep.subr.bf16.mxu0 0
    %1484 = vmatpush2.bf16.msra.mxu0 0
    %1485 = vmatprep.subr.bf16.mxu0 0
    %1486 = vmatpush2.bf16.msra.mxu0 0
    %1487 = vmatprep.subr.bf16.mxu0 0
    %1488 = vmatpush2.bf16.msra.mxu0 0
    %1489 = vmatprep.subr.bf16.mxu0 0
    %1490 = vmatpush2.bf16.msra.mxu0 0
    %1491 = vmatprep.subr.bf16.mxu0 0
    %1492 = vmatpush2.bf16.msra.mxu0 0
    %1493 = vmatprep.mubr.bf16.mxu0 0
    %1494 = vmatmul.mubr.bf16.gmra.mxu0 %v1459
    %v1495 = vpop.f32.mrf.mxu0
    %v1496 = vadd.f32 %v1445, %v1495
    %v1497 = vpop.f32.mrf.mxu0
    %v1498 = vpop.f32.mrf.mxu0
    %v1499 = vadd.f32 %v1445, %v1498
    %v1500 = vpop.f32.mrf.mxu0
    %1501 = vdwg.mxu0
    %v1502 = vpack.c.bf16 %v1499, %v1496
    %1504 = vrot.lane.b32.xlu0 %v1502, 96
    %v1505 = vpop.permute.xlu0 %1504
    %v1507 = vsel %vm148, %v1502, 0
    %v1510 = vsel %vm148, %v1505, 0
    %1512 = vmatprep.subr.bf16.mxu0 0
    %1513 = vmatpush1.bf16.xpose.msra.mxu0 0
    %1514 = vmatprep.subr.bf16.mxu0 0
    %1515 = vmatpush1.bf16.xpose.msra.mxu0 0
    %1516 = vmatprep.subr.bf16.mxu0 0
    %1517 = vmatpush1.bf16.xpose.msra.mxu0 0
    %1518 = vmatprep.subr.bf16.mxu0 0
    %1519 = vmatpush1.bf16.xpose.msra.mxu0 0
    %1520 = vmatprep.subr.bf16.mxu0 0
    %1521 = vmatpush1.bf16.xpose.msra.mxu0 0
    %1522 = vmatprep.subr.bf16.mxu0 0
    %1523 = vmatpush1.bf16.xpose.msra.mxu0 0
    %1524 = vmatprep.subr.bf16.mxu0 0
    %1525 = vmatpush1.bf16.xpose.msra.mxu0 0
    %1526 = vmatprep.subr.bf16.mxu0 0
    %1527 = vmatpush1.bf16.xpose.msra.mxu0 %v1510
    %1528 = vmatprep.subr.bf16.mxu0 0
    %1529 = vmatpush2.bf16.xpose.msra.mxu0 0
    %1530 = vmatprep.subr.bf16.mxu0 0
    %1531 = vmatpush2.bf16.xpose.msra.mxu0 0
    %1532 = vmatprep.subr.bf16.mxu0 0
    %1533 = vmatpush2.bf16.xpose.msra.mxu0 0
    %1534 = vmatprep.subr.bf16.mxu0 0
    %1535 = vmatpush2.bf16.xpose.msra.mxu0 0
    %1536 = vmatprep.subr.bf16.mxu0 0
    %1537 = vmatpush2.bf16.xpose.msra.mxu0 0
    %1538 = vmatprep.subr.bf16.mxu0 0
    %1539 = vmatpush2.bf16.xpose.msra.mxu0 0
    %1540 = vmatprep.subr.bf16.mxu0 0
    %1541 = vmatpush2.bf16.xpose.msra.mxu0 0
    %1542 = vmatprep.subr.bf16.mxu0 0
    %1543 = vmatpush2.bf16.xpose.msra.mxu0 0
    %1544 = vmatprep.mubr.bf16.mxu0 0
    %1545 = vmatmul.mubr.bf16.gmra.mxu0 %v1507
    %v1546 = vpop.f32.mrf.mxu0
    %v1547 = vadd.f32 0.0, %v1546
    %v1548 = vpop.f32.mrf.mxu0
    %v1549 = vpop.f32.mrf.mxu0
    %v1550 = vpop.f32.mrf.mxu0
    %1551 = vdwg.mxu0
    %v1552 = vmul.f32 %v1547, 0.35355338
    %v1553 = vld [vmem:[%s1] sm:$0x1]
    %v1554 = vlaneseq
    %v1555 = vshrl.u32 %v1554, 7
    %v1556 = vsub.s32 0, %v1555
    %v1557 = vrot.slane %v1553, %v1556
    %v1558 = vadd.f32 %v1552, %v1557
    %v1559 = vsel %vm148, %v1558, -inf
    %1560 = vmax.xlane.f32.xlu0 %v1559
    %v1561 = vpop.xlane.xlu0 %1560
    %v1562 = vsub.f32 %v1558, %v1561
    %v1563 = vmul.f32 %v1562, 1.442695
    %v1564 = vpow.pop %v1563
    %v1565 = vsel %vm148, %v1564, 0.0
    %1566 = vadd.xlane.f32.xlu0 %v1565
    %v1567 = vpop.xlane.xlu0 %1566
    %v1568 = vrcp.pop %v1567
    %v1569 = vmul.f32 %v1564, %v1568
    %v1570 = vpack.c.bf16 %v1569, %v1569
    %1571 = vrot.lane.b32.xlu0 %v1502, 64
    %v1572 = vpop.permute.xlu0 %1571
    %v1574 = vsel %vm148, %v1570, 0
    %v1577 = vsel %vm219, %v1572, 0
    %1579 = vmatprep.subr.bf16.mxu0 0
    %1580 = vmatpush1.bf16.msra.mxu0 0
    %1581 = vmatprep.subr.bf16.mxu0 0
    %1582 = vmatpush1.bf16.msra.mxu0 0
    %1583 = vmatprep.subr.bf16.mxu0 0
    %1584 = vmatpush1.bf16.msra.mxu0 0
    %1585 = vmatprep.subr.bf16.mxu0 0
    %1586 = vmatpush1.bf16.msra.mxu0 0
    %1587 = vmatprep.subr.bf16.mxu0 0
    %1588 = vmatpush1.bf16.msra.mxu0 0
    %1589 = vmatprep.subr.bf16.mxu0 0
    %1590 = vmatpush1.bf16.msra.mxu0 0
    %1591 = vmatprep.subr.bf16.mxu0 0
    %1592 = vmatpush1.bf16.msra.mxu0 0
    %1593 = vmatprep.subr.bf16.mxu0 0
    %1594 = vmatpush1.bf16.msra.mxu0 %v1577
    %1595 = vmatprep.subr.bf16.mxu0 0
    %1596 = vmatpush2.bf16.msra.mxu0 0
    %1597 = vmatprep.subr.bf16.mxu0 0
    %1598 = vmatpush2.bf16.msra.mxu0 0
    %1599 = vmatprep.subr.bf16.mxu0 0
    %1600 = vmatpush2.bf16.msra.mxu0 0
    %1601 = vmatprep.subr.bf16.mxu0 0
    %1602 = vmatpush2.bf16.msra.mxu0 0
    %1603 = vmatprep.subr.bf16.mxu0 0
    %1604 = vmatpush2.bf16.msra.mxu0 0
    %1605 = vmatprep.subr.bf16.mxu0 0
    %1606 = vmatpush2.bf16.msra.mxu0 0
    %1607 = vmatprep.subr.bf16.mxu0 0
    %1608 = vmatpush2.bf16.msra.mxu0 0
    %1609 = vmatprep.subr.bf16.mxu0 0
    %1610 = vmatpush2.bf16.msra.mxu0 0
    %1611 = vmatprep.mubr.bf16.mxu0 0
    %1612 = vmatmul.mubr.bf16.gmra.mxu0 %v1574
    %v1613 = vpop.f32.mrf.mxu0
    %v1614 = vadd.f32 0.0, %v1613
    %v1615 = vpop.f32.mrf.mxu0
    %v1616 = vpop.f32.mrf.mxu0
    %v1617 = vpop.f32.mrf.mxu0
    %1618 = vdwg.mxu0
    %1619 = vst.msk [vmem:[#allocation2] sm:$0xff] %vm148, %v1614
    %v1620 = vrot.slane %v1502, 4
    %1621 = vrot.lane.b32.xlu0 %v1620, 96
    %v1622 = vpop.permute.xlu0 %1621
    %v1624 = vsel %vm148, %v1620, 0
    %v1627 = vsel %vm148, %v1622, 0
    %1629 = vmatprep.subr.bf16.mxu0 0
    %1630 = vmatpush1.bf16.xpose.msra.mxu0 0
    %1631 = vmatprep.subr.bf16.mxu0 0
    %1632 = vmatpush1.bf16.xpose.msra.mxu0 0
    %1633 = vmatprep.subr.bf16.mxu0 0
    %1634 = vmatpush1.bf16.xpose.msra.mxu0 0
    %1635 = vmatprep.subr.bf16.mxu0 0
    %1636 = vmatpush1.bf16.xpose.msra.mxu0 0
    %1637 = vmatprep.subr.bf16.mxu0 0
    %1638 = vmatpush1.bf16.xpose.msra.mxu0 0
    %1639 = vmatprep.subr.bf16.mxu0 0
    %1640 = vmatpush1.bf16.xpose.msra.mxu0 0
    %1641 = vmatprep.subr.bf16.mxu0 0
    %1642 = vmatpush1.bf16.xpose.msra.mxu0 0
    %1643 = vmatprep.subr.bf16.mxu0 0
    %1644 = vmatpush1.bf16.xpose.msra.mxu0 %v1627
    %1645 = vmatprep.subr.bf16.mxu0 0
    %1646 = vmatpush2.bf16.xpose.msra.mxu0 0
    %1647 = vmatprep.subr.bf16.mxu0 0
    %1648 = vmatpush2.bf16.xpose.msra.mxu0 0
    %1649 = vmatprep.subr.bf16.mxu0 0
    %1650 = vmatpush2.bf16.xpose.msra.mxu0 0
    %1651 = vmatprep.subr.bf16.mxu0 0
    %1652 = vmatpush2.bf16.xpose.msra.mxu0 0
    %1653 = vmatprep.subr.bf16.mxu0 0
    %1654 = vmatpush2.bf16.xpose.msra.mxu0 0
    %1655 = vmatprep.subr.bf16.mxu0 0
    %1656 = vmatpush2.bf16.xpose.msra.mxu0 0
    %1657 = vmatprep.subr.bf16.mxu0 0
    %1658 = vmatpush2.bf16.xpose.msra.mxu0 0
    %1659 = vmatprep.subr.bf16.mxu0 0
    %1660 = vmatpush2.bf16.xpose.msra.mxu0 0
    %1661 = vmatprep.mubr.bf16.mxu0 0
    %1662 = vmatmul.mubr.bf16.gmra.mxu0 %v1624
    %v1663 = vpop.f32.mrf.mxu0
    %v1664 = vadd.f32 0.0, %v1663
    %v1665 = vpop.f32.mrf.mxu0
    %v1666 = vpop.f32.mrf.mxu0
    %v1667 = vpop.f32.mrf.mxu0
    %1668 = vdwg.mxu0
    %v1669 = vmul.f32 %v1664, 0.35355338
    %v1670 = vld [vmem:[%s1 + $0x1] sm:$0x1]
    %v1671 = vlaneseq
    %v1672 = vshrl.u32 %v1671, 7
    %v1673 = vsub.s32 0, %v1672
    %v1674 = vrot.slane %v1670, %v1673
    %v1675 = vadd.f32 %v1669, %v1674
    %v1676 = vsel %vm148, %v1675, -inf
    %1677 = vmax.xlane.f32.xlu0 %v1676
    %v1678 = vpop.xlane.xlu0 %1677
    %v1679 = vsub.f32 %v1675, %v1678
    %v1680 = vmul.f32 %v1679, 1.442695
    %v1681 = vpow.pop %v1680
    %v1682 = vsel %vm148, %v1681, 0.0
    %1683 = vadd.xlane.f32.xlu0 %v1682
    %v1684 = vpop.xlane.xlu0 %1683
    %v1685 = vrcp.pop %v1684
    %v1686 = vmul.f32 %v1681, %v1685
    %v1687 = vpack.c.bf16 %v1686, %v1686
    %1688 = vrot.lane.b32.xlu0 %v1620, 64
    %v1689 = vpop.permute.xlu0 %1688
    %v1691 = vsel %vm148, %v1687, 0
    %v1694 = vsel %vm219, %v1689, 0
    %1696 = vmatprep.subr.bf16.mxu0 0
    %1697 = vmatpush1.bf16.msra.mxu0 0
    %1698 = vmatprep.subr.bf16.mxu0 0
    %1699 = vmatpush1.bf16.msra.mxu0 0
    %1700 = vmatprep.subr.bf16.mxu0 0
    %1701 = vmatpush1.bf16.msra.mxu0 0
    %1702 = vmatprep.subr.bf16.mxu0 0
    %1703 = vmatpush1.bf16.msra.mxu0 0
    %1704 = vmatprep.subr.bf16.mxu0 0
    %1705 = vmatpush1.bf16.msra.mxu0 0
    %1706 = vmatprep.subr.bf16.mxu0 0
    %1707 = vmatpush1.bf16.msra.mxu0 0
    %1708 = vmatprep.subr.bf16.mxu0 0
    %1709 = vmatpush1.bf16.msra.mxu0 0
    %1710 = vmatprep.subr.bf16.mxu0 0
    %1711 = vmatpush1.bf16.msra.mxu0 %v1694
    %1712 = vmatprep.subr.bf16.mxu0 0
    %1713 = vmatpush2.bf16.msra.mxu0 0
    %1714 = vmatprep.subr.bf16.mxu0 0
    %1715 = vmatpush2.bf16.msra.mxu0 0
    %1716 = vmatprep.subr.bf16.mxu0 0
    %1717 = vmatpush2.bf16.msra.mxu0 0
    %1718 = vmatprep.subr.bf16.mxu0 0
    %1719 = vmatpush2.bf16.msra.mxu0 0
    %1720 = vmatprep.subr.bf16.mxu0 0
    %1721 = vmatpush2.bf16.msra.mxu0 0
    %1722 = vmatprep.subr.bf16.mxu0 0
    %1723 = vmatpush2.bf16.msra.mxu0 0
    %1724 = vmatprep.subr.bf16.mxu0 0
    %1725 = vmatpush2.bf16.msra.mxu0 0
    %1726 = vmatprep.subr.bf16.mxu0 0
    %1727 = vmatpush2.bf16.msra.mxu0 0
    %1728 = vmatprep.mubr.bf16.mxu0 0
    %1729 = vmatmul.mubr.bf16.gmra.mxu0 %v1691
    %v1730 = vpop.f32.mrf.mxu0
    %v1731 = vadd.f32 0.0, %v1730
    %v1732 = vpop.f32.mrf.mxu0
    %v1733 = vpop.f32.mrf.mxu0
    %v1734 = vpop.f32.mrf.mxu0
    %1735 = vdwg.mxu0
    %1736 = vst.msk [vmem:[#allocation2 + $0x8] sm:$0xff] %vm148, %v1731
    %1737 = vrot.lane.b32.xlu0 %v1502, 120
    %v1738 = vpop.permute.xlu0 %1737
    %1739 = vrot.lane.b32.xlu0 %v1502, 88
    %v1740 = vpop.permute.xlu0 %1739
    %v1742 = vsel %vm148, %v1738, 0
    %v1745 = vsel %vm148, %v1740, 0
    %1747 = vmatprep.subr.bf16.mxu0 0
    %1748 = vmatpush1.bf16.xpose.msra.mxu0 0
    %1749 = vmatprep.subr.bf16.mxu0 0
    %1750 = vmatpush1.bf16.xpose.msra.mxu0 0
    %1751 = vmatprep.subr.bf16.mxu0 0
    %1752 = vmatpush1.bf16.xpose.msra.mxu0 0
    %1753 = vmatprep.subr.bf16.mxu0 0
    %1754 = vmatpush1.bf16.xpose.msra.mxu0 0
    %1755 = vmatprep.subr.bf16.mxu0 0
    %1756 = vmatpush1.bf16.xpose.msra.mxu0 0
    %1757 = vmatprep.subr.bf16.mxu0 0
    %1758 = vmatpush1.bf16.xpose.msra.mxu0 0
    %1759 = vmatprep.subr.bf16.mxu0 0
    %1760 = vmatpush1.bf16.xpose.msra.mxu0 0
    %1761 = vmatprep.subr.bf16.mxu0 0
    %1762 = vmatpush1.bf16.xpose.msra.mxu0 %v1745
    %1763 = vmatprep.subr.bf16.mxu0 0
    %1764 = vmatpush2.bf16.xpose.msra.mxu0 0
    %1765 = vmatprep.subr.bf16.mxu0 0
    %1766 = vmatpush2.bf16.xpose.msra.mxu0 0
    %1767 = vmatprep.subr.bf16.mxu0 0
    %1768 = vmatpush2.bf16.xpose.msra.mxu0 0
    %1769 = vmatprep.subr.bf16.mxu0 0
    %1770 = vmatpush2.bf16.xpose.msra.mxu0 0
    %1771 = vmatprep.subr.bf16.mxu0 0
    %1772 = vmatpush2.bf16.xpose.msra.mxu0 0
    %1773 = vmatprep.subr.bf16.mxu0 0
    %1774 = vmatpush2.bf16.xpose.msra.mxu0 0
    %1775 = vmatprep.subr.bf16.mxu0 0
    %1776 = vmatpush2.bf16.xpose.msra.mxu0 0
    %1777 = vmatprep.subr.bf16.mxu0 0
    %1778 = vmatpush2.bf16.xpose.msra.mxu0 0
    %1779 = vmatprep.mubr.bf16.mxu0 0
    %1780 = vmatmul.mubr.bf16.gmra.mxu0 %v1742
    %v1781 = vpop.f32.mrf.mxu0
    %v1782 = vadd.f32 0.0, %v1781
    %v1783 = vpop.f32.mrf.mxu0
    %v1784 = vpop.f32.mrf.mxu0
    %v1785 = vpop.f32.mrf.mxu0
    %1786 = vdwg.mxu0
    %v1787 = vmul.f32 %v1782, 0.35355338
    %v1788 = vld [vmem:[%s1] sm:$0x1]
    %v1789 = vlaneseq
    %v1790 = vshrl.u32 %v1789, 7
    %v1791 = vsub.s32 0, %v1790
    %v1792 = vrot.slane %v1788, %v1791
    %v1793 = vadd.f32 %v1787, %v1792
    %v1794 = vsel %vm148, %v1793, -inf
    %1795 = vmax.xlane.f32.xlu0 %v1794
    %v1796 = vpop.xlane.xlu0 %1795
    %v1797 = vsub.f32 %v1793, %v1796
    %v1798 = vmul.f32 %v1797, 1.442695
    %v1799 = vpow.pop %v1798
    %v1800 = vsel %vm148, %v1799, 0.0
    %1801 = vadd.xlane.f32.xlu0 %v1800
    %v1802 = vpop.xlane.xlu0 %1801
    %v1803 = vrcp.pop %v1802
    %v1804 = vmul.f32 %v1799, %v1803
    %v1805 = vpack.c.bf16 %v1804, %v1804
    %1806 = vrot.lane.b32.xlu0 %v1502, 56
    %v1807 = vpop.permute.xlu0 %1806
    %v1809 = vsel %vm148, %v1805, 0
    %v1812 = vsel %vm219, %v1807, 0
    %1814 = vmatprep.subr.bf16.mxu0 0
    %1815 = vmatpush1.bf16.msra.mxu0 0
    %1816 = vmatprep.subr.bf16.mxu0 0
    %1817 = vmatpush1.bf16.msra.mxu0 0
    %1818 = vmatprep.subr.bf16.mxu0 0
    %1819 = vmatpush1.bf16.msra.mxu0 0
    %1820 = vmatprep.subr.bf16.mxu0 0
    %1821 = vmatpush1.bf16.msra.mxu0 0
    %1822 = vmatprep.subr.bf16.mxu0 0
    %1823 = vmatpush1.bf16.msra.mxu0 0
    %1824 = vmatprep.subr.bf16.mxu0 0
    %1825 = vmatpush1.bf16.msra.mxu0 0
    %1826 = vmatprep.subr.bf16.mxu0 0
    %1827 = vmatpush1.bf16.msra.mxu0 0
    %1828 = vmatprep.subr.bf16.mxu0 0
    %1829 = vmatpush1.bf16.msra.mxu0 %v1812
    %1830 = vmatprep.subr.bf16.mxu0 0
    %1831 = vmatpush2.bf16.msra.mxu0 0
    %1832 = vmatprep.subr.bf16.mxu0 0
    %1833 = vmatpush2.bf16.msra.mxu0 0
    %1834 = vmatprep.subr.bf16.mxu0 0
    %1835 = vmatpush2.bf16.msra.mxu0 0
    %1836 = vmatprep.subr.bf16.mxu0 0
    %1837 = vmatpush2.bf16.msra.mxu0 0
    %1838 = vmatprep.subr.bf16.mxu0 0
    %1839 = vmatpush2.bf16.msra.mxu0 0
    %1840 = vmatprep.subr.bf16.mxu0 0
    %1841 = vmatpush2.bf16.msra.mxu0 0
    %1842 = vmatprep.subr.bf16.mxu0 0
    %1843 = vmatpush2.bf16.msra.mxu0 0
    %1844 = vmatprep.subr.bf16.mxu0 0
    %1845 = vmatpush2.bf16.msra.mxu0 0
    %1846 = vmatprep.mubr.bf16.mxu0 0
    %1847 = vmatmul.mubr.bf16.gmra.mxu0 %v1809
    %v1848 = vpop.f32.mrf.mxu0
    %v1849 = vadd.f32 0.0, %v1848
    %v1850 = vpop.f32.mrf.mxu0
    %v1851 = vpop.f32.mrf.mxu0
    %v1852 = vpop.f32.mrf.mxu0
    %1853 = vdwg.mxu0
    %1855 = vrot.lane.b32.xlu0 %v1849, 8
    %v1856 = vpop.permute.xlu0 %1855
    %1858 = vst.msk [vmem:[#allocation2] sm:$0xff] %vm502, %v1856
    %1859 = vrot.lane.b32.xlu0 %v1620, 120
    %v1860 = vpop.permute.xlu0 %1859
    %1861 = vrot.lane.b32.xlu0 %v1620, 88
    %v1862 = vpop.permute.xlu0 %1861
    %v1864 = vsel %vm148, %v1860, 0
    %v1867 = vsel %vm148, %v1862, 0
    %1869 = vmatprep.subr.bf16.mxu0 0
    %1870 = vmatpush1.bf16.xpose.msra.mxu0 0
    %1871 = vmatprep.subr.bf16.mxu0 0
    %1872 = vmatpush1.bf16.xpose.msra.mxu0 0
    %1873 = vmatprep.subr.bf16.mxu0 0
    %1874 = vmatpush1.bf16.xpose.msra.mxu0 0
    %1875 = vmatprep.subr.bf16.mxu0 0
    %1876 = vmatpush1.bf16.xpose.msra.mxu0 0
    %1877 = vmatprep.subr.bf16.mxu0 0
    %1878 = vmatpush1.bf16.xpose.msra.mxu0 0
    %1879 = vmatprep.subr.bf16.mxu0 0
    %1880 = vmatpush1.bf16.xpose.msra.mxu0 0
    %1881 = vmatprep.subr.bf16.mxu0 0
    %1882 = vmatpush1.bf16.xpose.msra.mxu0 0
    %1883 = vmatprep.subr.bf16.mxu0 0
    %1884 = vmatpush1.bf16.xpose.msra.mxu0 %v1867
    %1885 = vmatprep.subr.bf16.mxu0 0
    %1886 = vmatpush2.bf16.xpose.msra.mxu0 0
    %1887 = vmatprep.subr.bf16.mxu0 0
    %1888 = vmatpush2.bf16.xpose.msra.mxu0 0
    %1889 = vmatprep.subr.bf16.mxu0 0
    %1890 = vmatpush2.bf16.xpose.msra.mxu0 0
    %1891 = vmatprep.subr.bf16.mxu0 0
    %1892 = vmatpush2.bf16.xpose.msra.mxu0 0
    %1893 = vmatprep.subr.bf16.mxu0 0
    %1894 = vmatpush2.bf16.xpose.msra.mxu0 0
    %1895 = vmatprep.subr.bf16.mxu0 0
    %1896 = vmatpush2.bf16.xpose.msra.mxu0 0
    %1897 = vmatprep.subr.bf16.mxu0 0
    %1898 = vmatpush2.bf16.xpose.msra.mxu0 0
    %1899 = vmatprep.subr.bf16.mxu0 0
    %1900 = vmatpush2.bf16.xpose.msra.mxu0 0
    %1901 = vmatprep.mubr.bf16.mxu0 0
    %1902 = vmatmul.mubr.bf16.gmra.mxu0 %v1864
    %v1903 = vpop.f32.mrf.mxu0
    %v1904 = vadd.f32 0.0, %v1903
    %v1905 = vpop.f32.mrf.mxu0
    %v1906 = vpop.f32.mrf.mxu0
    %v1907 = vpop.f32.mrf.mxu0
    %1908 = vdwg.mxu0
    %v1909 = vmul.f32 %v1904, 0.35355338
    %v1910 = vld [vmem:[%s1 + $0x1] sm:$0x1]
    %v1911 = vlaneseq
    %v1912 = vshrl.u32 %v1911, 7
    %v1913 = vsub.s32 0, %v1912
    %v1914 = vrot.slane %v1910, %v1913
    %v1915 = vadd.f32 %v1909, %v1914
    %v1916 = vsel %vm148, %v1915, -inf
    %1917 = vmax.xlane.f32.xlu0 %v1916
    %v1918 = vpop.xlane.xlu0 %1917
    %v1919 = vsub.f32 %v1915, %v1918
    %v1920 = vmul.f32 %v1919, 1.442695
    %v1921 = vpow.pop %v1920
    %v1922 = vsel %vm148, %v1921, 0.0
    %1923 = vadd.xlane.f32.xlu0 %v1922
    %v1924 = vpop.xlane.xlu0 %1923
    %v1925 = vrcp.pop %v1924
    %v1926 = vmul.f32 %v1921, %v1925
    %v1927 = vpack.c.bf16 %v1926, %v1926
    %1928 = vrot.lane.b32.xlu0 %v1620, 56
    %v1929 = vpop.permute.xlu0 %1928
    %v1931 = vsel %vm148, %v1927, 0
    %v1934 = vsel %vm219, %v1929, 0
    %1936 = vmatprep.subr.bf16.mxu0 0
    %1937 = vmatpush1.bf16.msra.mxu0 0
    %1938 = vmatprep.subr.bf16.mxu0 0
    %1939 = vmatpush1.bf16.msra.mxu0 0
    %1940 = vmatprep.subr.bf16.mxu0 0
    %1941 = vmatpush1.bf16.msra.mxu0 0
    %1942 = vmatprep.subr.bf16.mxu0 0
    %1943 = vmatpush1.bf16.msra.mxu0 0
    %1944 = vmatprep.subr.bf16.mxu0 0
    %1945 = vmatpush1.bf16.msra.mxu0 0
    %1946 = vmatprep.subr.bf16.mxu0 0
    %1947 = vmatpush1.bf16.msra.mxu0 0
    %1948 = vmatprep.subr.bf16.mxu0 0
    %1949 = vmatpush1.bf16.msra.mxu0 0
    %1950 = vmatprep.subr.bf16.mxu0 0
    %1951 = vmatpush1.bf16.msra.mxu0 %v1934
    %1952 = vmatprep.subr.bf16.mxu0 0
    %1953 = vmatpush2.bf16.msra.mxu0 0
    %1954 = vmatprep.subr.bf16.mxu0 0
    %1955 = vmatpush2.bf16.msra.mxu0 0
    %1956 = vmatprep.subr.bf16.mxu0 0
    %1957 = vmatpush2.bf16.msra.mxu0 0
    %1958 = vmatprep.subr.bf16.mxu0 0
    %1959 = vmatpush2.bf16.msra.mxu0 0
    %1960 = vmatprep.subr.bf16.mxu0 0
    %1961 = vmatpush2.bf16.msra.mxu0 0
    %1962 = vmatprep.subr.bf16.mxu0 0
    %1963 = vmatpush2.bf16.msra.mxu0 0
    %1964 = vmatprep.subr.bf16.mxu0 0
    %1965 = vmatpush2.bf16.msra.mxu0 0
    %1966 = vmatprep.subr.bf16.mxu0 0
    %1967 = vmatpush2.bf16.msra.mxu0 0
    %1968 = vmatprep.mubr.bf16.mxu0 0
    %1969 = vmatmul.mubr.bf16.gmra.mxu0 %v1931
    %v1970 = vpop.f32.mrf.mxu0
    %v1971 = vadd.f32 0.0, %v1970
    %v1972 = vpop.f32.mrf.mxu0
    %v1973 = vpop.f32.mrf.mxu0
    %v1974 = vpop.f32.mrf.mxu0
    %1975 = vdwg.mxu0
    %1977 = vrot.lane.b32.xlu0 %v1971, 8
    %v1978 = vpop.permute.xlu0 %1977
    %1980 = vst.msk [vmem:[#allocation2 + $0x8] sm:$0xff] %vm502, %v1978
    %1981 = vrot.lane.b32.xlu0 %v1502, 112
    %v1982 = vpop.permute.xlu0 %1981
    %1983 = vrot.lane.b32.xlu0 %v1502, 80
    %v1984 = vpop.permute.xlu0 %1983
    %v1986 = vsel %vm148, %v1982, 0
    %v1989 = vsel %vm148, %v1984, 0
    %1991 = vmatprep.subr.bf16.mxu0 0
    %1992 = vmatpush1.bf16.xpose.msra.mxu0 0
    %1993 = vmatprep.subr.bf16.mxu0 0
    %1994 = vmatpush1.bf16.xpose.msra.mxu0 0
    %1995 = vmatprep.subr.bf16.mxu0 0
    %1996 = vmatpush1.bf16.xpose.msra.mxu0 0
    %1997 = vmatprep.subr.bf16.mxu0 0
    %1998 = vmatpush1.bf16.xpose.msra.mxu0 0
    %1999 = vmatprep.subr.bf16.mxu0 0
    %2000 = vmatpush1.bf16.xpose.msra.mxu0 0
    %2001 = vmatprep.subr.bf16.mxu0 0
    %2002 = vmatpush1.bf16.xpose.msra.mxu0 0
    %2003 = vmatprep.subr.bf16.mxu0 0
    %2004 = vmatpush1.bf16.xpose.msra.mxu0 0
    %2005 = vmatprep.subr.bf16.mxu0 0
    %2006 = vmatpush1.bf16.xpose.msra.mxu0 %v1989
    %2007 = vmatprep.subr.bf16.mxu0 0
    %2008 = vmatpush2.bf16.xpose.msra.mxu0 0
    %2009 = vmatprep.subr.bf16.mxu0 0
    %2010 = vmatpush2.bf16.xpose.msra.mxu0 0
    %2011 = vmatprep.subr.bf16.mxu0 0
    %2012 = vmatpush2.bf16.xpose.msra.mxu0 0
    %2013 = vmatprep.subr.bf16.mxu0 0
    %2014 = vmatpush2.bf16.xpose.msra.mxu0 0
    %2015 = vmatprep.subr.bf16.mxu0 0
    %2016 = vmatpush2.bf16.xpose.msra.mxu0 0
    %2017 = vmatprep.subr.bf16.mxu0 0
    %2018 = vmatpush2.bf16.xpose.msra.mxu0 0
    %2019 = vmatprep.subr.bf16.mxu0 0
    %2020 = vmatpush2.bf16.xpose.msra.mxu0 0
    %2021 = vmatprep.subr.bf16.mxu0 0
    %2022 = vmatpush2.bf16.xpose.msra.mxu0 0
    %2023 = vmatprep.mubr.bf16.mxu0 0
    %2024 = vmatmul.mubr.bf16.gmra.mxu0 %v1986
    %v2025 = vpop.f32.mrf.mxu0
    %v2026 = vadd.f32 0.0, %v2025
    %v2027 = vpop.f32.mrf.mxu0
    %v2028 = vpop.f32.mrf.mxu0
    %v2029 = vpop.f32.mrf.mxu0
    %2030 = vdwg.mxu0
    %v2031 = vmul.f32 %v2026, 0.35355338
    %v2032 = vld [vmem:[%s1] sm:$0x1]
    %v2033 = vlaneseq
    %v2034 = vshrl.u32 %v2033, 7
    %v2035 = vsub.s32 0, %v2034
    %v2036 = vrot.slane %v2032, %v2035
    %v2037 = vadd.f32 %v2031, %v2036
    %v2038 = vsel %vm148, %v2037, -inf
    %2039 = vmax.xlane.f32.xlu0 %v2038
    %v2040 = vpop.xlane.xlu0 %2039
    %v2041 = vsub.f32 %v2037, %v2040
    %v2042 = vmul.f32 %v2041, 1.442695
    %v2043 = vpow.pop %v2042
    %v2044 = vsel %vm148, %v2043, 0.0
    %2045 = vadd.xlane.f32.xlu0 %v2044
    %v2046 = vpop.xlane.xlu0 %2045
    %v2047 = vrcp.pop %v2046
    %v2048 = vmul.f32 %v2043, %v2047
    %v2049 = vpack.c.bf16 %v2048, %v2048
    %2050 = vrot.lane.b32.xlu0 %v1502, 48
    %v2051 = vpop.permute.xlu0 %2050
    %v2053 = vsel %vm148, %v2049, 0
    %v2056 = vsel %vm219, %v2051, 0
    %2058 = vmatprep.subr.bf16.mxu0 0
    %2059 = vmatpush1.bf16.msra.mxu0 0
    %2060 = vmatprep.subr.bf16.mxu0 0
    %2061 = vmatpush1.bf16.msra.mxu0 0
    %2062 = vmatprep.subr.bf16.mxu0 0
    %2063 = vmatpush1.bf16.msra.mxu0 0
    %2064 = vmatprep.subr.bf16.mxu0 0
    %2065 = vmatpush1.bf16.msra.mxu0 0
    %2066 = vmatprep.subr.bf16.mxu0 0
    %2067 = vmatpush1.bf16.msra.mxu0 0
    %2068 = vmatprep.subr.bf16.mxu0 0
    %2069 = vmatpush1.bf16.msra.mxu0 0
    %2070 = vmatprep.subr.bf16.mxu0 0
    %2071 = vmatpush1.bf16.msra.mxu0 0
    %2072 = vmatprep.subr.bf16.mxu0 0
    %2073 = vmatpush1.bf16.msra.mxu0 %v2056
    %2074 = vmatprep.subr.bf16.mxu0 0
    %2075 = vmatpush2.bf16.msra.mxu0 0
    %2076 = vmatprep.subr.bf16.mxu0 0
    %2077 = vmatpush2.bf16.msra.mxu0 0
    %2078 = vmatprep.subr.bf16.mxu0 0
    %2079 = vmatpush2.bf16.msra.mxu0 0
    %2080 = vmatprep.subr.bf16.mxu0 0
    %2081 = vmatpush2.bf16.msra.mxu0 0
    %2082 = vmatprep.subr.bf16.mxu0 0
    %2083 = vmatpush2.bf16.msra.mxu0 0
    %2084 = vmatprep.subr.bf16.mxu0 0
    %2085 = vmatpush2.bf16.msra.mxu0 0
    %2086 = vmatprep.subr.bf16.mxu0 0
    %2087 = vmatpush2.bf16.msra.mxu0 0
    %2088 = vmatprep.subr.bf16.mxu0 0
    %2089 = vmatpush2.bf16.msra.mxu0 0
    %2090 = vmatprep.mubr.bf16.mxu0 0
    %2091 = vmatmul.mubr.bf16.gmra.mxu0 %v2053
    %v2092 = vpop.f32.mrf.mxu0
    %v2093 = vadd.f32 0.0, %v2092
    %v2094 = vpop.f32.mrf.mxu0
    %v2095 = vpop.f32.mrf.mxu0
    %v2096 = vpop.f32.mrf.mxu0
    %2097 = vdwg.mxu0
    %2099 = vrot.lane.b32.xlu0 %v2093, 16
    %v2100 = vpop.permute.xlu0 %2099
    %2102 = vst.msk [vmem:[#allocation2] sm:$0xff] %vm747, %v2100
    %2103 = vrot.lane.b32.xlu0 %v1620, 112
    %v2104 = vpop.permute.xlu0 %2103
    %2105 = vrot.lane.b32.xlu0 %v1620, 80
    %v2106 = vpop.permute.xlu0 %2105
    %v2108 = vsel %vm148, %v2104, 0
    %v2111 = vsel %vm148, %v2106, 0
    %2113 = vmatprep.subr.bf16.mxu0 0
    %2114 = vmatpush1.bf16.xpose.msra.mxu0 0
    %2115 = vmatprep.subr.bf16.mxu0 0
    %2116 = vmatpush1.bf16.xpose.msra.mxu0 0
    %2117 = vmatprep.subr.bf16.mxu0 0
    %2118 = vmatpush1.bf16.xpose.msra.mxu0 0
    %2119 = vmatprep.subr.bf16.mxu0 0
    %2120 = vmatpush1.bf16.xpose.msra.mxu0 0
    %2121 = vmatprep.subr.bf16.mxu0 0
    %2122 = vmatpush1.bf16.xpose.msra.mxu0 0
    %2123 = vmatprep.subr.bf16.mxu0 0
    %2124 = vmatpush1.bf16.xpose.msra.mxu0 0
    %2125 = vmatprep.subr.bf16.mxu0 0
    %2126 = vmatpush1.bf16.xpose.msra.mxu0 0
    %2127 = vmatprep.subr.bf16.mxu0 0
    %2128 = vmatpush1.bf16.xpose.msra.mxu0 %v2111
    %2129 = vmatprep.subr.bf16.mxu0 0
    %2130 = vmatpush2.bf16.xpose.msra.mxu0 0
    %2131 = vmatprep.subr.bf16.mxu0 0
    %2132 = vmatpush2.bf16.xpose.msra.mxu0 0
    %2133 = vmatprep.subr.bf16.mxu0 0
    %2134 = vmatpush2.bf16.xpose.msra.mxu0 0
    %2135 = vmatprep.subr.bf16.mxu0 0
    %2136 = vmatpush2.bf16.xpose.msra.mxu0 0
    %2137 = vmatprep.subr.bf16.mxu0 0
    %2138 = vmatpush2.bf16.xpose.msra.mxu0 0
    %2139 = vmatprep.subr.bf16.mxu0 0
    %2140 = vmatpush2.bf16.xpose.msra.mxu0 0
    %2141 = vmatprep.subr.bf16.mxu0 0
    %2142 = vmatpush2.bf16.xpose.msra.mxu0 0
    %2143 = vmatprep.subr.bf16.mxu0 0
    %2144 = vmatpush2.bf16.xpose.msra.mxu0 0
    %2145 = vmatprep.mubr.bf16.mxu0 0
    %2146 = vmatmul.mubr.bf16.gmra.mxu0 %v2108
    %v2147 = vpop.f32.mrf.mxu0
    %v2148 = vadd.f32 0.0, %v2147
    %v2149 = vpop.f32.mrf.mxu0
    %v2150 = vpop.f32.mrf.mxu0
    %v2151 = vpop.f32.mrf.mxu0
    %2152 = vdwg.mxu0
    %v2153 = vmul.f32 %v2148, 0.35355338
    %v2154 = vld [vmem:[%s1 + $0x1] sm:$0x1]
    %v2155 = vlaneseq
    %v2156 = vshrl.u32 %v2155, 7
    %v2157 = vsub.s32 0, %v2156
    %v2158 = vrot.slane %v2154, %v2157
    %v2159 = vadd.f32 %v2153, %v2158
    %v2160 = vsel %vm148, %v2159, -inf
    %2161 = vmax.xlane.f32.xlu0 %v2160
    %v2162 = vpop.xlane.xlu0 %2161
    %v2163 = vsub.f32 %v2159, %v2162
    %v2164 = vmul.f32 %v2163, 1.442695
    %v2165 = vpow.pop %v2164
    %v2166 = vsel %vm148, %v2165, 0.0
    %2167 = vadd.xlane.f32.xlu0 %v2166
    %v2168 = vpop.xlane.xlu0 %2167
    %v2169 = vrcp.pop %v2168
    %v2170 = vmul.f32 %v2165, %v2169
    %v2171 = vpack.c.bf16 %v2170, %v2170
    %2172 = vrot.lane.b32.xlu0 %v1620, 48
    %v2173 = vpop.permute.xlu0 %2172
    %v2175 = vsel %vm148, %v2171, 0
    %v2178 = vsel %vm219, %v2173, 0
    %2180 = vmatprep.subr.bf16.mxu0 0
    %2181 = vmatpush1.bf16.msra.mxu0 0
    %2182 = vmatprep.subr.bf16.mxu0 0
    %2183 = vmatpush1.bf16.msra.mxu0 0
    %2184 = vmatprep.subr.bf16.mxu0 0
    %2185 = vmatpush1.bf16.msra.mxu0 0
    %2186 = vmatprep.subr.bf16.mxu0 0
    %2187 = vmatpush1.bf16.msra.mxu0 0
    %2188 = vmatprep.subr.bf16.mxu0 0
    %2189 = vmatpush1.bf16.msra.mxu0 0
    %2190 = vmatprep.subr.bf16.mxu0 0
    %2191 = vmatpush1.bf16.msra.mxu0 0
    %2192 = vmatprep.subr.bf16.mxu0 0
    %2193 = vmatpush1.bf16.msra.mxu0 0
    %2194 = vmatprep.subr.bf16.mxu0 0
    %2195 = vmatpush1.bf16.msra.mxu0 %v2178
    %2196 = vmatprep.subr.bf16.mxu0 0
    %2197 = vmatpush2.bf16.msra.mxu0 0
    %2198 = vmatprep.subr.bf16.mxu0 0
    %2199 = vmatpush2.bf16.msra.mxu0 0
    %2200 = vmatprep.subr.bf16.mxu0 0
    %2201 = vmatpush2.bf16.msra.mxu0 0
    %2202 = vmatprep.subr.bf16.mxu0 0
    %2203 = vmatpush2.bf16.msra.mxu0 0
    %2204 = vmatprep.subr.bf16.mxu0 0
    %2205 = vmatpush2.bf16.msra.mxu0 0
    %2206 = vmatprep.subr.bf16.mxu0 0
    %2207 = vmatpush2.bf16.msra.mxu0 0
    %2208 = vmatprep.subr.bf16.mxu0 0
    %2209 = vmatpush2.bf16.msra.mxu0 0
    %2210 = vmatprep.subr.bf16.mxu0 0
    %2211 = vmatpush2.bf16.msra.mxu0 0
    %2212 = vmatprep.mubr.bf16.mxu0 0
    %2213 = vmatmul.mubr.bf16.gmra.mxu0 %v2175
    %v2214 = vpop.f32.mrf.mxu0
    %v2215 = vadd.f32 0.0, %v2214
    %v2216 = vpop.f32.mrf.mxu0
    %v2217 = vpop.f32.mrf.mxu0
    %v2218 = vpop.f32.mrf.mxu0
    %2219 = vdwg.mxu0
    %2221 = vrot.lane.b32.xlu0 %v2215, 16
    %v2222 = vpop.permute.xlu0 %2221
    %2224 = vst.msk [vmem:[#allocation2 + $0x8] sm:$0xff] %vm747, %v2222
    %2225 = vrot.lane.b32.xlu0 %v1502, 104
    %v2226 = vpop.permute.xlu0 %2225
    %2227 = vrot.lane.b32.xlu0 %v1502, 72
    %v2228 = vpop.permute.xlu0 %2227
    %v2230 = vsel %vm148, %v2226, 0
    %v2233 = vsel %vm148, %v2228, 0
    %2235 = vmatprep.subr.bf16.mxu0 0
    %2236 = vmatpush1.bf16.xpose.msra.mxu0 0
    %2237 = vmatprep.subr.bf16.mxu0 0
    %2238 = vmatpush1.bf16.xpose.msra.mxu0 0
    %2239 = vmatprep.subr.bf16.mxu0 0
    %2240 = vmatpush1.bf16.xpose.msra.mxu0 0
    %2241 = vmatprep.subr.bf16.mxu0 0
    %2242 = vmatpush1.bf16.xpose.msra.mxu0 0
    %2243 = vmatprep.subr.bf16.mxu0 0
    %2244 = vmatpush1.bf16.xpose.msra.mxu0 0
    %2245 = vmatprep.subr.bf16.mxu0 0
    %2246 = vmatpush1.bf16.xpose.msra.mxu0 0
    %2247 = vmatprep.subr.bf16.mxu0 0
    %2248 = vmatpush1.bf16.xpose.msra.mxu0 0
    %2249 = vmatprep.subr.bf16.mxu0 0
    %2250 = vmatpush1.bf16.xpose.msra.mxu0 %v2233
    %2251 = vmatprep.subr.bf16.mxu0 0
    %2252 = vmatpush2.bf16.xpose.msra.mxu0 0
    %2253 = vmatprep.subr.bf16.mxu0 0
    %2254 = vmatpush2.bf16.xpose.msra.mxu0 0
    %2255 = vmatprep.subr.bf16.mxu0 0
    %2256 = vmatpush2.bf16.xpose.msra.mxu0 0
    %2257 = vmatprep.subr.bf16.mxu0 0
    %2258 = vmatpush2.bf16.xpose.msra.mxu0 0
    %2259 = vmatprep.subr.bf16.mxu0 0
    %2260 = vmatpush2.bf16.xpose.msra.mxu0 0
    %2261 = vmatprep.subr.bf16.mxu0 0
    %2262 = vmatpush2.bf16.xpose.msra.mxu0 0
    %2263 = vmatprep.subr.bf16.mxu0 0
    %2264 = vmatpush2.bf16.xpose.msra.mxu0 0
    %2265 = vmatprep.subr.bf16.mxu0 0
    %2266 = vmatpush2.bf16.xpose.msra.mxu0 0
    %2267 = vmatprep.mubr.bf16.mxu0 0
    %2268 = vmatmul.mubr.bf16.gmra.mxu0 %v2230
    %v2269 = vpop.f32.mrf.mxu0
    %v2270 = vadd.f32 0.0, %v2269
    %v2271 = vpop.f32.mrf.mxu0
    %v2272 = vpop.f32.mrf.mxu0
    %v2273 = vpop.f32.mrf.mxu0
    %2274 = vdwg.mxu0
    %v2275 = vmul.f32 %v2270, 0.35355338
    %v2276 = vld [vmem:[%s1] sm:$0x1]
    %v2277 = vlaneseq
    %v2278 = vshrl.u32 %v2277, 7
    %v2279 = vsub.s32 0, %v2278
    %v2280 = vrot.slane %v2276, %v2279
    %v2281 = vadd.f32 %v2275, %v2280
    %v2282 = vsel %vm148, %v2281, -inf
    %2283 = vmax.xlane.f32.xlu0 %v2282
    %v2284 = vpop.xlane.xlu0 %2283
    %v2285 = vsub.f32 %v2281, %v2284
    %v2286 = vmul.f32 %v2285, 1.442695
    %v2287 = vpow.pop %v2286
    %v2288 = vsel %vm148, %v2287, 0.0
    %2289 = vadd.xlane.f32.xlu0 %v2288
    %v2290 = vpop.xlane.xlu0 %2289
    %v2291 = vrcp.pop %v2290
    %v2292 = vmul.f32 %v2287, %v2291
    %v2293 = vpack.c.bf16 %v2292, %v2292
    %2294 = vrot.lane.b32.xlu0 %v1502, 40
    %v2295 = vpop.permute.xlu0 %2294
    %v2297 = vsel %vm148, %v2293, 0
    %v2300 = vsel %vm219, %v2295, 0
    %2302 = vmatprep.subr.bf16.mxu0 0
    %2303 = vmatpush1.bf16.msra.mxu0 0
    %2304 = vmatprep.subr.bf16.mxu0 0
    %2305 = vmatpush1.bf16.msra.mxu0 0
    %2306 = vmatprep.subr.bf16.mxu0 0
    %2307 = vmatpush1.bf16.msra.mxu0 0
    %2308 = vmatprep.subr.bf16.mxu0 0
    %2309 = vmatpush1.bf16.msra.mxu0 0
    %2310 = vmatprep.subr.bf16.mxu0 0
    %2311 = vmatpush1.bf16.msra.mxu0 0
    %2312 = vmatprep.subr.bf16.mxu0 0
    %2313 = vmatpush1.bf16.msra.mxu0 0
    %2314 = vmatprep.subr.bf16.mxu0 0
    %2315 = vmatpush1.bf16.msra.mxu0 0
    %2316 = vmatprep.subr.bf16.mxu0 0
    %2317 = vmatpush1.bf16.msra.mxu0 %v2300
    %2318 = vmatprep.subr.bf16.mxu0 0
    %2319 = vmatpush2.bf16.msra.mxu0 0
    %2320 = vmatprep.subr.bf16.mxu0 0
    %2321 = vmatpush2.bf16.msra.mxu0 0
    %2322 = vmatprep.subr.bf16.mxu0 0
    %2323 = vmatpush2.bf16.msra.mxu0 0
    %2324 = vmatprep.subr.bf16.mxu0 0
    %2325 = vmatpush2.bf16.msra.mxu0 0
    %2326 = vmatprep.subr.bf16.mxu0 0
    %2327 = vmatpush2.bf16.msra.mxu0 0
    %2328 = vmatprep.subr.bf16.mxu0 0
    %2329 = vmatpush2.bf16.msra.mxu0 0
    %2330 = vmatprep.subr.bf16.mxu0 0
    %2331 = vmatpush2.bf16.msra.mxu0 0
    %2332 = vmatprep.subr.bf16.mxu0 0
    %2333 = vmatpush2.bf16.msra.mxu0 0
    %2334 = vmatprep.mubr.bf16.mxu0 0
    %2335 = vmatmul.mubr.bf16.gmra.mxu0 %v2297
    %v2336 = vpop.f32.mrf.mxu0
    %v2337 = vadd.f32 0.0, %v2336
    %v2338 = vpop.f32.mrf.mxu0
    %v2339 = vpop.f32.mrf.mxu0
    %v2340 = vpop.f32.mrf.mxu0
    %2341 = vdwg.mxu0
    %2343 = vrot.lane.b32.xlu0 %v2337, 24
    %v2344 = vpop.permute.xlu0 %2343
    %2346 = vst.msk [vmem:[#allocation2] sm:$0xff] %vm992, %v2344
    %2347 = vrot.lane.b32.xlu0 %v1620, 104
    %v2348 = vpop.permute.xlu0 %2347
    %2349 = vrot.lane.b32.xlu0 %v1620, 72
    %v2350 = vpop.permute.xlu0 %2349
    %v2352 = vsel %vm148, %v2348, 0
    %v2355 = vsel %vm148, %v2350, 0
    %2357 = vmatprep.subr.bf16.mxu0 0
    %2358 = vmatpush1.bf16.xpose.msra.mxu0 0
    %2359 = vmatprep.subr.bf16.mxu0 0
    %2360 = vmatpush1.bf16.xpose.msra.mxu0 0
    %2361 = vmatprep.subr.bf16.mxu0 0
    %2362 = vmatpush1.bf16.xpose.msra.mxu0 0
    %2363 = vmatprep.subr.bf16.mxu0 0
    %2364 = vmatpush1.bf16.xpose.msra.mxu0 0
    %2365 = vmatprep.subr.bf16.mxu0 0
    %2366 = vmatpush1.bf16.xpose.msra.mxu0 0
    %2367 = vmatprep.subr.bf16.mxu0 0
    %2368 = vmatpush1.bf16.xpose.msra.mxu0 0
    %2369 = vmatprep.subr.bf16.mxu0 0
    %2370 = vmatpush1.bf16.xpose.msra.mxu0 0
    %2371 = vmatprep.subr.bf16.mxu0 0
    %2372 = vmatpush1.bf16.xpose.msra.mxu0 %v2355
    %2373 = vmatprep.subr.bf16.mxu0 0
    %2374 = vmatpush2.bf16.xpose.msra.mxu0 0
    %2375 = vmatprep.subr.bf16.mxu0 0
    %2376 = vmatpush2.bf16.xpose.msra.mxu0 0
    %2377 = vmatprep.subr.bf16.mxu0 0
    %2378 = vmatpush2.bf16.xpose.msra.mxu0 0
    %2379 = vmatprep.subr.bf16.mxu0 0
    %2380 = vmatpush2.bf16.xpose.msra.mxu0 0
    %2381 = vmatprep.subr.bf16.mxu0 0
    %2382 = vmatpush2.bf16.xpose.msra.mxu0 0
    %2383 = vmatprep.subr.bf16.mxu0 0
    %2384 = vmatpush2.bf16.xpose.msra.mxu0 0
    %2385 = vmatprep.subr.bf16.mxu0 0
    %2386 = vmatpush2.bf16.xpose.msra.mxu0 0
    %2387 = vmatprep.subr.bf16.mxu0 0
    %2388 = vmatpush2.bf16.xpose.msra.mxu0 0
    %2389 = vmatprep.mubr.bf16.mxu0 0
    %2390 = vmatmul.mubr.bf16.gmra.mxu0 %v2352
    %v2391 = vpop.f32.mrf.mxu0
    %v2392 = vadd.f32 0.0, %v2391
    %v2393 = vpop.f32.mrf.mxu0
    %v2394 = vpop.f32.mrf.mxu0
    %v2395 = vpop.f32.mrf.mxu0
    %2396 = vdwg.mxu0
    %v2397 = vmul.f32 %v2392, 0.35355338
    %v2398 = vld [vmem:[%s1 + $0x1] sm:$0x1]
    %v2399 = vlaneseq
    %v2400 = vshrl.u32 %v2399, 7
    %v2401 = vsub.s32 0, %v2400
    %v2402 = vrot.slane %v2398, %v2401
    %v2403 = vadd.f32 %v2397, %v2402
    %v2404 = vsel %vm148, %v2403, -inf
    %2405 = vmax.xlane.f32.xlu0 %v2404
    %v2406 = vpop.xlane.xlu0 %2405
    %v2407 = vsub.f32 %v2403, %v2406
    %v2408 = vmul.f32 %v2407, 1.442695
    %v2409 = vpow.pop %v2408
    %v2410 = vsel %vm148, %v2409, 0.0
    %2411 = vadd.xlane.f32.xlu0 %v2410
    %v2412 = vpop.xlane.xlu0 %2411
    %v2413 = vrcp.pop %v2412
    %v2414 = vmul.f32 %v2409, %v2413
    %v2415 = vpack.c.bf16 %v2414, %v2414
    %2416 = vrot.lane.b32.xlu0 %v1620, 40
    %v2417 = vpop.permute.xlu0 %2416
    %v2419 = vsel %vm148, %v2415, 0
    %v2422 = vsel %vm219, %v2417, 0
    %2424 = vmatprep.subr.bf16.mxu0 0
    %2425 = vmatpush1.bf16.msra.mxu0 0
    %2426 = vmatprep.subr.bf16.mxu0 0
    %2427 = vmatpush1.bf16.msra.mxu0 0
    %2428 = vmatprep.subr.bf16.mxu0 0
    %2429 = vmatpush1.bf16.msra.mxu0 0
    %2430 = vmatprep.subr.bf16.mxu0 0
    %2431 = vmatpush1.bf16.msra.mxu0 0
    %2432 = vmatprep.subr.bf16.mxu0 0
    %2433 = vmatpush1.bf16.msra.mxu0 0
    %2434 = vmatprep.subr.bf16.mxu0 0
    %2435 = vmatpush1.bf16.msra.mxu0 0
    %2436 = vmatprep.subr.bf16.mxu0 0
    %2437 = vmatpush1.bf16.msra.mxu0 0
    %2438 = vmatprep.subr.bf16.mxu0 0
    %2439 = vmatpush1.bf16.msra.mxu0 %v2422
    %2440 = vmatprep.subr.bf16.mxu0 0
    %2441 = vmatpush2.bf16.msra.mxu0 0
    %2442 = vmatprep.subr.bf16.mxu0 0
    %2443 = vmatpush2.bf16.msra.mxu0 0
    %2444 = vmatprep.subr.bf16.mxu0 0
    %2445 = vmatpush2.bf16.msra.mxu0 0
    %2446 = vmatprep.subr.bf16.mxu0 0
    %2447 = vmatpush2.bf16.msra.mxu0 0
    %2448 = vmatprep.subr.bf16.mxu0 0
    %2449 = vmatpush2.bf16.msra.mxu0 0
    %2450 = vmatprep.subr.bf16.mxu0 0
    %2451 = vmatpush2.bf16.msra.mxu0 0
    %2452 = vmatprep.subr.bf16.mxu0 0
    %2453 = vmatpush2.bf16.msra.mxu0 0
    %2454 = vmatprep.subr.bf16.mxu0 0
    %2455 = vmatpush2.bf16.msra.mxu0 0
    %2456 = vmatprep.mubr.bf16.mxu0 0
    %2457 = vmatmul.mubr.bf16.gmra.mxu0 %v2419
    %v2458 = vpop.f32.mrf.mxu0
    %v2459 = vadd.f32 0.0, %v2458
    %v2460 = vpop.f32.mrf.mxu0
    %v2461 = vpop.f32.mrf.mxu0
    %v2462 = vpop.f32.mrf.mxu0
    %2463 = vdwg.mxu0
    %2465 = vrot.lane.b32.xlu0 %v2459, 24
    %v2466 = vpop.permute.xlu0 %2465
    %2468 = vst.msk [vmem:[#allocation2 + $0x8] sm:$0xff] %vm992, %v2466
    %v2469 = vld [vmem:[#allocation2] sm:$0xff]
    %v2470 = vld [vmem:[#allocation2 + $0x8] sm:$0xff]
    %v2471 = vpack.c.bf16 %v2470, %v2469
    %s2472 = scalar_lea.vmem %s4, 16
    %v2473 = vld [vmem:[%s2472] sm:$0xf]
    %v2474 = vld [vmem:[%s2472 + $0x4] sm:$0xf]
    %v2475 = vld [vmem:[%s2472 + $0x8] sm:$0xf]
    %v2476 = vld [vmem:[%s2472 + $0xc] sm:$0xf]
    %v2477 = vld [vmem:[%s2 + $0xb] sm:$0x1]
    %v2478 = vlaneseq
    %v2479 = vshrl.u32 %v2478, 7
    %v2480 = vsub.s32 0, %v2479
    %v2481 = vrot.slane %v2477, %v2480
    %v2486 = vunpack.c.l.b16 %v2473
    %v2487 = vunpack.c.l.b16 %v2474
    %v2488 = vunpack.c.l.b16 %v2475
    %v2489 = vunpack.c.l.b16 %v2476
    %v2490 = vpack.c.b16 %v2487, %v2486
    %v2491 = vpack.c.b16 %v2489, %v2488
    %v2495 = vsel %vm38, %v2471, 0
    %2497 = vmatprep.subr.bf16.mxu0 0
    %2498 = vmatpush1.bf16.msra.mxu0 0
    %2499 = vmatprep.subr.bf16.mxu0 0
    %2500 = vmatpush1.bf16.msra.mxu0 0
    %2501 = vmatprep.subr.bf16.mxu0 0
    %2502 = vmatpush1.bf16.msra.mxu0 0
    %2503 = vmatprep.subr.bf16.mxu0 0
    %2504 = vmatpush1.bf16.msra.mxu0 0
    %2505 = vmatprep.subr.bf16.mxu0 0
    %2506 = vmatpush1.bf16.msra.mxu0 0
    %2507 = vmatprep.subr.bf16.mxu0 0
    %2508 = vmatpush1.bf16.msra.mxu0 0
    %2509 = vmatprep.subr.bf16.mxu0 0
    %2510 = vmatpush1.bf16.msra.mxu0 %v2491
    %2511 = vmatprep.subr.bf16.mxu0 0
    %2512 = vmatpush1.bf16.msra.mxu0 %v2490
    %2513 = vmatprep.subr.bf16.mxu0 0
    %2514 = vmatpush2.bf16.msra.mxu0 0
    %2515 = vmatprep.subr.bf16.mxu0 0
    %2516 = vmatpush2.bf16.msra.mxu0 0
    %2517 = vmatprep.subr.bf16.mxu0 0
    %2518 = vmatpush2.bf16.msra.mxu0 0
    %2519 = vmatprep.subr.bf16.mxu0 0
    %2520 = vmatpush2.bf16.msra.mxu0 0
    %2521 = vmatprep.subr.bf16.mxu0 0
    %2522 = vmatpush2.bf16.msra.mxu0 0
    %2523 = vmatprep.subr.bf16.mxu0 0
    %2524 = vmatpush2.bf16.msra.mxu0 0
    %2525 = vmatprep.subr.bf16.mxu0 0
    %2526 = vmatpush2.bf16.msra.mxu0 0
    %2527 = vmatprep.subr.bf16.mxu0 0
    %2528 = vmatpush2.bf16.msra.mxu0 0
    %2529 = vmatprep.mubr.bf16.mxu0 0
    %2530 = vmatmul.mubr.bf16.gmra.mxu0 %v2495
    %v2531 = vpop.f32.mrf.mxu0
    %v2532 = vadd.f32 %v2481, %v2531
    %v2533 = vpop.f32.mrf.mxu0
    %v2534 = vpop.f32.mrf.mxu0
    %v2535 = vadd.f32 %v2481, %v2534
    %v2536 = vpop.f32.mrf.mxu0
    %2537 = vdwg.mxu0
    %v2538 = vadd.f32 %v1433, %v2532
    %v2539 = vadd.f32 %v1434, %v2535
    %v2540 = vld [vmem:[%s2 + $0xc] sm:$0x1]
    %v2541 = vld [vmem:[%s2 + $0xd] sm:$0x1]
    %v2542 = vsel %vm38, %v2538, 0.0
    %2543 = vadd.xlane.f32.xlu0 %v2542
    %v2544 = vpop.xlane.xlu0 %2543
    %v2545 = vsel %vm38, %v2539, 0.0
    %2546 = vadd.xlane.f32.xlu0 %v2545
    %v2547 = vpop.xlane.xlu0 %2546
    %v2548 = vmul.f32 %v2544, %v45
    %v2549 = vmul.f32 %v2547, %v45
    %v2550 = vsub.f32 %v2538, %v2548
    %v2551 = vsub.f32 %v2539, %v2549
    %v2552 = vmul.f32 %v2550, %v2550
    %v2553 = vmul.f32 %v2551, %v2551
    %v2554 = vsel %vm38, %v2552, 0.0
    %2555 = vadd.xlane.f32.xlu0 %v2554
    %v2556 = vpop.xlane.xlu0 %2555
    %v2557 = vsel %vm38, %v2553, 0.0
    %2558 = vadd.xlane.f32.xlu0 %v2557
    %v2559 = vpop.xlane.xlu0 %2558
    %v2560 = vmul.f32 %v2556, %v45
    %v2561 = vmul.f32 %v2559, %v45
    %v2562 = vadd.f32 %v2560, 1e-12
    %v2563 = vadd.f32 %v2561, 1e-12
    %v2564 = vrsqrt.pop %v2562
    %v2565 = vrsqrt.pop %v2563
    %v2566 = vmul.f32 %v2550, %v2564
    %v2567 = vmul.f32 %v2551, %v2565
    %v2568 = vlaneseq
    %v2569 = vshrl.u32 %v2568, 7
    %v2570 = vsub.s32 0, %v2569
    %v2571 = vrot.slane %v2540, %v2570
    %v2572 = vmul.f32 %v2566, %v2571
    %v2573 = vmul.f32 %v2567, %v2571
    %v2574 = vlaneseq
    %v2575 = vshrl.u32 %v2574, 7
    %v2576 = vsub.s32 0, %v2575
    %v2577 = vrot.slane %v2541, %v2576
    %v2578 = vadd.f32 %v2572, %v2577
    %v2579 = vadd.f32 %v2573, %v2577
    %v2580 = vpack.c.bf16 %v2579, %v2578
    %s2581 = scalar_lea.vmem %s5, 16
    %v2582 = vld [vmem:[%s2581] sm:$0xf]
    %v2583 = vld [vmem:[%s2581 + $0x4] sm:$0xf]
    %v2584 = vld [vmem:[%s2581 + $0x8] sm:$0xf]
    %v2585 = vld [vmem:[%s2581 + $0xc] sm:$0xf]
    %v2586 = vld [vmem:[%s2 + $0xe] sm:$0x1]
    %v2587 = vlaneseq
    %v2588 = vshrl.u32 %v2587, 7
    %v2589 = vsub.s32 0, %v2588
    %v2590 = vrot.slane %v2586, %v2589
    %v2595 = vunpack.c.l.b16 %v2582
    %v2596 = vunpack.c.l.b16 %v2583
    %v2597 = vunpack.c.l.b16 %v2584
    %v2598 = vunpack.c.l.b16 %v2585
    %v2599 = vpack.c.b16 %v2596, %v2595
    %v2600 = vpack.c.b16 %v2598, %v2597
    %v2604 = vsel %vm38, %v2580, 0
    %2606 = vmatprep.subr.bf16.mxu0 0
    %2607 = vmatpush1.bf16.msra.mxu0 0
    %2608 = vmatprep.subr.bf16.mxu0 0
    %2609 = vmatpush1.bf16.msra.mxu0 0
    %2610 = vmatprep.subr.bf16.mxu0 0
    %2611 = vmatpush1.bf16.msra.mxu0 0
    %2612 = vmatprep.subr.bf16.mxu0 0
    %2613 = vmatpush1.bf16.msra.mxu0 0
    %2614 = vmatprep.subr.bf16.mxu0 0
    %2615 = vmatpush1.bf16.msra.mxu0 0
    %2616 = vmatprep.subr.bf16.mxu0 0
    %2617 = vmatpush1.bf16.msra.mxu0 0
    %2618 = vmatprep.subr.bf16.mxu0 0
    %2619 = vmatpush1.bf16.msra.mxu0 %v2600
    %2620 = vmatprep.subr.bf16.mxu0 0
    %2621 = vmatpush1.bf16.msra.mxu0 %v2599
    %2622 = vmatprep.subr.bf16.mxu0 0
    %2623 = vmatpush2.bf16.msra.mxu0 0
    %2624 = vmatprep.subr.bf16.mxu0 0
    %2625 = vmatpush2.bf16.msra.mxu0 0
    %2626 = vmatprep.subr.bf16.mxu0 0
    %2627 = vmatpush2.bf16.msra.mxu0 0
    %2628 = vmatprep.subr.bf16.mxu0 0
    %2629 = vmatpush2.bf16.msra.mxu0 0
    %2630 = vmatprep.subr.bf16.mxu0 0
    %2631 = vmatpush2.bf16.msra.mxu0 0
    %2632 = vmatprep.subr.bf16.mxu0 0
    %2633 = vmatpush2.bf16.msra.mxu0 0
    %2634 = vmatprep.subr.bf16.mxu0 0
    %2635 = vmatpush2.bf16.msra.mxu0 0
    %2636 = vmatprep.subr.bf16.mxu0 0
    %2637 = vmatpush2.bf16.msra.mxu0 0
    %2638 = vmatprep.mubr.bf16.mxu0 0
    %2639 = vmatmul.mubr.bf16.gmra.mxu0 %v2604
    %v2640 = vpop.f32.mrf.mxu0
    %v2641 = vadd.f32 %v2590, %v2640
    %v2642 = vpop.f32.mrf.mxu0
    %v2643 = vpop.f32.mrf.mxu0
    %v2644 = vadd.f32 %v2590, %v2643
    %v2645 = vpop.f32.mrf.mxu0
    %2646 = vdwg.mxu0
    %v2647 = vmul.f32 %v2641, %v2641
    %v2648 = vmul.f32 %v2644, %v2644
    %v2649 = vmul.f32 %v2641, %v2647
    %v2650 = vmul.f32 %v2644, %v2648
    %v2651 = vmul.f32 %v2649, 0.044715
    %v2652 = vmul.f32 %v2650, 0.044715
    %v2653 = vadd.f32 %v2641, %v2651
    %v2654 = vadd.f32 %v2644, %v2652
    %v2655 = vmul.f32 %v2653, 0.7978846
    %v2656 = vmul.f32 %v2654, 0.7978846
    %v2657 = vtanh.pop %v2655
    %v2658 = vtanh.pop %v2656
    %v2659 = vadd.f32 %v2657, 1.0
    %v2660 = vadd.f32 %v2658, 1.0
    %v2661 = vmul.f32 %v2659, 0.5
    %v2662 = vmul.f32 %v2660, 0.5
    %v2663 = vmul.f32 %v2641, %v2661
    %v2664 = vmul.f32 %v2644, %v2662
    %v2665 = vpack.c.bf16 %v2664, %v2663
    %s2666 = scalar_lea.vmem %s6, 32
    %v2667 = vld [vmem:[%s2666] sm:$0xf]
    %v2668 = vld [vmem:[%s2666 + $0x4] sm:$0xf]
    %v2669 = vld [vmem:[%s2666 + $0x8] sm:$0xf]
    %v2670 = vld [vmem:[%s2666 + $0xc] sm:$0xf]
    %v2671 = vld [vmem:[%s2666 + $0x10] sm:$0xf]
    %v2672 = vld [vmem:[%s2666 + $0x14] sm:$0xf]
    %v2673 = vld [vmem:[%s2666 + $0x18] sm:$0xf]
    %v2674 = vld [vmem:[%s2666 + $0x1c] sm:$0xf]
    %v2675 = vld [vmem:[%s2 + $0xf] sm:$0x1]
    %v2676 = vlaneseq
    %v2677 = vshrl.u32 %v2676, 7
    %v2678 = vsub.s32 0, %v2677
    %v2679 = vrot.slane %v2675, %v2678
    %v2688 = vunpack.c.l.b16 %v2667
    %v2689 = vunpack.c.l.b16 %v2668
    %v2690 = vunpack.c.l.b16 %v2669
    %v2691 = vunpack.c.l.b16 %v2670
    %v2692 = vunpack.c.l.b16 %v2671
    %v2693 = vunpack.c.l.b16 %v2672
    %v2694 = vunpack.c.l.b16 %v2673
    %v2695 = vunpack.c.l.b16 %v2674
    %v2696 = vpack.c.b16 %v2689, %v2688
    %v2697 = vpack.c.b16 %v2691, %v2690
    %v2698 = vpack.c.b16 %v2693, %v2692
    %v2699 = vpack.c.b16 %v2695, %v2694
    %v2705 = vsel %vm1348, %v2665, 0
    %2707 = vmatprep.subr.bf16.mxu0 0
    %2708 = vmatpush1.bf16.msra.mxu0 0
    %2709 = vmatprep.subr.bf16.mxu0 0
    %2710 = vmatpush1.bf16.msra.mxu0 0
    %2711 = vmatprep.subr.bf16.mxu0 0
    %2712 = vmatpush1.bf16.msra.mxu0 0
    %2713 = vmatprep.subr.bf16.mxu0 0
    %2714 = vmatpush1.bf16.msra.mxu0 0
    %2715 = vmatprep.subr.bf16.mxu0 0
    %2716 = vmatpush1.bf16.msra.mxu0 %v2699
    %2717 = vmatprep.subr.bf16.mxu0 0
    %2718 = vmatpush1.bf16.msra.mxu0 %v2698
    %2719 = vmatprep.subr.bf16.mxu0 0
    %2720 = vmatpush1.bf16.msra.mxu0 %v2697
    %2721 = vmatprep.subr.bf16.mxu0 0
    %2722 = vmatpush1.bf16.msra.mxu0 %v2696
    %2723 = vmatprep.subr.bf16.mxu0 0
    %2724 = vmatpush2.bf16.msra.mxu0 0
    %2725 = vmatprep.subr.bf16.mxu0 0
    %2726 = vmatpush2.bf16.msra.mxu0 0
    %2727 = vmatprep.subr.bf16.mxu0 0
    %2728 = vmatpush2.bf16.msra.mxu0 0
    %2729 = vmatprep.subr.bf16.mxu0 0
    %2730 = vmatpush2.bf16.msra.mxu0 0
    %2731 = vmatprep.subr.bf16.mxu0 0
    %2732 = vmatpush2.bf16.msra.mxu0 0
    %2733 = vmatprep.subr.bf16.mxu0 0
    %2734 = vmatpush2.bf16.msra.mxu0 0
    %2735 = vmatprep.subr.bf16.mxu0 0
    %2736 = vmatpush2.bf16.msra.mxu0 0
    %2737 = vmatprep.subr.bf16.mxu0 0
    %2738 = vmatpush2.bf16.msra.mxu0 0
    %2739 = vmatprep.mubr.bf16.mxu0 0
    %2740 = vmatmul.mubr.bf16.gmra.mxu0 %v2705
    %v2741 = vpop.f32.mrf.mxu0
    %v2742 = vadd.f32 %v2679, %v2741
    %v2743 = vpop.f32.mrf.mxu0
    %v2744 = vpop.f32.mrf.mxu0
    %v2745 = vadd.f32 %v2679, %v2744
    %v2746 = vpop.f32.mrf.mxu0
    %2747 = vdwg.mxu0
    %v2748 = vadd.f32 %v2578, %v2742
    %v2749 = vadd.f32 %v2579, %v2745
    %v2750 = vld [vmem:[%s2 + $0x10] sm:$0x1]
    %v2751 = vld [vmem:[%s2 + $0x11] sm:$0x1]
    %v2752 = vsel %vm38, %v2748, 0.0
    %2753 = vadd.xlane.f32.xlu0 %v2752
    %v2754 = vpop.xlane.xlu0 %2753
    %v2755 = vsel %vm38, %v2749, 0.0
    %2756 = vadd.xlane.f32.xlu0 %v2755
    %v2757 = vpop.xlane.xlu0 %2756
    %v2758 = vmul.f32 %v2754, %v45
    %v2759 = vmul.f32 %v2757, %v45
    %v2760 = vsub.f32 %v2748, %v2758
    %v2761 = vsub.f32 %v2749, %v2759
    %v2762 = vmul.f32 %v2760, %v2760
    %v2763 = vmul.f32 %v2761, %v2761
    %v2764 = vsel %vm38, %v2762, 0.0
    %2765 = vadd.xlane.f32.xlu0 %v2764
    %v2766 = vpop.xlane.xlu0 %2765
    %v2767 = vsel %vm38, %v2763, 0.0
    %2768 = vadd.xlane.f32.xlu0 %v2767
    %v2769 = vpop.xlane.xlu0 %2768
    %v2770 = vmul.f32 %v2766, %v45
    %v2771 = vmul.f32 %v2769, %v45
    %v2772 = vadd.f32 %v2770, 1e-12
    %v2773 = vadd.f32 %v2771, 1e-12
    %v2774 = vrsqrt.pop %v2772
    %v2775 = vrsqrt.pop %v2773
    %v2776 = vmul.f32 %v2760, %v2774
    %v2777 = vmul.f32 %v2761, %v2775
    %v2778 = vlaneseq
    %v2779 = vshrl.u32 %v2778, 7
    %v2780 = vsub.s32 0, %v2779
    %v2781 = vrot.slane %v2750, %v2780
    %v2782 = vmul.f32 %v2776, %v2781
    %v2783 = vmul.f32 %v2777, %v2781
    %v2784 = vlaneseq
    %v2785 = vshrl.u32 %v2784, 7
    %v2786 = vsub.s32 0, %v2785
    %v2787 = vrot.slane %v2751, %v2786
    %v2788 = vadd.f32 %v2782, %v2787
    %v2789 = vadd.f32 %v2783, %v2787
    %v2791 = vrot.slane %v2789, 7
    %vm2793 = vcmask 1040384
    %v2794 = vsel %vm2793, %v2788, %v2791
    %v2795 = vpack.c.bf16 %v2794, %v2794
    %v2796 = vld [vmem:[%s7] sm:$0xf]
    %v2797 = vld [vmem:[%s7 + $0x4] sm:$0xf]
    %v2798 = vld [vmem:[%s7 + $0x8] sm:$0xf]
    %v2799 = vld [vmem:[%s7 + $0xc] sm:$0xf]
    %v2800 = vld [vmem:[%s2 + $0x12] sm:$0x1]
    %v2801 = vlaneseq
    %v2802 = vshrl.u32 %v2801, 7
    %v2803 = vsub.s32 0, %v2802
    %v2804 = vrot.slane %v2800, %v2803
    %v2809 = vunpack.c.l.b16 %v2796
    %v2810 = vunpack.c.l.b16 %v2797
    %v2811 = vunpack.c.l.b16 %v2798
    %v2812 = vunpack.c.l.b16 %v2799
    %v2813 = vpack.c.b16 %v2810, %v2809
    %v2814 = vpack.c.b16 %v2812, %v2811
    %v2818 = vsel %vm38, %v2795, 0
    %2820 = vmatprep.subr.bf16.mxu0 0
    %2821 = vmatpush1.bf16.msra.mxu0 0
    %2822 = vmatprep.subr.bf16.mxu0 0
    %2823 = vmatpush1.bf16.msra.mxu0 0
    %2824 = vmatprep.subr.bf16.mxu0 0
    %2825 = vmatpush1.bf16.msra.mxu0 0
    %2826 = vmatprep.subr.bf16.mxu0 0
    %2827 = vmatpush1.bf16.msra.mxu0 0
    %2828 = vmatprep.subr.bf16.mxu0 0
    %2829 = vmatpush1.bf16.msra.mxu0 0
    %2830 = vmatprep.subr.bf16.mxu0 0
    %2831 = vmatpush1.bf16.msra.mxu0 0
    %2832 = vmatprep.subr.bf16.mxu0 0
    %2833 = vmatpush1.bf16.msra.mxu0 %v2814
    %2834 = vmatprep.subr.bf16.mxu0 0
    %2835 = vmatpush1.bf16.msra.mxu0 %v2813
    %2836 = vmatprep.subr.bf16.mxu0 0
    %2837 = vmatpush2.bf16.msra.mxu0 0
    %2838 = vmatprep.subr.bf16.mxu0 0
    %2839 = vmatpush2.bf16.msra.mxu0 0
    %2840 = vmatprep.subr.bf16.mxu0 0
    %2841 = vmatpush2.bf16.msra.mxu0 0
    %2842 = vmatprep.subr.bf16.mxu0 0
    %2843 = vmatpush2.bf16.msra.mxu0 0
    %2844 = vmatprep.subr.bf16.mxu0 0
    %2845 = vmatpush2.bf16.msra.mxu0 0
    %2846 = vmatprep.subr.bf16.mxu0 0
    %2847 = vmatpush2.bf16.msra.mxu0 0
    %2848 = vmatprep.subr.bf16.mxu0 0
    %2849 = vmatpush2.bf16.msra.mxu0 0
    %2850 = vmatprep.subr.bf16.mxu0 0
    %2851 = vmatpush2.bf16.msra.mxu0 0
    %2852 = vmatprep.mubr.bf16.mxu0 0
    %2853 = vmatmul.mubr.bf16.gmra.mxu0 %v2818
    %v2854 = vpop.f32.mrf.mxu0
    %v2855 = vadd.f32 %v2804, %v2854
    %v2856 = vpop.f32.mrf.mxu0
    %v2857 = vpop.f32.mrf.mxu0
    %v2858 = vpop.f32.mrf.mxu0
    %2859 = vdwg.mxu0
    %v2860 = vtanh.pop %v2855
    %v2861 = vpack.c.bf16 %v2860, %v2860
    %v2862 = vld [vmem:[%s8] sm:$0xf]
    %v2863 = vld [vmem:[%s8 + $0x4] sm:$0xf]
    %v2864 = vld [vmem:[%s8 + $0x8] sm:$0xf]
    %v2865 = vld [vmem:[%s8 + $0xc] sm:$0xf]
    %v2866 = vld [vmem:[%s2 + $0x13] sm:$0x1]
    %v2867 = vlaneseq
    %v2868 = vshrl.u32 %v2867, 7
    %v2869 = vsub.s32 0, %v2868
    %v2870 = vrot.slane %v2866, %v2869
    %v2875 = vunpack.c.l.b16 %v2862
    %v2876 = vunpack.c.l.b16 %v2863
    %v2877 = vunpack.c.l.b16 %v2864
    %v2878 = vunpack.c.l.b16 %v2865
    %v2879 = vpack.c.b16 %v2876, %v2875
    %v2880 = vpack.c.b16 %v2878, %v2877
    %v2884 = vsel %vm38, %v2861, 0
    %2886 = vmatprep.subr.bf16.mxu0 0
    %2887 = vmatpush1.bf16.msra.mxu0 0
    %2888 = vmatprep.subr.bf16.mxu0 0
    %2889 = vmatpush1.bf16.msra.mxu0 0
    %2890 = vmatprep.subr.bf16.mxu0 0
    %2891 = vmatpush1.bf16.msra.mxu0 0
    %2892 = vmatprep.subr.bf16.mxu0 0
    %2893 = vmatpush1.bf16.msra.mxu0 0
    %2894 = vmatprep.subr.bf16.mxu0 0
    %2895 = vmatpush1.bf16.msra.mxu0 0
    %2896 = vmatprep.subr.bf16.mxu0 0
    %2897 = vmatpush1.bf16.msra.mxu0 0
    %2898 = vmatprep.subr.bf16.mxu0 0
    %2899 = vmatpush1.bf16.msra.mxu0 %v2880
    %2900 = vmatprep.subr.bf16.mxu0 0
    %2901 = vmatpush1.bf16.msra.mxu0 %v2879
    %2902 = vmatprep.subr.bf16.mxu0 0
    %2903 = vmatpush2.bf16.msra.mxu0 0
    %2904 = vmatprep.subr.bf16.mxu0 0
    %2905 = vmatpush2.bf16.msra.mxu0 0
    %2906 = vmatprep.subr.bf16.mxu0 0
    %2907 = vmatpush2.bf16.msra.mxu0 0
    %2908 = vmatprep.subr.bf16.mxu0 0
    %2909 = vmatpush2.bf16.msra.mxu0 0
    %2910 = vmatprep.subr.bf16.mxu0 0
    %2911 = vmatpush2.bf16.msra.mxu0 0
    %2912 = vmatprep.subr.bf16.mxu0 0
    %2913 = vmatpush2.bf16.msra.mxu0 0
    %2914 = vmatprep.subr.bf16.mxu0 0
    %2915 = vmatpush2.bf16.msra.mxu0 0
    %2916 = vmatprep.subr.bf16.mxu0 0
    %2917 = vmatpush2.bf16.msra.mxu0 0
    %2918 = vmatprep.mubr.bf16.mxu0 0
    %2919 = vmatmul.mubr.bf16.gmra.mxu0 %v2884
    %v2920 = vpop.f32.mrf.mxu0
    %v2921 = vadd.f32 %v2870, %v2920
    %v2922 = vpop.f32.mrf.mxu0
    %v2923 = vpop.f32.mrf.mxu0
    %v2924 = vpop.f32.mrf.mxu0
    %2925 = vdwg.mxu0
    %2926 = vst [vmem:[#allocation3] sm:$0x3] %v2921
    // Predicated region
    $region38: #{classificate_with_cls.1} parent=1 // pred_check
      _
    $region39: #{classificate_with_cls.1} parent=1 // pred_check_branch
      %2928 = sbr.rel (0) target = $region41
    $region40: #{classificate_with_cls.1} parent=1 // pred_region
      %s2930 = ssub.s32 32, 32
      %2931 = vsyncadd [#allocation4], %s2930
      %s2933 = sshll.u32 [#allocation3], 4
      %s2934 = int_to_ptr.vmem [resolvable:$true] %s2933
      %2936 = dma.vmem_to_hbm [thread:$0]  %s2934, 32, %s9, [#allocation4]
    $region41: #{classificate_with_cls.1} parent=1 // pred_fallthru
      _
    // Predicated region
    $region42: #{classificate_with_cls.1} parent=1 // pred_check
      _
    $region43: #{classificate_with_cls.1} parent=1 // pred_check_branch
      %2938 = sbr.rel (0) target = $region45
    $region44: #{classificate_with_cls.1} parent=1 // pred_region
      %2939 = dma.done [#allocation4], 32
    $region45: #{classificate_with_cls.1} parent=1 // pred_fallthru
      _
    %2940 = vsyncpa [#allocation4], 1

</llo_original>
